<compile_context>
chip_gen: v5e
topology: v5e:2x2
jax: 0.10.0
libtpu: 0.0.40
codegen_flags: <defaults>
</compile_context>

<pallas_src>
import functools
import math

import jax
import jax.numpy as jnp
from jax.experimental import pallas as pl
from jax.experimental.pallas import tpu as pltpu

LN_EPS = 1e-5


# ---------------------------------------------------------------------------
# In-kernel helpers (traced inside the Pallas kernel)
# ---------------------------------------------------------------------------
def _attend(q, k, v, kd):
    # q, k, v: (G, I, D). scores (G, I, I) = q @ k^T / kd, softmax, @ v.
    s = jnp.einsum('gid,gjd->gij', q, k,
                   preferred_element_type=jnp.float32) * (1.0 / kd)
    s = s - jnp.max(s, axis=-1, keepdims=True)
    e = jnp.exp(s)
    p = e / jnp.sum(e, axis=-1, keepdims=True)
    return jnp.einsum('gij,gjd->gid', p, v, preferred_element_type=jnp.float32)


def _layernorm(y, g, b):
    # LayerNorm over the last axis (length Input_len), biased variance, eps=1e-5.
    # g, b: (1, L)
    mu = jnp.mean(y, axis=-1, keepdims=True)
    var = jnp.mean((y - mu) ** 2, axis=-1, keepdims=True)
    return (y - mu) * jax.lax.rsqrt(var + LN_EPS) * g[None] + b[None]


# ---------------------------------------------------------------------------
# Fused kernel: Time_att + space_att2 + cross_att + final Conv1d, per batch.
# ---------------------------------------------------------------------------
def _sta_kernel(xt_ref, xs_ref, wbdt_ref, bbt_ref, ws_ref, bs_ref,
                wbdc_ref, bbc_ref, ln_ref, w3_ref, b3_ref,
                o_ref, s_scr, *, n, ie, l, out_len, kd):
    f32 = jnp.float32

    # ---------------- Time_att ----------------
    xt = xt_ref[0]                                     # (N*IE, L), rows ordered (node, channel)

    def conv_t(i):
        y = jnp.dot(wbdt_ref[i], xt, preferred_element_type=f32) + bbt_ref[i]
        return y.reshape(n, ie, l)                     # (N, IE, L), node-major

    q_t, k_t, v_t = conv_t(0), conv_t(1), conv_t(2)
    line_t = _attend(q_t, k_t, v_t, kd)                # (N, IE, L)
    x_node = xt.reshape(n, ie, l)
    t_node = _layernorm(x_node + line_t, ln_ref[0], ln_ref[1])   # (N, IE, L)
    t_flat = t_node.reshape(n * ie, l)                 # (N*IE, L)

    # ---------------- space_att2 ----------------
    xs = xs_ref[0]                                     # (L*IE, N), rows ordered (time, channel)

    def lin_s(i):
        y = jnp.dot(xs, ws_ref[i], preferred_element_type=f32) + bs_ref[i]
        return y.reshape(l, ie, n)                     # (L, IE, N), time-major

    q_s, k_s, v_s = lin_s(0), lin_s(1), lin_s(2)
    lines = _attend(q_s, k_s, v_s, kd)                 # (L, IE, N)

    # In-kernel reorientation (L, IE, N) -> scratch (IE*N, L): IE small 2-D
    # transposes of VMEM-resident tiles (no HBM round-trip, no host transpose).
    for c in range(ie):
        s_scr[c * n:(c + 1) * n, :] = lines[:, c, :].T

    # ---------------- cross_att ----------------
    # query comes from the space branch (permuted block-diag weight consumes the
    # (channel, node)-ordered scratch); key/value come from the Time_att output.
    q_c = (jnp.dot(wbdc_ref[0], s_scr[...], preferred_element_type=f32)
           + bbc_ref[0]).reshape(n, ie, l)
    k_c = (jnp.dot(wbdc_ref[1], t_flat, preferred_element_type=f32)
           + bbc_ref[1]).reshape(n, ie, l)
    v_c = (jnp.dot(wbdc_ref[2], t_flat, preferred_element_type=f32)
           + bbc_ref[2]).reshape(n, ie, l)
    line_c = _attend(q_c, k_c, v_c, kd)
    c_node = _layernorm(t_node + line_c, ln_ref[2], ln_ref[3])   # (N, IE, L)

    # ---------------- final Conv1d(Input_len*IE_dim -> out_len, k=1) ----------
    # out[n, o] = sum_{i,l} c_node[n, i, l] * W[o, i*L + l] + b[o]
    # (kept as IE small 2-D dots: a single (N, IE*L) matmul would need a
    #  lane-merging relayout of c_node; this form lowers robustly.)
    acc = jnp.zeros((n, out_len), f32)
    for i in range(ie):
        acc = acc + jnp.dot(c_node[:, i, :], w3_ref[i], preferred_element_type=f32)
    o_ref[0] = acc + b3_ref[...]


# ---------------------------------------------------------------------------
# Wrapper: host-side parameter packing / folding + the single pallas_call
# ---------------------------------------------------------------------------
def sta_block_forward(x, p, *, num_head, out_len):
    B, N, L, IE = x.shape
    NI = N * IE
    kd = math.sqrt(IE / num_head)
    f32 = jnp.float32

    # Input views (cheap XLA transposes feeding the single kernel).
    x_t = jnp.transpose(x, (0, 1, 3, 2)).reshape(B, NI, L).astype(f32)      # rows (node, channel)
    x_s = jnp.transpose(x, (0, 2, 3, 1)).reshape(B, L * IE, N).astype(f32)  # rows (time, channel)

    eye_n = jnp.eye(N, dtype=f32)

    def bd_node(w):
        # y_flat[(n,o), l] = sum_c w[o,c] * x_flat[(n,c), l]
        return jnp.einsum('nm,oc->nomc', eye_n, w.astype(f32)).reshape(NI, NI)

    def bd_perm(w):
        # y_flat[(n,o), l] = sum_c w[o,c] * s_scr[(c,n), l]
        return jnp.einsum('nm,oc->nocm', eye_n, w.astype(f32)).reshape(NI, NI)

    def big_bias(b):
        return jnp.tile(b.astype(f32), N)[:, None]     # (N*IE, 1), row (n,o) -> b[o]

    # Fold the shared-head Linear(num_head, 1) mixers into the value weights.
    wsum_t = p['wo_t'].sum()
    wsum_s = p['wo_s'].sum()
    wsum_c = p['wo_c'].sum()
    bout_s = p['bo_s'][0]
    # bo_t / bo_c are uniform offsets before a LayerNorm over L -> cancel exactly.
    # bo_s folds into the cross-attention query conv bias.

    wbd_t = jnp.stack([bd_node(p['wq_t']), bd_node(p['wk_t']), bd_node(wsum_t * p['wv_t'])])
    bb_t = jnp.stack([big_bias(p['bq_t']), big_bias(p['bk_t']), big_bias(wsum_t * p['bv_t'])])

    w_s = jnp.stack([p['wq_s'].T, p['wk_s'].T, (wsum_s * p['wv_s']).T]).astype(f32)
    b_s = jnp.stack([p['bq_s'][None, :], p['bk_s'][None, :],
                     (wsum_s * p['bv_s'])[None, :]]).astype(f32)

    bq_c_eff = p['bq_c'] + bout_s * p['wq_c'].sum(axis=1)
    wbd_c = jnp.stack([bd_perm(p['wq_c']), bd_node(p['wk_c']), bd_node(wsum_c * p['wv_c'])])
    bb_c = jnp.stack([big_bias(bq_c_eff), big_bias(p['bk_c']), big_bias(wsum_c * p['bv_c'])])

    ln_p = jnp.stack([p['g_t'], p['be_t'], p['g_c'], p['be_c']]).astype(f32)[:, None, :]  # (4,1,L)

    w3 = p['w_lin'].reshape(out_len, IE, L).transpose(1, 2, 0).astype(f32)   # (IE, L, out_len)
    b3 = p['b_lin'][None, :].astype(f32)

    def full_spec(shape):
        nd = len(shape)
        return pl.BlockSpec(shape, lambda b, _nd=nd: (0,) * _nd)

    def batch_spec(shape):
        nd = len(shape)
        return pl.BlockSpec((1,) + shape, lambda b, _nd=nd: (b,) + (0,) * _nd)

    kernel = functools.partial(_sta_kernel, n=N, ie=IE, l=L, out_len=out_len, kd=kd)

    out = pl.pallas_call(
        kernel,
        grid=(B,),
        in_specs=[
            batch_spec((NI, L)), batch_spec((L * IE, N)),
            full_spec((3, NI, NI)), full_spec((3, NI, 1)),
            full_spec((3, N, N)), full_spec((3, 1, N)),
            full_spec((3, NI, NI)), full_spec((3, NI, 1)),
            full_spec((4, 1, L)),
            full_spec((IE, L, out_len)), full_spec((1, out_len)),
        ],
        out_specs=batch_spec((N, out_len)),
        out_shape=jax.ShapeDtypeStruct((B, N, out_len), f32),
        scratch_shapes=[pltpu.VMEM((IE * N, L), f32)],
        compiler_params=pltpu.CompilerParams(dimension_semantics=("parallel",)),
    )(x_t, x_s, wbd_t, bb_t, w_s, b_s, wbd_c, bb_c, ln_p, w3, b3)
    return out


# ---------------------------------------------------------------------------
# Deterministic parameter init (shapes from the module's __init__)
# ---------------------------------------------------------------------------
def init_params(key, N, L, IE, out_len, num_head):
    keys = iter(jax.random.split(key, 30))

    def nrm(shape, scale=0.2):
        return scale * jax.random.normal(next(keys), shape, dtype=jnp.float32)

    p = {}
    # Time_att: 1x1 Conv2d q/k/v on IE channels, Linear(num_head,1), LayerNorm(L)
    for nm in ('q_t', 'k_t', 'v_t'):
        p['w' + nm] = nrm((IE, IE)); p['b' + nm] = nrm((IE,))
    p['wo_t'] = nrm((1, num_head)); p['bo_t'] = nrm((1,))
    p['g_t'] = 1.0 + nrm((L,), 0.1); p['be_t'] = nrm((L,), 0.1)
    # space_att2: Linear q/k/v over num_id, Linear(num_head,1)
    for nm in ('q_s', 'k_s', 'v_s'):
        p['w' + nm] = nrm((N, N)); p['b' + nm] = nrm((N,))
    p['wo_s'] = nrm((1, num_head)); p['bo_s'] = nrm((1,))
    # cross_att: 1x1 Conv2d q/k/v on IE channels, Linear(num_head,1), LayerNorm(L)
    for nm in ('q_c', 'k_c', 'v_c'):
        p['w' + nm] = nrm((IE, IE)); p['b' + nm] = nrm((IE,))
    p['wo_c'] = nrm((1, num_head)); p['bo_c'] = nrm((1,))
    p['g_c'] = 1.0 + nrm((L,), 0.1); p['be_c'] = nrm((L,), 0.1)
    # final Conv1d(Input_len*IE_dim -> out_len, kernel_size=1)
    p['w_lin'] = nrm((out_len, IE * L), 0.1); p['b_lin'] = nrm((out_len,), 0.1)
    return p


# ---------------------------------------------------------------------------
# Pure-JAX reference (mirrors the PyTorch forward in eval mode) for checking
# ---------------------------------------------------------------------------
def reference_forward(x, p, *, num_head):
    B, N, L, IE = x.shape
    kd = jnp.sqrt(jnp.float32(IE) / num_head)

    def conv1x1(xc, w, b):  # xc: (B, C, H, W)
        return jnp.einsum('oc,bchw->bohw', w, xc) + b[None, :, None, None]

    def softmax(s):
        s = s - s.max(-1, keepdims=True)
        e = jnp.exp(s)
        return e / e.sum(-1, keepdims=True)

    def ln(y, g, b, eps=LN_EPS):
        mu = y.mean(-1, keepdims=True)
        var = ((y - mu) ** 2).mean(-1, keepdims=True)
        return (y - mu) / jnp.sqrt(var + eps) * g + b

    def head_mix(line, w, b):  # identical heads -> Linear(num_head, 1)
        stacked = jnp.stack([line] * num_head, axis=-1)
        return (jnp.einsum('...h,oh->...o', stacked, w) + b)[..., 0]

    # Time_att
    xp = jnp.transpose(x, (0, 3, 1, 2))                                 # (B,IE,N,L)
    q = jnp.swapaxes(conv1x1(xp, p['wq_t'], p['bq_t']), 1, 2)           # (B,N,IE,L)
    k = jnp.transpose(conv1x1(xp, p['wk_t'], p['bk_t']), (0, 2, 3, 1))  # (B,N,L,IE)
    v = jnp.swapaxes(conv1x1(xp, p['wv_t'], p['bv_t']), 1, 2)
    line = jnp.matmul(softmax(jnp.einsum('bnil,bnlj->bnij', q, k) / kd), v)
    res = head_mix(line, p['wo_t'], p['bo_t'])
    T = ln(xp + jnp.swapaxes(res, 1, 2), p['g_t'], p['be_t'])           # (B,IE,N,L)

    # space_att2
    xs = jnp.transpose(x, (0, 2, 3, 1))                                 # (B,L,IE,N)
    qs = xs @ p['wq_s'].T + p['bq_s']
    ks = xs @ p['wk_s'].T + p['bk_s']
    vs = xs @ p['wv_s'].T + p['bv_s']
    lines = jnp.matmul(softmax(qs @ jnp.swapaxes(ks, -2, -1) / kd), vs)
    res_s = head_mix(lines, p['wo_s'], p['bo_s'])
    S = jnp.transpose(res_s, (0, 2, 3, 1))                              # (B,IE,N,L)

    # cross_att(x=T, x2=S)
    qc = jnp.swapaxes(conv1x1(S, p['wq_c'], p['bq_c']), 1, 2)           # (B,N,IE,L)
    kc = jnp.swapaxes(conv1x1(T, p['wk_c'], p['bk_c']), 1, 2)
    vc = jnp.swapaxes(conv1x1(T, p['wv_c'], p['bv_c']), 1, 2)
    linec = jnp.matmul(softmax(jnp.einsum('bnil,bnjl->bnij', qc, kc) / kd), vc)
    res_c = head_mix(linec, p['wo_c'], p['bo_c'])
    C = ln(jnp.swapaxes(T, 1, 2) + res_c, p['g_c'], p['be_c'])          # (B,N,IE,L)

    Cf = C.reshape(B, N, IE * L)
    return jnp.einsum('bnk,ok->bno', Cf, p['w_lin']) + p['b_lin'][None, None, :]


if __name__ == "__main__":
    # Small shapes consistent with the module:
    # B=2, num_id=8, Input_len=16, IE_dim=8, out_len=8, num_head=2, dropout=0 (eval)
    B, N, L, IE, OUT_LEN, NUM_HEAD = 2, 8, 16, 8, 8, 2

    key = jax.random.PRNGKey(0)
    pkey, xkey = jax.random.split(key)
    params = init_params(pkey, N, L, IE, OUT_LEN, NUM_HEAD)
    x = jax.random.normal(xkey, (B, N, L, IE), dtype=jnp.float32)

    out = sta_block_forward(x, params, num_head=NUM_HEAD, out_len=OUT_LEN)
    out = jax.block_until_ready(out)

    ref = reference_forward(x, params, num_head=NUM_HEAD)
    err = float(jnp.max(jnp.abs(out - ref)))
    assert out.shape == (B, N, OUT_LEN), out.shape
    assert err < 1e-3, f"mismatch vs reference: max abs err {err}"
    print("KERNEL_OK")
</pallas_src>

<mosaic_0001>
module attributes {stable_mosaic.version = 11 : i64} {
  func.func @_sta_kernel(%arg0: i32, %arg1: memref<1x64x16xf32, #tpu.memory_space<vmem>>, %arg2: memref<1x128x8xf32, #tpu.memory_space<vmem>>, %arg3: memref<3x64x64xf32, #tpu.memory_space<vmem>>, %arg4: memref<3x64x1xf32, #tpu.memory_space<vmem>>, %arg5: memref<3x8x8xf32, #tpu.memory_space<vmem>>, %arg6: memref<3x1x8xf32, #tpu.memory_space<vmem>>, %arg7: memref<3x64x64xf32, #tpu.memory_space<vmem>>, %arg8: memref<3x64x1xf32, #tpu.memory_space<vmem>>, %arg9: memref<4x1x16xf32, #tpu.memory_space<vmem>>, %arg10: memref<8x16x8xf32, #tpu.memory_space<vmem>>, %arg11: memref<1x8xf32, #tpu.memory_space<vmem>>, %arg12: memref<1x8x8xf32, #tpu.memory_space<vmem>>, %arg13: memref<64x16xf32, #tpu.memory_space<vmem>>) attributes {dimension_semantics = [#tpu.dimension_semantics<parallel>], iteration_bounds = array<i64: 2>, scalar_prefetch = 0 : i64, scratch_operands = 1 : i64, tpu.core_type = #tpu.core_type<tc>, window_params = [{transform_indices = @transform_0, window_bounds = array<i64: 1, 64, 16>}, {transform_indices = @transform_1, window_bounds = array<i64: 1, 128, 8>}, {pipeline_mode = #tpu.pipeline_mode<synchronous>, transform_indices = @transform_2, window_bounds = array<i64: 3, 64, 64>}, {pipeline_mode = #tpu.pipeline_mode<synchronous>, transform_indices = @transform_3, window_bounds = array<i64: 3, 64, 1>}, {pipeline_mode = #tpu.pipeline_mode<synchronous>, transform_indices = @transform_4, window_bounds = array<i64: 3, 8, 8>}, {pipeline_mode = #tpu.pipeline_mode<synchronous>, transform_indices = @transform_5, window_bounds = array<i64: 3, 1, 8>}, {pipeline_mode = #tpu.pipeline_mode<synchronous>, transform_indices = @transform_6, window_bounds = array<i64: 3, 64, 64>}, {pipeline_mode = #tpu.pipeline_mode<synchronous>, transform_indices = @transform_7, window_bounds = array<i64: 3, 64, 1>}, {pipeline_mode = #tpu.pipeline_mode<synchronous>, transform_indices = @transform_8, window_bounds = array<i64: 4, 1, 16>}, {pipeline_mode = #tpu.pipeline_mode<synchronous>, transform_indices = @transform_9, window_bounds = array<i64: 8, 16, 8>}, {pipeline_mode = #tpu.pipeline_mode<synchronous>, transform_indices = @transform_10, window_bounds = array<i64: 1, 8>}, {transform_indices = @transform_11, window_bounds = array<i64: 1, 8, 8>}]} {
    %c0 = arith.constant 0 : index
    %c0_0 = arith.constant 0 : index
    %c0_1 = arith.constant 0 : index
    %0 = vector.load %arg1[%c0, %c0_0, %c0_1] : memref<1x64x16xf32, #tpu.memory_space<vmem>>, vector<1x64x16xf32>
    %1 = vector.shape_cast %0 : vector<1x64x16xf32> to vector<64x16xf32>
    %c0_2 = arith.constant 0 : index
    %c0_3 = arith.constant 0 : index
    %c0_4 = arith.constant 0 : index
    %2 = vector.load %arg3[%c0_2, %c0_3, %c0_4] : memref<3x64x64xf32, #tpu.memory_space<vmem>>, vector<1x64x64xf32>
    %3 = vector.shape_cast %2 : vector<1x64x64xf32> to vector<64x64xf32>
    %cst = arith.constant dense<0.000000e+00> : vector<64x16xf32>
    %4 = tpu.matmul %3, %1, %cst {dimension_numbers = #tpu.dot_dimension_numbers<[1], [0], [0], [1], [0, 0, 1, 1], [], []>} : vector<64x64xf32>, vector<64x16xf32>, vector<64x16xf32> -> vector<64x16xf32>
    %c0_5 = arith.constant 0 : index
    %c0_6 = arith.constant 0 : index
    %c0_7 = arith.constant 0 : index
    %5 = vector.load %arg4[%c0_5, %c0_6, %c0_7] : memref<3x64x1xf32, #tpu.memory_space<vmem>>, vector<1x64x1xf32>
    %6 = vector.shape_cast %5 : vector<1x64x1xf32> to vector<64x1xf32>
    %7 = vector.broadcast %6 : vector<64x1xf32> to vector<64x16xf32>
    %8 = arith.addf %4, %7 : vector<64x16xf32>
    %9 = vector.shape_cast %8 : vector<64x16xf32> to vector<8x8x16xf32>
    %c1 = arith.constant 1 : index
    %c0_8 = arith.constant 0 : index
    %c0_9 = arith.constant 0 : index
    %10 = vector.load %arg3[%c1, %c0_8, %c0_9] : memref<3x64x64xf32, #tpu.memory_space<vmem>>, vector<1x64x64xf32>
    %11 = vector.shape_cast %10 : vector<1x64x64xf32> to vector<64x64xf32>
    %cst_10 = arith.constant dense<0.000000e+00> : vector<64x16xf32>
    %12 = tpu.matmul %11, %1, %cst_10 {dimension_numbers = #tpu.dot_dimension_numbers<[1], [0], [0], [1], [0, 0, 1, 1], [], []>} : vector<64x64xf32>, vector<64x16xf32>, vector<64x16xf32> -> vector<64x16xf32>
    %c1_11 = arith.constant 1 : index
    %c0_12 = arith.constant 0 : index
    %c0_13 = arith.constant 0 : index
    %13 = vector.load %arg4[%c1_11, %c0_12, %c0_13] : memref<3x64x1xf32, #tpu.memory_space<vmem>>, vector<1x64x1xf32>
    %14 = vector.shape_cast %13 : vector<1x64x1xf32> to vector<64x1xf32>
    %15 = vector.broadcast %14 : vector<64x1xf32> to vector<64x16xf32>
    %16 = arith.addf %12, %15 : vector<64x16xf32>
    %17 = vector.shape_cast %16 : vector<64x16xf32> to vector<8x8x16xf32>
    %c2 = arith.constant 2 : index
    %c0_14 = arith.constant 0 : index
    %c0_15 = arith.constant 0 : index
    %18 = vector.load %arg3[%c2, %c0_14, %c0_15] : memref<3x64x64xf32, #tpu.memory_space<vmem>>, vector<1x64x64xf32>
    %19 = vector.shape_cast %18 : vector<1x64x64xf32> to vector<64x64xf32>
    %cst_16 = arith.constant dense<0.000000e+00> : vector<64x16xf32>
    %20 = tpu.matmul %19, %1, %cst_16 {dimension_numbers = #tpu.dot_dimension_numbers<[1], [0], [0], [1], [0, 0, 1, 1], [], []>} : vector<64x64xf32>, vector<64x16xf32>, vector<64x16xf32> -> vector<64x16xf32>
    %c2_17 = arith.constant 2 : index
    %c0_18 = arith.constant 0 : index
    %c0_19 = arith.constant 0 : index
    %21 = vector.load %arg4[%c2_17, %c0_18, %c0_19] : memref<3x64x1xf32, #tpu.memory_space<vmem>>, vector<1x64x1xf32>
    %22 = vector.shape_cast %21 : vector<1x64x1xf32> to vector<64x1xf32>
    %23 = vector.broadcast %22 : vector<64x1xf32> to vector<64x16xf32>
    %24 = arith.addf %20, %23 : vector<64x16xf32>
    %25 = vector.shape_cast %24 : vector<64x16xf32> to vector<8x8x16xf32>
    "tpu.trace_start"() <{level = 10 : i32, message = "gid,gjd->gij"}> : () -> ()
    %cst_20 = arith.constant dense<0.000000e+00> : vector<8x8x8xf32>
    %26 = tpu.matmul %9, %17, %cst_20 {dimension_numbers = #tpu.dot_dimension_numbers<[2], [2], [1], [1], [0, 0, 0, 1, 1, 1], [0], [0]>} : vector<8x8x16xf32>, vector<8x8x16xf32>, vector<8x8x8xf32> -> vector<8x8x8xf32>
    "tpu.trace_stop"() : () -> ()
    %cst_21 = arith.constant 5.000000e-01 : f32
    %27 = vector.broadcast %cst_21 : f32 to vector<8x8x8xf32>
    %28 = arith.mulf %26, %27 : vector<8x8x8xf32>
    %cst_22 = arith.constant dense<0xFF800000> : vector<8x8xf32>
    %29 = vector.multi_reduction <maximumf>, %28, %cst_22 [2] : vector<8x8x8xf32> to vector<8x8xf32>
    %30 = vector.shape_cast %29 : vector<8x8xf32> to vector<8x8x1xf32>
    %31 = vector.broadcast %30 : vector<8x8x1xf32> to vector<8x8x8xf32>
    %32 = arith.subf %28, %31 : vector<8x8x8xf32>
    %33 = math.exp %32 : vector<8x8x8xf32>
    %cst_23 = arith.constant dense<0.000000e+00> : vector<8x8xf32>
    %34 = vector.multi_reduction <add>, %33, %cst_23 [2] : vector<8x8x8xf32> to vector<8x8xf32>
    %35 = vector.shape_cast %34 : vector<8x8xf32> to vector<8x8x1xf32>
    %36 = vector.broadcast %35 : vector<8x8x1xf32> to vector<8x8x8xf32>
    %37 = arith.divf %33, %36 : vector<8x8x8xf32>
    "tpu.trace_start"() <{level = 10 : i32, message = "gij,gjd->gid"}> : () -> ()
    %cst_24 = arith.constant dense<0.000000e+00> : vector<8x8x16xf32>
    %38 = tpu.matmul %37, %25, %cst_24 {dimension_numbers = #tpu.dot_dimension_numbers<[2], [1], [1], [2], [0, 0, 0, 1, 1, 2], [0], [0]>} : vector<8x8x8xf32>, vector<8x8x16xf32>, vector<8x8x16xf32> -> vector<8x8x16xf32>
    "tpu.trace_stop"() : () -> ()
    %39 = vector.shape_cast %1 : vector<64x16xf32> to vector<8x8x16xf32>
    %40 = arith.addf %39, %38 : vector<8x8x16xf32>
    %c0_25 = arith.constant 0 : index
    %c0_26 = arith.constant 0 : index
    %c0_27 = arith.constant 0 : index
    %41 = vector.load %arg9[%c0_25, %c0_26, %c0_27] : memref<4x1x16xf32, #tpu.memory_space<vmem>>, vector<1x1x16xf32>
    %42 = vector.shape_cast %41 : vector<1x1x16xf32> to vector<1x16xf32>
    %c1_28 = arith.constant 1 : index
    %c0_29 = arith.constant 0 : index
    %c0_30 = arith.constant 0 : index
    %43 = vector.load %arg9[%c1_28, %c0_29, %c0_30] : memref<4x1x16xf32, #tpu.memory_space<vmem>>, vector<1x1x16xf32>
    %44 = vector.shape_cast %43 : vector<1x1x16xf32> to vector<1x16xf32>
    %cst_31 = arith.constant dense<0.000000e+00> : vector<8x8xf32>
    %45 = vector.multi_reduction <add>, %40, %cst_31 [2] : vector<8x8x16xf32> to vector<8x8xf32>
    %46 = vector.shape_cast %45 : vector<8x8xf32> to vector<8x8x1xf32>
    %cst_32 = arith.constant 1.600000e+01 : f32
    %47 = vector.broadcast %cst_32 : f32 to vector<8x8x1xf32>
    %48 = arith.divf %46, %47 : vector<8x8x1xf32>
    %49 = vector.broadcast %48 : vector<8x8x1xf32> to vector<8x8x16xf32>
    %50 = arith.subf %40, %49 : vector<8x8x16xf32>
    %51 = arith.mulf %50, %50 : vector<8x8x16xf32>
    %cst_33 = arith.constant dense<0.000000e+00> : vector<8x8xf32>
    %52 = vector.multi_reduction <add>, %51, %cst_33 [2] : vector<8x8x16xf32> to vector<8x8xf32>
    %53 = vector.shape_cast %52 : vector<8x8xf32> to vector<8x8x1xf32>
    %cst_34 = arith.constant 1.600000e+01 : f32
    %54 = vector.broadcast %cst_34 : f32 to vector<8x8x1xf32>
    %55 = arith.divf %53, %54 : vector<8x8x1xf32>
    %56 = vector.broadcast %48 : vector<8x8x1xf32> to vector<8x8x16xf32>
    %57 = arith.subf %40, %56 : vector<8x8x16xf32>
    %cst_35 = arith.constant 9.99999974E-6 : f32
    %58 = vector.broadcast %cst_35 : f32 to vector<8x8x1xf32>
    %59 = arith.addf %55, %58 : vector<8x8x1xf32>
    %60 = math.rsqrt %59 : vector<8x8x1xf32>
    %61 = vector.broadcast %60 : vector<8x8x1xf32> to vector<8x8x16xf32>
    %62 = arith.mulf %57, %61 : vector<8x8x16xf32>
    %63 = vector.shape_cast %42 : vector<1x16xf32> to vector<1x1x16xf32>
    %64 = vector.broadcast %63 : vector<1x1x16xf32> to vector<8x8x16xf32>
    %65 = arith.mulf %62, %64 : vector<8x8x16xf32>
    %66 = vector.shape_cast %44 : vector<1x16xf32> to vector<1x1x16xf32>
    %67 = vector.broadcast %66 : vector<1x1x16xf32> to vector<8x8x16xf32>
    %68 = arith.addf %65, %67 : vector<8x8x16xf32>
    %69 = vector.shape_cast %68 : vector<8x8x16xf32> to vector<64x16xf32>
    %c0_36 = arith.constant 0 : index
    %c0_37 = arith.constant 0 : index
    %c0_38 = arith.constant 0 : index
    %70 = vector.load %arg2[%c0_36, %c0_37, %c0_38] : memref<1x128x8xf32, #tpu.memory_space<vmem>>, vector<1x128x8xf32>
    %71 = vector.shape_cast %70 : vector<1x128x8xf32> to vector<128x8xf32>
    %c0_39 = arith.constant 0 : index
    %c0_40 = arith.constant 0 : index
    %c0_41 = arith.constant 0 : index
    %72 = vector.load %arg5[%c0_39, %c0_40, %c0_41] : memref<3x8x8xf32, #tpu.memory_space<vmem>>, vector<1x8x8xf32>
    %73 = vector.shape_cast %72 : vector<1x8x8xf32> to vector<8x8xf32>
    %cst_42 = arith.constant dense<0.000000e+00> : vector<128x8xf32>
    %74 = tpu.matmul %71, %73, %cst_42 {dimension_numbers = #tpu.dot_dimension_numbers<[1], [0], [0], [1], [0, 0, 1, 1], [], []>} : vector<128x8xf32>, vector<8x8xf32>, vector<128x8xf32> -> vector<128x8xf32>
    %c0_43 = arith.constant 0 : index
    %c0_44 = arith.constant 0 : index
    %c0_45 = arith.constant 0 : index
    %75 = vector.load %arg6[%c0_43, %c0_44, %c0_45] : memref<3x1x8xf32, #tpu.memory_space<vmem>>, vector<1x1x8xf32>
    %76 = vector.shape_cast %75 : vector<1x1x8xf32> to vector<1x8xf32>
    %77 = vector.broadcast %76 : vector<1x8xf32> to vector<128x8xf32>
    %78 = arith.addf %74, %77 : vector<128x8xf32>
    %79 = vector.shape_cast %78 : vector<128x8xf32> to vector<16x8x8xf32>
    %c1_46 = arith.constant 1 : index
    %c0_47 = arith.constant 0 : index
    %c0_48 = arith.constant 0 : index
    %80 = vector.load %arg5[%c1_46, %c0_47, %c0_48] : memref<3x8x8xf32, #tpu.memory_space<vmem>>, vector<1x8x8xf32>
    %81 = vector.shape_cast %80 : vector<1x8x8xf32> to vector<8x8xf32>
    %cst_49 = arith.constant dense<0.000000e+00> : vector<128x8xf32>
    %82 = tpu.matmul %71, %81, %cst_49 {dimension_numbers = #tpu.dot_dimension_numbers<[1], [0], [0], [1], [0, 0, 1, 1], [], []>} : vector<128x8xf32>, vector<8x8xf32>, vector<128x8xf32> -> vector<128x8xf32>
    %c1_50 = arith.constant 1 : index
    %c0_51 = arith.constant 0 : index
    %c0_52 = arith.constant 0 : index
    %83 = vector.load %arg6[%c1_50, %c0_51, %c0_52] : memref<3x1x8xf32, #tpu.memory_space<vmem>>, vector<1x1x8xf32>
    %84 = vector.shape_cast %83 : vector<1x1x8xf32> to vector<1x8xf32>
    %85 = vector.broadcast %84 : vector<1x8xf32> to vector<128x8xf32>
    %86 = arith.addf %82, %85 : vector<128x8xf32>
    %87 = vector.shape_cast %86 : vector<128x8xf32> to vector<16x8x8xf32>
    %c2_53 = arith.constant 2 : index
    %c0_54 = arith.constant 0 : index
    %c0_55 = arith.constant 0 : index
    %88 = vector.load %arg5[%c2_53, %c0_54, %c0_55] : memref<3x8x8xf32, #tpu.memory_space<vmem>>, vector<1x8x8xf32>
    %89 = vector.shape_cast %88 : vector<1x8x8xf32> to vector<8x8xf32>
    %cst_56 = arith.constant dense<0.000000e+00> : vector<128x8xf32>
    %90 = tpu.matmul %71, %89, %cst_56 {dimension_numbers = #tpu.dot_dimension_numbers<[1], [0], [0], [1], [0, 0, 1, 1], [], []>} : vector<128x8xf32>, vector<8x8xf32>, vector<128x8xf32> -> vector<128x8xf32>
    %c2_57 = arith.constant 2 : index
    %c0_58 = arith.constant 0 : index
    %c0_59 = arith.constant 0 : index
    %91 = vector.load %arg6[%c2_57, %c0_58, %c0_59] : memref<3x1x8xf32, #tpu.memory_space<vmem>>, vector<1x1x8xf32>
    %92 = vector.shape_cast %91 : vector<1x1x8xf32> to vector<1x8xf32>
    %93 = vector.broadcast %92 : vector<1x8xf32> to vector<128x8xf32>
    %94 = arith.addf %90, %93 : vector<128x8xf32>
    %95 = vector.shape_cast %94 : vector<128x8xf32> to vector<16x8x8xf32>
    "tpu.trace_start"() <{level = 10 : i32, message = "gid,gjd->gij"}> : () -> ()
    %cst_60 = arith.constant dense<0.000000e+00> : vector<16x8x8xf32>
    %96 = tpu.matmul %79, %87, %cst_60 {dimension_numbers = #tpu.dot_dimension_numbers<[2], [2], [1], [1], [0, 0, 0, 1, 1, 1], [0], [0]>} : vector<16x8x8xf32>, vector<16x8x8xf32>, vector<16x8x8xf32> -> vector<16x8x8xf32>
    "tpu.trace_stop"() : () -> ()
    %cst_61 = arith.constant 5.000000e-01 : f32
    %97 = vector.broadcast %cst_61 : f32 to vector<16x8x8xf32>
    %98 = arith.mulf %96, %97 : vector<16x8x8xf32>
    %cst_62 = arith.constant dense<0xFF800000> : vector<16x8xf32>
    %99 = vector.multi_reduction <maximumf>, %98, %cst_62 [2] : vector<16x8x8xf32> to vector<16x8xf32>
    %100 = vector.shape_cast %99 : vector<16x8xf32> to vector<16x8x1xf32>
    %101 = vector.broadcast %100 : vector<16x8x1xf32> to vector<16x8x8xf32>
    %102 = arith.subf %98, %101 : vector<16x8x8xf32>
    %103 = math.exp %102 : vector<16x8x8xf32>
    %cst_63 = arith.constant dense<0.000000e+00> : vector<16x8xf32>
    %104 = vector.multi_reduction <add>, %103, %cst_63 [2] : vector<16x8x8xf32> to vector<16x8xf32>
    %105 = vector.shape_cast %104 : vector<16x8xf32> to vector<16x8x1xf32>
    %106 = vector.broadcast %105 : vector<16x8x1xf32> to vector<16x8x8xf32>
    %107 = arith.divf %103, %106 : vector<16x8x8xf32>
    "tpu.trace_start"() <{level = 10 : i32, message = "gij,gjd->gid"}> : () -> ()
    %cst_64 = arith.constant dense<0.000000e+00> : vector<16x8x8xf32>
    %108 = tpu.matmul %107, %95, %cst_64 {dimension_numbers = #tpu.dot_dimension_numbers<[2], [1], [1], [2], [0, 0, 0, 1, 1, 2], [0], [0]>} : vector<16x8x8xf32>, vector<16x8x8xf32>, vector<16x8x8xf32> -> vector<16x8x8xf32>
    "tpu.trace_stop"() : () -> ()
    %109 = vector.extract_strided_slice %108 {offsets = [0, 0, 0], sizes = [16, 1, 8], strides = [1, 1, 1]} : vector<16x8x8xf32> to vector<16x1x8xf32>
    %110 = vector.shape_cast %109 : vector<16x1x8xf32> to vector<16x8xf32>
    %111 = tpu.transpose %110, [1, 0] : vector<16x8xf32> -> vector<8x16xf32>
    %c0_65 = arith.constant 0 : index
    %c0_66 = arith.constant 0 : index
    %112 = vector.load %arg13[%c0_65, %c0_66] : memref<64x16xf32, #tpu.memory_space<vmem>>, vector<8x16xf32>
    tpu.vector_store %arg13[%c0_65, %c0_66], %111 {strides = array<i32>} : memref<64x16xf32, #tpu.memory_space<vmem>>, vector<8x16xf32>,
    %113 = vector.extract_strided_slice %108 {offsets = [0, 1, 0], sizes = [16, 1, 8], strides = [1, 1, 1]} : vector<16x8x8xf32> to vector<16x1x8xf32>
    %114 = vector.shape_cast %113 : vector<16x1x8xf32> to vector<16x8xf32>
    %115 = tpu.transpose %114, [1, 0] : vector<16x8xf32> -> vector<8x16xf32>
    %c8 = arith.constant 8 : index
    %c0_67 = arith.constant 0 : index
    %116 = vector.load %arg13[%c8, %c0_67] : memref<64x16xf32, #tpu.memory_space<vmem>>, vector<8x16xf32>
    tpu.vector_store %arg13[%c8, %c0_67], %115 {strides = array<i32>} : memref<64x16xf32, #tpu.memory_space<vmem>>, vector<8x16xf32>,
    %117 = vector.extract_strided_slice %108 {offsets = [0, 2, 0], sizes = [16, 1, 8], strides = [1, 1, 1]} : vector<16x8x8xf32> to vector<16x1x8xf32>
    %118 = vector.shape_cast %117 : vector<16x1x8xf32> to vector<16x8xf32>
    %119 = tpu.transpose %118, [1, 0] : vector<16x8xf32> -> vector<8x16xf32>
    %c16 = arith.constant 16 : index
    %c0_68 = arith.constant 0 : index
    %120 = vector.load %arg13[%c16, %c0_68] : memref<64x16xf32, #tpu.memory_space<vmem>>, vector<8x16xf32>
    tpu.vector_store %arg13[%c16, %c0_68], %119 {strides = array<i32>} : memref<64x16xf32, #tpu.memory_space<vmem>>, vector<8x16xf32>,
    %121 = vector.extract_strided_slice %108 {offsets = [0, 3, 0], sizes = [16, 1, 8], strides = [1, 1, 1]} : vector<16x8x8xf32> to vector<16x1x8xf32>
    %122 = vector.shape_cast %121 : vector<16x1x8xf32> to vector<16x8xf32>
    %123 = tpu.transpose %122, [1, 0] : vector<16x8xf32> -> vector<8x16xf32>
    %c24 = arith.constant 24 : index
    %c0_69 = arith.constant 0 : index
    %124 = vector.load %arg13[%c24, %c0_69] : memref<64x16xf32, #tpu.memory_space<vmem>>, vector<8x16xf32>
    tpu.vector_store %arg13[%c24, %c0_69], %123 {strides = array<i32>} : memref<64x16xf32, #tpu.memory_space<vmem>>, vector<8x16xf32>,
    %125 = vector.extract_strided_slice %108 {offsets = [0, 4, 0], sizes = [16, 1, 8], strides = [1, 1, 1]} : vector<16x8x8xf32> to vector<16x1x8xf32>
    %126 = vector.shape_cast %125 : vector<16x1x8xf32> to vector<16x8xf32>
    %127 = tpu.transpose %126, [1, 0] : vector<16x8xf32> -> vector<8x16xf32>
    %c32 = arith.constant 32 : index
    %c0_70 = arith.constant 0 : index
    %128 = vector.load %arg13[%c32, %c0_70] : memref<64x16xf32, #tpu.memory_space<vmem>>, vector<8x16xf32>
    tpu.vector_store %arg13[%c32, %c0_70], %127 {strides = array<i32>} : memref<64x16xf32, #tpu.memory_space<vmem>>, vector<8x16xf32>,
    %129 = vector.extract_strided_slice %108 {offsets = [0, 5, 0], sizes = [16, 1, 8], strides = [1, 1, 1]} : vector<16x8x8xf32> to vector<16x1x8xf32>
    %130 = vector.shape_cast %129 : vector<16x1x8xf32> to vector<16x8xf32>
    %131 = tpu.transpose %130, [1, 0] : vector<16x8xf32> -> vector<8x16xf32>
    %c40 = arith.constant 40 : index
    %c0_71 = arith.constant 0 : index
    %132 = vector.load %arg13[%c40, %c0_71] : memref<64x16xf32, #tpu.memory_space<vmem>>, vector<8x16xf32>
    tpu.vector_store %arg13[%c40, %c0_71], %131 {strides = array<i32>} : memref<64x16xf32, #tpu.memory_space<vmem>>, vector<8x16xf32>,
    %133 = vector.extract_strided_slice %108 {offsets = [0, 6, 0], sizes = [16, 1, 8], strides = [1, 1, 1]} : vector<16x8x8xf32> to vector<16x1x8xf32>
    %134 = vector.shape_cast %133 : vector<16x1x8xf32> to vector<16x8xf32>
    %135 = tpu.transpose %134, [1, 0] : vector<16x8xf32> -> vector<8x16xf32>
    %c48 = arith.constant 48 : index
    %c0_72 = arith.constant 0 : index
    %136 = vector.load %arg13[%c48, %c0_72] : memref<64x16xf32, #tpu.memory_space<vmem>>, vector<8x16xf32>
    tpu.vector_store %arg13[%c48, %c0_72], %135 {strides = array<i32>} : memref<64x16xf32, #tpu.memory_space<vmem>>, vector<8x16xf32>,
    %137 = vector.extract_strided_slice %108 {offsets = [0, 7, 0], sizes = [16, 1, 8], strides = [1, 1, 1]} : vector<16x8x8xf32> to vector<16x1x8xf32>
    %138 = vector.shape_cast %137 : vector<16x1x8xf32> to vector<16x8xf32>
    %139 = tpu.transpose %138, [1, 0] : vector<16x8xf32> -> vector<8x16xf32>
    %c56 = arith.constant 56 : index
    %c0_73 = arith.constant 0 : index
    %140 = vector.load %arg13[%c56, %c0_73] : memref<64x16xf32, #tpu.memory_space<vmem>>, vector<8x16xf32>
    tpu.vector_store %arg13[%c56, %c0_73], %139 {strides = array<i32>} : memref<64x16xf32, #tpu.memory_space<vmem>>, vector<8x16xf32>,
    %c0_74 = arith.constant 0 : index
    %c0_75 = arith.constant 0 : index
    %c0_76 = arith.constant 0 : index
    %141 = vector.load %arg7[%c0_74, %c0_75, %c0_76] : memref<3x64x64xf32, #tpu.memory_space<vmem>>, vector<1x64x64xf32>
    %142 = vector.shape_cast %141 : vector<1x64x64xf32> to vector<64x64xf32>
    %c0_77 = arith.constant 0 : index
    %c0_78 = arith.constant 0 : index
    %143 = vector.load %arg13[%c0_77, %c0_78] : memref<64x16xf32, #tpu.memory_space<vmem>>, vector<64x16xf32>
    %cst_79 = arith.constant dense<0.000000e+00> : vector<64x16xf32>
    %144 = tpu.matmul %142, %143, %cst_79 {dimension_numbers = #tpu.dot_dimension_numbers<[1], [0], [0], [1], [0, 0, 1, 1], [], []>} : vector<64x64xf32>, vector<64x16xf32>, vector<64x16xf32> -> vector<64x16xf32>
    %c0_80 = arith.constant 0 : index
    %c0_81 = arith.constant 0 : index
    %c0_82 = arith.constant 0 : index
    %145 = vector.load %arg8[%c0_80, %c0_81, %c0_82] : memref<3x64x1xf32, #tpu.memory_space<vmem>>, vector<1x64x1xf32>
    %146 = vector.shape_cast %145 : vector<1x64x1xf32> to vector<64x1xf32>
    %147 = vector.broadcast %146 : vector<64x1xf32> to vector<64x16xf32>
    %148 = arith.addf %144, %147 : vector<64x16xf32>
    %149 = vector.shape_cast %148 : vector<64x16xf32> to vector<8x8x16xf32>
    %c1_83 = arith.constant 1 : index
    %c0_84 = arith.constant 0 : index
    %c0_85 = arith.constant 0 : index
    %150 = vector.load %arg7[%c1_83, %c0_84, %c0_85] : memref<3x64x64xf32, #tpu.memory_space<vmem>>, vector<1x64x64xf32>
    %151 = vector.shape_cast %150 : vector<1x64x64xf32> to vector<64x64xf32>
    %cst_86 = arith.constant dense<0.000000e+00> : vector<64x16xf32>
    %152 = tpu.matmul %151, %69, %cst_86 {dimension_numbers = #tpu.dot_dimension_numbers<[1], [0], [0], [1], [0, 0, 1, 1], [], []>} : vector<64x64xf32>, vector<64x16xf32>, vector<64x16xf32> -> vector<64x16xf32>
    %c1_87 = arith.constant 1 : index
    %c0_88 = arith.constant 0 : index
    %c0_89 = arith.constant 0 : index
    %153 = vector.load %arg8[%c1_87, %c0_88, %c0_89] : memref<3x64x1xf32, #tpu.memory_space<vmem>>, vector<1x64x1xf32>
    %154 = vector.shape_cast %153 : vector<1x64x1xf32> to vector<64x1xf32>
    %155 = vector.broadcast %154 : vector<64x1xf32> to vector<64x16xf32>
    %156 = arith.addf %152, %155 : vector<64x16xf32>
    %157 = vector.shape_cast %156 : vector<64x16xf32> to vector<8x8x16xf32>
    %c2_90 = arith.constant 2 : index
    %c0_91 = arith.constant 0 : index
    %c0_92 = arith.constant 0 : index
    %158 = vector.load %arg7[%c2_90, %c0_91, %c0_92] : memref<3x64x64xf32, #tpu.memory_space<vmem>>, vector<1x64x64xf32>
    %159 = vector.shape_cast %158 : vector<1x64x64xf32> to vector<64x64xf32>
    %cst_93 = arith.constant dense<0.000000e+00> : vector<64x16xf32>
    %160 = tpu.matmul %159, %69, %cst_93 {dimension_numbers = #tpu.dot_dimension_numbers<[1], [0], [0], [1], [0, 0, 1, 1], [], []>} : vector<64x64xf32>, vector<64x16xf32>, vector<64x16xf32> -> vector<64x16xf32>
    %c2_94 = arith.constant 2 : index
    %c0_95 = arith.constant 0 : index
    %c0_96 = arith.constant 0 : index
    %161 = vector.load %arg8[%c2_94, %c0_95, %c0_96] : memref<3x64x1xf32, #tpu.memory_space<vmem>>, vector<1x64x1xf32>
    %162 = vector.shape_cast %161 : vector<1x64x1xf32> to vector<64x1xf32>
    %163 = vector.broadcast %162 : vector<64x1xf32> to vector<64x16xf32>
    %164 = arith.addf %160, %163 : vector<64x16xf32>
    %165 = vector.shape_cast %164 : vector<64x16xf32> to vector<8x8x16xf32>
    "tpu.trace_start"() <{level = 10 : i32, message = "gid,gjd->gij"}> : () -> ()
    %cst_97 = arith.constant dense<0.000000e+00> : vector<8x8x8xf32>
    %166 = tpu.matmul %149, %157, %cst_97 {dimension_numbers = #tpu.dot_dimension_numbers<[2], [2], [1], [1], [0, 0, 0, 1, 1, 1], [0], [0]>} : vector<8x8x16xf32>, vector<8x8x16xf32>, vector<8x8x8xf32> -> vector<8x8x8xf32>
    "tpu.trace_stop"() : () -> ()
    %cst_98 = arith.constant 5.000000e-01 : f32
    %167 = vector.broadcast %cst_98 : f32 to vector<8x8x8xf32>
    %168 = arith.mulf %166, %167 : vector<8x8x8xf32>
    %cst_99 = arith.constant dense<0xFF800000> : vector<8x8xf32>
    %169 = vector.multi_reduction <maximumf>, %168, %cst_99 [2] : vector<8x8x8xf32> to vector<8x8xf32>
    %170 = vector.shape_cast %169 : vector<8x8xf32> to vector<8x8x1xf32>
    %171 = vector.broadcast %170 : vector<8x8x1xf32> to vector<8x8x8xf32>
    %172 = arith.subf %168, %171 : vector<8x8x8xf32>
    %173 = math.exp %172 : vector<8x8x8xf32>
    %cst_100 = arith.constant dense<0.000000e+00> : vector<8x8xf32>
    %174 = vector.multi_reduction <add>, %173, %cst_100 [2] : vector<8x8x8xf32> to vector<8x8xf32>
    %175 = vector.shape_cast %174 : vector<8x8xf32> to vector<8x8x1xf32>
    %176 = vector.broadcast %175 : vector<8x8x1xf32> to vector<8x8x8xf32>
    %177 = arith.divf %173, %176 : vector<8x8x8xf32>
    "tpu.trace_start"() <{level = 10 : i32, message = "gij,gjd->gid"}> : () -> ()
    %cst_101 = arith.constant dense<0.000000e+00> : vector<8x8x16xf32>
    %178 = tpu.matmul %177, %165, %cst_101 {dimension_numbers = #tpu.dot_dimension_numbers<[2], [1], [1], [2], [0, 0, 0, 1, 1, 2], [0], [0]>} : vector<8x8x8xf32>, vector<8x8x16xf32>, vector<8x8x16xf32> -> vector<8x8x16xf32>
    "tpu.trace_stop"() : () -> ()
    %179 = arith.addf %68, %178 : vector<8x8x16xf32>
    %c2_102 = arith.constant 2 : index
    %c0_103 = arith.constant 0 : index
    %c0_104 = arith.constant 0 : index
    %180 = vector.load %arg9[%c2_102, %c0_103, %c0_104] : memref<4x1x16xf32, #tpu.memory_space<vmem>>, vector<1x1x16xf32>
    %181 = vector.shape_cast %180 : vector<1x1x16xf32> to vector<1x16xf32>
    %c3 = arith.constant 3 : index
    %c0_105 = arith.constant 0 : index
    %c0_106 = arith.constant 0 : index
    %182 = vector.load %arg9[%c3, %c0_105, %c0_106] : memref<4x1x16xf32, #tpu.memory_space<vmem>>, vector<1x1x16xf32>
    %183 = vector.shape_cast %182 : vector<1x1x16xf32> to vector<1x16xf32>
    %cst_107 = arith.constant dense<0.000000e+00> : vector<8x8xf32>
    %184 = vector.multi_reduction <add>, %179, %cst_107 [2] : vector<8x8x16xf32> to vector<8x8xf32>
    %185 = vector.shape_cast %184 : vector<8x8xf32> to vector<8x8x1xf32>
    %cst_108 = arith.constant 1.600000e+01 : f32
    %186 = vector.broadcast %cst_108 : f32 to vector<8x8x1xf32>
    %187 = arith.divf %185, %186 : vector<8x8x1xf32>
    %188 = vector.broadcast %187 : vector<8x8x1xf32> to vector<8x8x16xf32>
    %189 = arith.subf %179, %188 : vector<8x8x16xf32>
    %190 = arith.mulf %189, %189 : vector<8x8x16xf32>
    %cst_109 = arith.constant dense<0.000000e+00> : vector<8x8xf32>
    %191 = vector.multi_reduction <add>, %190, %cst_109 [2] : vector<8x8x16xf32> to vector<8x8xf32>
    %192 = vector.shape_cast %191 : vector<8x8xf32> to vector<8x8x1xf32>
    %cst_110 = arith.constant 1.600000e+01 : f32
    %193 = vector.broadcast %cst_110 : f32 to vector<8x8x1xf32>
    %194 = arith.divf %192, %193 : vector<8x8x1xf32>
    %195 = vector.broadcast %187 : vector<8x8x1xf32> to vector<8x8x16xf32>
    %196 = arith.subf %179, %195 : vector<8x8x16xf32>
    %cst_111 = arith.constant 9.99999974E-6 : f32
    %197 = vector.broadcast %cst_111 : f32 to vector<8x8x1xf32>
    %198 = arith.addf %194, %197 : vector<8x8x1xf32>
    %199 = math.rsqrt %198 : vector<8x8x1xf32>
    %200 = vector.broadcast %199 : vector<8x8x1xf32> to vector<8x8x16xf32>
    %201 = arith.mulf %196, %200 : vector<8x8x16xf32>
    %202 = vector.shape_cast %181 : vector<1x16xf32> to vector<1x1x16xf32>
    %203 = vector.broadcast %202 : vector<1x1x16xf32> to vector<8x8x16xf32>
    %204 = arith.mulf %201, %203 : vector<8x8x16xf32>
    %205 = vector.shape_cast %183 : vector<1x16xf32> to vector<1x1x16xf32>
    %206 = vector.broadcast %205 : vector<1x1x16xf32> to vector<8x8x16xf32>
    %207 = arith.addf %204, %206 : vector<8x8x16xf32>
    %cst_112 = arith.constant 0.000000e+00 : f32
    %208 = vector.broadcast %cst_112 : f32 to vector<8x8xf32>
    %209 = vector.extract_strided_slice %207 {offsets = [0, 0, 0], sizes = [8, 1, 16], strides = [1, 1, 1]} : vector<8x8x16xf32> to vector<8x1x16xf32>
    %210 = vector.shape_cast %209 : vector<8x1x16xf32> to vector<8x16xf32>
    %c0_113 = arith.constant 0 : index
    %c0_114 = arith.constant 0 : index
    %c0_115 = arith.constant 0 : index
    %211 = vector.load %arg10[%c0_113, %c0_114, %c0_115] : memref<8x16x8xf32, #tpu.memory_space<vmem>>, vector<1x16x8xf32>
    %212 = vector.shape_cast %211 : vector<1x16x8xf32> to vector<16x8xf32>
    %cst_116 = arith.constant dense<0.000000e+00> : vector<8x8xf32>
    %213 = tpu.matmul %210, %212, %cst_116 {dimension_numbers = #tpu.dot_dimension_numbers<[1], [0], [0], [1], [0, 0, 1, 1], [], []>} : vector<8x16xf32>, vector<16x8xf32>, vector<8x8xf32> -> vector<8x8xf32>
    %214 = arith.addf %208, %213 : vector<8x8xf32>
    %215 = vector.extract_strided_slice %207 {offsets = [0, 1, 0], sizes = [8, 1, 16], strides = [1, 1, 1]} : vector<8x8x16xf32> to vector<8x1x16xf32>
    %216 = vector.shape_cast %215 : vector<8x1x16xf32> to vector<8x16xf32>
    %c1_117 = arith.constant 1 : index
    %c0_118 = arith.constant 0 : index
    %c0_119 = arith.constant 0 : index
    %217 = vector.load %arg10[%c1_117, %c0_118, %c0_119] : memref<8x16x8xf32, #tpu.memory_space<vmem>>, vector<1x16x8xf32>
    %218 = vector.shape_cast %217 : vector<1x16x8xf32> to vector<16x8xf32>
    %cst_120 = arith.constant dense<0.000000e+00> : vector<8x8xf32>
    %219 = tpu.matmul %216, %218, %cst_120 {dimension_numbers = #tpu.dot_dimension_numbers<[1], [0], [0], [1], [0, 0, 1, 1], [], []>} : vector<8x16xf32>, vector<16x8xf32>, vector<8x8xf32> -> vector<8x8xf32>
    %220 = arith.addf %214, %219 : vector<8x8xf32>
    %221 = vector.extract_strided_slice %207 {offsets = [0, 2, 0], sizes = [8, 1, 16], strides = [1, 1, 1]} : vector<8x8x16xf32> to vector<8x1x16xf32>
    %222 = vector.shape_cast %221 : vector<8x1x16xf32> to vector<8x16xf32>
    %c2_121 = arith.constant 2 : index
    %c0_122 = arith.constant 0 : index
    %c0_123 = arith.constant 0 : index
    %223 = vector.load %arg10[%c2_121, %c0_122, %c0_123] : memref<8x16x8xf32, #tpu.memory_space<vmem>>, vector<1x16x8xf32>
    %224 = vector.shape_cast %223 : vector<1x16x8xf32> to vector<16x8xf32>
    %cst_124 = arith.constant dense<0.000000e+00> : vector<8x8xf32>
    %225 = tpu.matmul %222, %224, %cst_124 {dimension_numbers = #tpu.dot_dimension_numbers<[1], [0], [0], [1], [0, 0, 1, 1], [], []>} : vector<8x16xf32>, vector<16x8xf32>, vector<8x8xf32> -> vector<8x8xf32>
    %226 = arith.addf %220, %225 : vector<8x8xf32>
    %227 = vector.extract_strided_slice %207 {offsets = [0, 3, 0], sizes = [8, 1, 16], strides = [1, 1, 1]} : vector<8x8x16xf32> to vector<8x1x16xf32>
    %228 = vector.shape_cast %227 : vector<8x1x16xf32> to vector<8x16xf32>
    %c3_125 = arith.constant 3 : index
    %c0_126 = arith.constant 0 : index
    %c0_127 = arith.constant 0 : index
    %229 = vector.load %arg10[%c3_125, %c0_126, %c0_127] : memref<8x16x8xf32, #tpu.memory_space<vmem>>, vector<1x16x8xf32>
    %230 = vector.shape_cast %229 : vector<1x16x8xf32> to vector<16x8xf32>
    %cst_128 = arith.constant dense<0.000000e+00> : vector<8x8xf32>
    %231 = tpu.matmul %228, %230, %cst_128 {dimension_numbers = #tpu.dot_dimension_numbers<[1], [0], [0], [1], [0, 0, 1, 1], [], []>} : vector<8x16xf32>, vector<16x8xf32>, vector<8x8xf32> -> vector<8x8xf32>
    %232 = arith.addf %226, %231 : vector<8x8xf32>
    %233 = vector.extract_strided_slice %207 {offsets = [0, 4, 0], sizes = [8, 1, 16], strides = [1, 1, 1]} : vector<8x8x16xf32> to vector<8x1x16xf32>
    %234 = vector.shape_cast %233 : vector<8x1x16xf32> to vector<8x16xf32>
    %c4 = arith.constant 4 : index
    %c0_129 = arith.constant 0 : index
    %c0_130 = arith.constant 0 : index
    %235 = vector.load %arg10[%c4, %c0_129, %c0_130] : memref<8x16x8xf32, #tpu.memory_space<vmem>>, vector<1x16x8xf32>
    %236 = vector.shape_cast %235 : vector<1x16x8xf32> to vector<16x8xf32>
    %cst_131 = arith.constant dense<0.000000e+00> : vector<8x8xf32>
    %237 = tpu.matmul %234, %236, %cst_131 {dimension_numbers = #tpu.dot_dimension_numbers<[1], [0], [0], [1], [0, 0, 1, 1], [], []>} : vector<8x16xf32>, vector<16x8xf32>, vector<8x8xf32> -> vector<8x8xf32>
    %238 = arith.addf %232, %237 : vector<8x8xf32>
    %239 = vector.extract_strided_slice %207 {offsets = [0, 5, 0], sizes = [8, 1, 16], strides = [1, 1, 1]} : vector<8x8x16xf32> to vector<8x1x16xf32>
    %240 = vector.shape_cast %239 : vector<8x1x16xf32> to vector<8x16xf32>
    %c5 = arith.constant 5 : index
    %c0_132 = arith.constant 0 : index
    %c0_133 = arith.constant 0 : index
    %241 = vector.load %arg10[%c5, %c0_132, %c0_133] : memref<8x16x8xf32, #tpu.memory_space<vmem>>, vector<1x16x8xf32>
    %242 = vector.shape_cast %241 : vector<1x16x8xf32> to vector<16x8xf32>
    %cst_134 = arith.constant dense<0.000000e+00> : vector<8x8xf32>
    %243 = tpu.matmul %240, %242, %cst_134 {dimension_numbers = #tpu.dot_dimension_numbers<[1], [0], [0], [1], [0, 0, 1, 1], [], []>} : vector<8x16xf32>, vector<16x8xf32>, vector<8x8xf32> -> vector<8x8xf32>
    %244 = arith.addf %238, %243 : vector<8x8xf32>
    %245 = vector.extract_strided_slice %207 {offsets = [0, 6, 0], sizes = [8, 1, 16], strides = [1, 1, 1]} : vector<8x8x16xf32> to vector<8x1x16xf32>
    %246 = vector.shape_cast %245 : vector<8x1x16xf32> to vector<8x16xf32>
    %c6 = arith.constant 6 : index
    %c0_135 = arith.constant 0 : index
    %c0_136 = arith.constant 0 : index
    %247 = vector.load %arg10[%c6, %c0_135, %c0_136] : memref<8x16x8xf32, #tpu.memory_space<vmem>>, vector<1x16x8xf32>
    %248 = vector.shape_cast %247 : vector<1x16x8xf32> to vector<16x8xf32>
    %cst_137 = arith.constant dense<0.000000e+00> : vector<8x8xf32>
    %249 = tpu.matmul %246, %248, %cst_137 {dimension_numbers = #tpu.dot_dimension_numbers<[1], [0], [0], [1], [0, 0, 1, 1], [], []>} : vector<8x16xf32>, vector<16x8xf32>, vector<8x8xf32> -> vector<8x8xf32>
    %250 = arith.addf %244, %249 : vector<8x8xf32>
    %251 = vector.extract_strided_slice %207 {offsets = [0, 7, 0], sizes = [8, 1, 16], strides = [1, 1, 1]} : vector<8x8x16xf32> to vector<8x1x16xf32>
    %252 = vector.shape_cast %251 : vector<8x1x16xf32> to vector<8x16xf32>
    %c7 = arith.constant 7 : index
    %c0_138 = arith.constant 0 : index
    %c0_139 = arith.constant 0 : index
    %253 = vector.load %arg10[%c7, %c0_138, %c0_139] : memref<8x16x8xf32, #tpu.memory_space<vmem>>, vector<1x16x8xf32>
    %254 = vector.shape_cast %253 : vector<1x16x8xf32> to vector<16x8xf32>
    %cst_140 = arith.constant dense<0.000000e+00> : vector<8x8xf32>
    %255 = tpu.matmul %252, %254, %cst_140 {dimension_numbers = #tpu.dot_dimension_numbers<[1], [0], [0], [1], [0, 0, 1, 1], [], []>} : vector<8x16xf32>, vector<16x8xf32>, vector<8x8xf32> -> vector<8x8xf32>
    %256 = arith.addf %250, %255 : vector<8x8xf32>
    %c0_141 = arith.constant 0 : index
    %c0_142 = arith.constant 0 : index
    %257 = vector.load %arg11[%c0_141, %c0_142] : memref<1x8xf32, #tpu.memory_space<vmem>>, vector<1x8xf32>
    %258 = vector.broadcast %257 : vector<1x8xf32> to vector<8x8xf32>
    %259 = arith.addf %256, %258 : vector<8x8xf32>
    %c0_143 = arith.constant 0 : index
    %c0_144 = arith.constant 0 : index
    %c0_145 = arith.constant 0 : index
    %260 = vector.load %arg12[%c0_143, %c0_144, %c0_145] : memref<1x8x8xf32, #tpu.memory_space<vmem>>, vector<1x8x8xf32>
    %261 = vector.shape_cast %260 : vector<1x8x8xf32> to vector<8x8xf32>
    %262 = vector.shape_cast %259 : vector<8x8xf32> to vector<1x8x8xf32>
    tpu.vector_store %arg12[%c0_143, %c0_144, %c0_145], %262 {strides = array<i32>} : memref<1x8x8xf32, #tpu.memory_space<vmem>>, vector<1x8x8xf32>,
    return
  }
  func.func @transform_0(%arg0: i32) -> (i32, i32, i32) {
    %c0_i32 = arith.constant 0 : i32
    %c0_i32_0 = arith.constant 0 : i32
    %c0_i32_1 = arith.constant 0 : i32
    return %arg0, %c0_i32, %c0_i32_0 : i32, i32, i32
  }
  func.func @transform_1(%arg0: i32) -> (i32, i32, i32) {
    %c0_i32 = arith.constant 0 : i32
    %c0_i32_0 = arith.constant 0 : i32
    %c0_i32_1 = arith.constant 0 : i32
    return %arg0, %c0_i32, %c0_i32_0 : i32, i32, i32
  }
  func.func @transform_2(%arg0: i32) -> (i32, i32, i32) {
    %c0_i32 = arith.constant 0 : i32
    %c0_i32_0 = arith.constant 0 : i32
    %c0_i32_1 = arith.constant 0 : i32
    %c0_i32_2 = arith.constant 0 : i32
    return %c0_i32, %c0_i32_0, %c0_i32_1 : i32, i32, i32
  }
  func.func @transform_3(%arg0: i32) -> (i32, i32, i32) {
    %c0_i32 = arith.constant 0 : i32
    %c0_i32_0 = arith.constant 0 : i32
    %c0_i32_1 = arith.constant 0 : i32
    %c0_i32_2 = arith.constant 0 : i32
    return %c0_i32, %c0_i32_0, %c0_i32_1 : i32, i32, i32
  }
  func.func @transform_4(%arg0: i32) -> (i32, i32, i32) {
    %c0_i32 = arith.constant 0 : i32
    %c0_i32_0 = arith.constant 0 : i32
    %c0_i32_1 = arith.constant 0 : i32
    %c0_i32_2 = arith.constant 0 : i32
    return %c0_i32, %c0_i32_0, %c0_i32_1 : i32, i32, i32
  }
  func.func @transform_5(%arg0: i32) -> (i32, i32, i32) {
    %c0_i32 = arith.constant 0 : i32
    %c0_i32_0 = arith.constant 0 : i32
    %c0_i32_1 = arith.constant 0 : i32
    %c0_i32_2 = arith.constant 0 : i32
    return %c0_i32, %c0_i32_0, %c0_i32_1 : i32, i32, i32
  }
  func.func @transform_6(%arg0: i32) -> (i32, i32, i32) {
    %c0_i32 = arith.constant 0 : i32
    %c0_i32_0 = arith.constant 0 : i32
    %c0_i32_1 = arith.constant 0 : i32
    %c0_i32_2 = arith.constant 0 : i32
    return %c0_i32, %c0_i32_0, %c0_i32_1 : i32, i32, i32
  }
  func.func @transform_7(%arg0: i32) -> (i32, i32, i32) {
    %c0_i32 = arith.constant 0 : i32
    %c0_i32_0 = arith.constant 0 : i32
    %c0_i32_1 = arith.constant 0 : i32
    %c0_i32_2 = arith.constant 0 : i32
    return %c0_i32, %c0_i32_0, %c0_i32_1 : i32, i32, i32
  }
  func.func @transform_8(%arg0: i32) -> (i32, i32, i32) {
    %c0_i32 = arith.constant 0 : i32
    %c0_i32_0 = arith.constant 0 : i32
    %c0_i32_1 = arith.constant 0 : i32
    %c0_i32_2 = arith.constant 0 : i32
    return %c0_i32, %c0_i32_0, %c0_i32_1 : i32, i32, i32
  }
  func.func @transform_9(%arg0: i32) -> (i32, i32, i32) {
    %c0_i32 = arith.constant 0 : i32
    %c0_i32_0 = arith.constant 0 : i32
    %c0_i32_1 = arith.constant 0 : i32
    %c0_i32_2 = arith.constant 0 : i32
    return %c0_i32, %c0_i32_0, %c0_i32_1 : i32, i32, i32
  }
  func.func @transform_10(%arg0: i32) -> (i32, i32) {
    %c0_i32 = arith.constant 0 : i32
    %c0_i32_0 = arith.constant 0 : i32
    %c0_i32_1 = arith.constant 0 : i32
    return %c0_i32, %c0_i32_0 : i32, i32
  }
  func.func @transform_11(%arg0: i32) -> (i32, i32, i32) {
    %c0_i32 = arith.constant 0 : i32
    %c0_i32_0 = arith.constant 0 : i32
    %c0_i32_1 = arith.constant 0 : i32
    return %arg0, %c0_i32, %c0_i32_0 : i32, i32, i32
  }
}

</mosaic_0001>

<llo_original>
// kernel: tpu_custom_call.1
$region0: #{tpu_custom_call.1}
  #allocation0 [shape = 'u32[]', space=smem, size = 0x4, offset = 0x4, fixed_abs, tag = 'smem constant byte address 0x4 - core index']
  #allocation1 [shape = 'u32[72,128]{1,0:T(1,128)}', space=vmem, size = 0x9000, scoped, tag = 'internal scratch']
  #allocation2 [shape = 'f32[64,16]{1,0:T(8,128)}', space=vmem, size = 0x8000, scoped, tag = 'scratch operand']
  %s0 = inlined_call_operand.vmem [shape: f32[2,64,16], index: 0, kind: input, shape index: {}]
  %s1 = inlined_call_operand.vmem [shape: f32[2,128,8], index: 1, kind: input, shape index: {}]
  %s2 = inlined_call_operand.vmem [shape: f32[3,64,64], index: 2, kind: input, shape index: {}]
  %s3 = inlined_call_operand.vmem [shape: f32[3,64,1], index: 3, kind: input, shape index: {}]
  %s4 = inlined_call_operand.vmem [shape: f32[3,8,8], index: 4, kind: input, shape index: {}]
  %s5 = inlined_call_operand.vmem [shape: f32[3,1,8], index: 5, kind: input, shape index: {}]
  %s6 = inlined_call_operand.vmem [shape: f32[3,64,64], index: 6, kind: input, shape index: {}]
  %s7 = inlined_call_operand.vmem [shape: f32[3,64,1], index: 7, kind: input, shape index: {}]
  %s8 = inlined_call_operand.vmem [shape: f32[4,1,16], index: 8, kind: input, shape index: {}]
  %s9 = inlined_call_operand.vmem [shape: f32[8,16,8], index: 9, kind: input, shape index: {}]
  %s10 = inlined_call_operand.vmem [shape: f32[1,8], index: 10, kind: input, shape index: {}]
  %s11 = inlined_call_operand.hbm [shape: f32[2,8,8], index: 11, kind: output, shape index: {}]
  %s12 = sld [smem:[#allocation0]]
  $region77: #{tpu_custom_call.1} parent=0
    _
  %s14 = ssub.s32 1, %s12
  %s15 = scalar_select 0, %s14, %s12
  $region1: #{tpu_custom_call.1} parent=0
    #allocation3 [shape = 'u8[8192]{0}', space=vmem, size = 0x2000, scoped, tag = 'output window, operand 0']
    #allocation4 [shape = 's32[2]{0}', space=sflag, size = 0x8, scoped, tag = 'scoped memory for tpu_custom_call.1']
    %16 = vsyncpa [#allocation4], 0
    %s17 = scalar_lea.sflag [#allocation4], 1
    %18 = vsyncpa %s17, 0
    loop: start=0, step=1, limit=4
    $region2: #{tpu_custom_call.1} parent=1 // loop_pre_header
      _
    $region3: #{tpu_custom_call.1} parent=1 // loop_header
      %s20 = sphi 0, %s24
      %p21 = scmp.ge.s32.totalorder %s20, 4
      %s30 = sphi 0, %s32
      %s33 = sphi 0, %s30
      %s34 = sphi 0, %s33
      %s50 = sphi 0, %s34
      %s56 = sphi 0, %s58
      %s59 = sphi 0, %s56
      %s60 = sphi 0, %s59
      %s76 = sphi 0, %s60
      %s80 = sphi 0, %s80
      %s82 = sphi 0, %s80
      %s83 = sphi 0, %s82
      %s97 = sphi 0, %s83
      %s101 = sphi 0, %s101
      %s103 = sphi 0, %s101
      %s104 = sphi 0, %s103
      %s118 = sphi 0, %s104
      %s122 = sphi 0, %s122
      %s124 = sphi 0, %s122
      %s125 = sphi 0, %s124
      %s139 = sphi 0, %s125
      %s143 = sphi 0, %s143
      %s145 = sphi 0, %s143
      %s146 = sphi 0, %s145
      %s160 = sphi 0, %s146
      %s164 = sphi 0, %s164
      %s166 = sphi 0, %s164
      %s167 = sphi 0, %s166
      %s181 = sphi 0, %s167
      %s185 = sphi 0, %s185
      %s187 = sphi 0, %s185
      %s188 = sphi 0, %s187
      %s202 = sphi 0, %s188
      %s206 = sphi 0, %s206
      %s208 = sphi 0, %s206
      %s209 = sphi 0, %s208
      %s223 = sphi 0, %s209
      %s227 = sphi 0, %s227
      %s229 = sphi 0, %s227
      %s230 = sphi 0, %s229
      %s244 = sphi 0, %s230
      %s248 = sphi 0, %s248
      %s250 = sphi 0, %s248
      %s251 = sphi 0, %s250
      %s265 = sphi 0, %s251
      %s271 = sphi 0, %s273
      %s274 = sphi 0, %s271
      %s275 = sphi 0, %s274
      %s291 = sphi 0, %s275
    $region4: #{tpu_custom_call.1} parent=1 // loop_header_branch
      %23 = sbr.rel (%p21) target = $region8
    $region5: #{tpu_custom_call.1} parent=1 // loop_body
      %s25 = ssub.s32 %s20, 1
      %s26 = ssub.s32 %s20, 2
      %s27 = sadd.s32 %s20, 1
      %s28 = ssub.s32 %s20, %s27
      %p29 = scmp.eq.s32.totalorder %s28, 0
      %s31 = sadd.s32 %s30, 1
      %s32 = scalar_select %p29, %s30, %s31
      %p35 = pneg %p29
      %p36 = scmp.eq.s32.totalorder %s20, 1
      %p37 = por %p35, %p36
      %p38 = scmp.ne.s32.totalorder %s30, %s33
      %p39 = scmp.eq.s32.totalorder %s20, 0
      %p40 = por %p38, %p39
      %p41 = scmp.ne.s32.totalorder %s30, %s33
      %p42 = scmp.eq.s32.totalorder %s25, 1
      %p43 = por %p41, %p42
      %p44 = scmp.ne.s32.totalorder %s33, %s34
      %p45 = scmp.eq.s32.totalorder %s25, 0
      %p46 = por %p44, %p45
      %p47 = scmp.ne.s32.totalorder %s33, %s34
      %p48 = scmp.eq.s32.totalorder %s26, 1
      %p49 = por %p47, %p48
      %p51 = scmp.ne.s32.totalorder %s34, %s50
      %p52 = scmp.eq.s32.totalorder %s26, 0
      %p53 = por %p51, %p52
      %s54 = ssub.s32 %s20, %s27
      %p55 = scmp.eq.s32.totalorder %s54, 0
      %s57 = sadd.s32 %s56, 1
      %s58 = scalar_select %p55, %s56, %s57
      %p61 = pneg %p55
      %p62 = scmp.eq.s32.totalorder %s20, 1
      %p63 = por %p61, %p62
      %p64 = scmp.ne.s32.totalorder %s56, %s59
      %p65 = scmp.eq.s32.totalorder %s20, 0
      %p66 = por %p64, %p65
      %p67 = scmp.ne.s32.totalorder %s56, %s59
      %p68 = scmp.eq.s32.totalorder %s25, 1
      %p69 = por %p67, %p68
      %p70 = scmp.ne.s32.totalorder %s59, %s60
      %p71 = scmp.eq.s32.totalorder %s25, 0
      %p72 = por %p70, %p71
      %p73 = scmp.ne.s32.totalorder %s59, %s60
      %p74 = scmp.eq.s32.totalorder %s26, 1
      %p75 = por %p73, %p74
      %p77 = scmp.ne.s32.totalorder %s60, %s76
      %p78 = scmp.eq.s32.totalorder %s26, 0
      %p79 = por %p77, %p78
      %s81 = sadd.s32 %s80, 1
      %p84 = scmp.eq.s32.totalorder %s20, 1
      %p85 = scmp.ne.s32.totalorder %s80, %s82
      %p86 = scmp.eq.s32.totalorder %s20, 0
      %p87 = por %p85, %p86
      %p88 = scmp.ne.s32.totalorder %s80, %s82
      %p89 = scmp.eq.s32.totalorder %s25, 1
      %p90 = por %p88, %p89
      %p91 = scmp.ne.s32.totalorder %s82, %s83
      %p92 = scmp.eq.s32.totalorder %s25, 0
      %p93 = por %p91, %p92
      %p94 = scmp.ne.s32.totalorder %s82, %s83
      %p95 = scmp.eq.s32.totalorder %s26, 1
      %p96 = por %p94, %p95
      %p98 = scmp.ne.s32.totalorder %s83, %s97
      %p99 = scmp.eq.s32.totalorder %s26, 0
      %p100 = por %p98, %p99
      %s102 = sadd.s32 %s101, 1
      %p105 = scmp.eq.s32.totalorder %s20, 1
      %p106 = scmp.ne.s32.totalorder %s101, %s103
      %p107 = scmp.eq.s32.totalorder %s20, 0
      %p108 = por %p106, %p107
      %p109 = scmp.ne.s32.totalorder %s101, %s103
      %p110 = scmp.eq.s32.totalorder %s25, 1
      %p111 = por %p109, %p110
      %p112 = scmp.ne.s32.totalorder %s103, %s104
      %p113 = scmp.eq.s32.totalorder %s25, 0
      %p114 = por %p112, %p113
      %p115 = scmp.ne.s32.totalorder %s103, %s104
      %p116 = scmp.eq.s32.totalorder %s26, 1
      %p117 = por %p115, %p116
      %p119 = scmp.ne.s32.totalorder %s104, %s118
      %p120 = scmp.eq.s32.totalorder %s26, 0
      %p121 = por %p119, %p120
      %s123 = sadd.s32 %s122, 1
      %p126 = scmp.eq.s32.totalorder %s20, 1
      %p127 = scmp.ne.s32.totalorder %s122, %s124
      %p128 = scmp.eq.s32.totalorder %s20, 0
      %p129 = por %p127, %p128
      %p130 = scmp.ne.s32.totalorder %s122, %s124
      %p131 = scmp.eq.s32.totalorder %s25, 1
      %p132 = por %p130, %p131
      %p133 = scmp.ne.s32.totalorder %s124, %s125
      %p134 = scmp.eq.s32.totalorder %s25, 0
      %p135 = por %p133, %p134
      %p136 = scmp.ne.s32.totalorder %s124, %s125
      %p137 = scmp.eq.s32.totalorder %s26, 1
      %p138 = por %p136, %p137
      %p140 = scmp.ne.s32.totalorder %s125, %s139
      %p141 = scmp.eq.s32.totalorder %s26, 0
      %p142 = por %p140, %p141
      %s144 = sadd.s32 %s143, 1
      %p147 = scmp.eq.s32.totalorder %s20, 1
      %p148 = scmp.ne.s32.totalorder %s143, %s145
      %p149 = scmp.eq.s32.totalorder %s20, 0
      %p150 = por %p148, %p149
      %p151 = scmp.ne.s32.totalorder %s143, %s145
      %p152 = scmp.eq.s32.totalorder %s25, 1
      %p153 = por %p151, %p152
      %p154 = scmp.ne.s32.totalorder %s145, %s146
      %p155 = scmp.eq.s32.totalorder %s25, 0
      %p156 = por %p154, %p155
      %p157 = scmp.ne.s32.totalorder %s145, %s146
      %p158 = scmp.eq.s32.totalorder %s26, 1
      %p159 = por %p157, %p158
      %p161 = scmp.ne.s32.totalorder %s146, %s160
      %p162 = scmp.eq.s32.totalorder %s26, 0
      %p163 = por %p161, %p162
      %s165 = sadd.s32 %s164, 1
      %p168 = scmp.eq.s32.totalorder %s20, 1
      %p169 = scmp.ne.s32.totalorder %s164, %s166
      %p170 = scmp.eq.s32.totalorder %s20, 0
      %p171 = por %p169, %p170
      %p172 = scmp.ne.s32.totalorder %s164, %s166
      %p173 = scmp.eq.s32.totalorder %s25, 1
      %p174 = por %p172, %p173
      %p175 = scmp.ne.s32.totalorder %s166, %s167
      %p176 = scmp.eq.s32.totalorder %s25, 0
      %p177 = por %p175, %p176
      %p178 = scmp.ne.s32.totalorder %s166, %s167
      %p179 = scmp.eq.s32.totalorder %s26, 1
      %p180 = por %p178, %p179
      %p182 = scmp.ne.s32.totalorder %s167, %s181
      %p183 = scmp.eq.s32.totalorder %s26, 0
      %p184 = por %p182, %p183
      %s186 = sadd.s32 %s185, 1
      %p189 = scmp.eq.s32.totalorder %s20, 1
      %p190 = scmp.ne.s32.totalorder %s185, %s187
      %p191 = scmp.eq.s32.totalorder %s20, 0
      %p192 = por %p190, %p191
      %p193 = scmp.ne.s32.totalorder %s185, %s187
      %p194 = scmp.eq.s32.totalorder %s25, 1
      %p195 = por %p193, %p194
      %p196 = scmp.ne.s32.totalorder %s187, %s188
      %p197 = scmp.eq.s32.totalorder %s25, 0
      %p198 = por %p196, %p197
      %p199 = scmp.ne.s32.totalorder %s187, %s188
      %p200 = scmp.eq.s32.totalorder %s26, 1
      %p201 = por %p199, %p200
      %p203 = scmp.ne.s32.totalorder %s188, %s202
      %p204 = scmp.eq.s32.totalorder %s26, 0
      %p205 = por %p203, %p204
      %s207 = sadd.s32 %s206, 1
      %p210 = scmp.eq.s32.totalorder %s20, 1
      %p211 = scmp.ne.s32.totalorder %s206, %s208
      %p212 = scmp.eq.s32.totalorder %s20, 0
      %p213 = por %p211, %p212
      %p214 = scmp.ne.s32.totalorder %s206, %s208
      %p215 = scmp.eq.s32.totalorder %s25, 1
      %p216 = por %p214, %p215
      %p217 = scmp.ne.s32.totalorder %s208, %s209
      %p218 = scmp.eq.s32.totalorder %s25, 0
      %p219 = por %p217, %p218
      %p220 = scmp.ne.s32.totalorder %s208, %s209
      %p221 = scmp.eq.s32.totalorder %s26, 1
      %p222 = por %p220, %p221
      %p224 = scmp.ne.s32.totalorder %s209, %s223
      %p225 = scmp.eq.s32.totalorder %s26, 0
      %p226 = por %p224, %p225
      %s228 = sadd.s32 %s227, 1
      %p231 = scmp.eq.s32.totalorder %s20, 1
      %p232 = scmp.ne.s32.totalorder %s227, %s229
      %p233 = scmp.eq.s32.totalorder %s20, 0
      %p234 = por %p232, %p233
      %p235 = scmp.ne.s32.totalorder %s227, %s229
      %p236 = scmp.eq.s32.totalorder %s25, 1
      %p237 = por %p235, %p236
      %p238 = scmp.ne.s32.totalorder %s229, %s230
      %p239 = scmp.eq.s32.totalorder %s25, 0
      %p240 = por %p238, %p239
      %p241 = scmp.ne.s32.totalorder %s229, %s230
      %p242 = scmp.eq.s32.totalorder %s26, 1
      %p243 = por %p241, %p242
      %p245 = scmp.ne.s32.totalorder %s230, %s244
      %p246 = scmp.eq.s32.totalorder %s26, 0
      %p247 = por %p245, %p246
      %s249 = sadd.s32 %s248, 1
      %p252 = scmp.eq.s32.totalorder %s20, 1
      %p253 = scmp.ne.s32.totalorder %s248, %s250
      %p254 = scmp.eq.s32.totalorder %s20, 0
      %p255 = por %p253, %p254
      %p256 = scmp.ne.s32.totalorder %s248, %s250
      %p257 = scmp.eq.s32.totalorder %s25, 1
      %p258 = por %p256, %p257
      %p259 = scmp.ne.s32.totalorder %s250, %s251
      %p260 = scmp.eq.s32.totalorder %s25, 0
      %p261 = por %p259, %p260
      %p262 = scmp.ne.s32.totalorder %s250, %s251
      %p263 = scmp.eq.s32.totalorder %s26, 1
      %p264 = por %p262, %p263
      %p266 = scmp.ne.s32.totalorder %s251, %s265
      %p267 = scmp.eq.s32.totalorder %s26, 0
      %p268 = por %p266, %p267
      %s269 = ssub.s32 %s20, %s27
      %p270 = scmp.eq.s32.totalorder %s269, 0
      %s272 = sadd.s32 %s271, 1
      %s273 = scalar_select %p270, %s271, %s272
      %p276 = pneg %p270
      %p277 = scmp.eq.s32.totalorder %s20, 1
      %p278 = por %p276, %p277
      %p279 = scmp.ne.s32.totalorder %s271, %s274
      %p280 = scmp.eq.s32.totalorder %s20, 0
      %p281 = por %p279, %p280
      %p282 = scmp.ne.s32.totalorder %s271, %s274
      %p283 = scmp.eq.s32.totalorder %s25, 1
      %p284 = por %p282, %p283
      %p285 = scmp.ne.s32.totalorder %s274, %s275
      %p286 = scmp.eq.s32.totalorder %s25, 0
      %p287 = por %p285, %p286
      %p288 = scmp.ne.s32.totalorder %s274, %s275
      %p289 = scmp.eq.s32.totalorder %s26, 1
      %p290 = por %p288, %p289
      %p292 = scmp.ne.s32.totalorder %s275, %s291
      %p293 = scmp.eq.s32.totalorder %s26, 0
      %p294 = por %p292, %p293
      %p295 = scmp.le.s32.totalorder 1, %s20
      %p296 = scmp.lt.s32.totalorder %s20, 3
      %p297 = pnand %p295, %p296
      %p298 = pneg %p297
      // Predicated region
      $region9: #{tpu_custom_call.1} parent=5 // pred_check
        _
      $region10: #{tpu_custom_call.1} parent=5 // pred_check_branch
        %300 = sbr.rel (%p297) target = $region12
      $region11: #{tpu_custom_call.1} parent=5 // pred_region
        %s301 = ssub.s32 %s20, 1
        // Predicated region
        $region13: #{tpu_custom_call.1} parent=11 // pred_check
          %p302 = pneg %p93
        $region14: #{tpu_custom_call.1} parent=11 // pred_check_branch
          %304 = sbr.rel (%p302) target = $region16
        $region15: #{tpu_custom_call.1} parent=11 // pred_region
          _
        $region16: #{tpu_custom_call.1} parent=11 // pred_fallthru
          _
        // Predicated region
        $region17: #{tpu_custom_call.1} parent=11 // pred_check
          %p305 = pneg %p114
        $region18: #{tpu_custom_call.1} parent=11 // pred_check_branch
          %307 = sbr.rel (%p305) target = $region20
        $region19: #{tpu_custom_call.1} parent=11 // pred_region
          _
        $region20: #{tpu_custom_call.1} parent=11 // pred_fallthru
          _
        // Predicated region
        $region21: #{tpu_custom_call.1} parent=11 // pred_check
          %p308 = pneg %p135
        $region22: #{tpu_custom_call.1} parent=11 // pred_check_branch
          %310 = sbr.rel (%p308) target = $region24
        $region23: #{tpu_custom_call.1} parent=11 // pred_region
          _
        $region24: #{tpu_custom_call.1} parent=11 // pred_fallthru
          _
        // Predicated region
        $region25: #{tpu_custom_call.1} parent=11 // pred_check
          %p311 = pneg %p156
        $region26: #{tpu_custom_call.1} parent=11 // pred_check_branch
          %313 = sbr.rel (%p311) target = $region28
        $region27: #{tpu_custom_call.1} parent=11 // pred_region
          _
        $region28: #{tpu_custom_call.1} parent=11 // pred_fallthru
          _
        // Predicated region
        $region29: #{tpu_custom_call.1} parent=11 // pred_check
          %p314 = pneg %p177
        $region30: #{tpu_custom_call.1} parent=11 // pred_check_branch
          %316 = sbr.rel (%p314) target = $region32
        $region31: #{tpu_custom_call.1} parent=11 // pred_region
          _
        $region32: #{tpu_custom_call.1} parent=11 // pred_fallthru
          _
        // Predicated region
        $region33: #{tpu_custom_call.1} parent=11 // pred_check
          %p317 = pneg %p198
        $region34: #{tpu_custom_call.1} parent=11 // pred_check_branch
          %319 = sbr.rel (%p317) target = $region36
        $region35: #{tpu_custom_call.1} parent=11 // pred_region
          _
        $region36: #{tpu_custom_call.1} parent=11 // pred_fallthru
          _
        // Predicated region
        $region37: #{tpu_custom_call.1} parent=11 // pred_check
          %p320 = pneg %p219
        $region38: #{tpu_custom_call.1} parent=11 // pred_check_branch
          %322 = sbr.rel (%p320) target = $region40
        $region39: #{tpu_custom_call.1} parent=11 // pred_region
          _
        $region40: #{tpu_custom_call.1} parent=11 // pred_fallthru
          _
        // Predicated region
        $region41: #{tpu_custom_call.1} parent=11 // pred_check
          %p323 = pneg %p240
        $region42: #{tpu_custom_call.1} parent=11 // pred_check_branch
          %325 = sbr.rel (%p323) target = $region44
        $region43: #{tpu_custom_call.1} parent=11 // pred_region
          _
        $region44: #{tpu_custom_call.1} parent=11 // pred_fallthru
          _
        // Predicated region
        $region45: #{tpu_custom_call.1} parent=11 // pred_check
          %p326 = pneg %p261
        $region46: #{tpu_custom_call.1} parent=11 // pred_check_branch
          %328 = sbr.rel (%p326) target = $region48
        $region47: #{tpu_custom_call.1} parent=11 // pred_region
          _
        $region48: #{tpu_custom_call.1} parent=11 // pred_fallthru
          _
      $region12: #{tpu_custom_call.1} parent=5 // pred_fallthru
        _
      %p329 = scmp.lt.s32.totalorder %s20, 2
      // Predicated region
      $region49: #{tpu_custom_call.1} parent=5 // pred_check
        %p330 = pneg %p329
      $region50: #{tpu_custom_call.1} parent=5 // pred_check_branch
        %332 = sbr.rel (%p330) target = $region52
      $region51: #{tpu_custom_call.1} parent=5 // pred_region
        // Predicated region
        $region53: #{tpu_custom_call.1} parent=51 // pred_check
          %p333 = pneg %p40
        $region54: #{tpu_custom_call.1} parent=51 // pred_check_branch
          %335 = sbr.rel (%p333) target = $region56
        $region55: #{tpu_custom_call.1} parent=51 // pred_region
          %p336 = scmp.lt.s32.totalorder %s20, 1
          %s337 = scalar_select %p336, %s20, 1
          %s338 = smul.addr %s337, 8
          %s339 = smul.addr %s338, 8
          %s340 = scalar_lea.vmem %s0, %s339
        $region56: #{tpu_custom_call.1} parent=51 // pred_fallthru
          _
        // Predicated region
        $region57: #{tpu_custom_call.1} parent=51 // pred_check
          %p341 = pneg %p66
        $region58: #{tpu_custom_call.1} parent=51 // pred_check_branch
          %343 = sbr.rel (%p341) target = $region60
        $region59: #{tpu_custom_call.1} parent=51 // pred_region
          %p344 = scmp.lt.s32.totalorder %s20, 1
          %s345 = scalar_select %p344, %s20, 1
          %s346 = smul.addr %s345, 16
          %s347 = smul.addr %s346, 8
          %s348 = scalar_lea.vmem %s1, %s347
        $region60: #{tpu_custom_call.1} parent=51 // pred_fallthru
          _
      $region52: #{tpu_custom_call.1} parent=5 // pred_fallthru
        _
      %p349 = scmp.le.s32.totalorder 1, %s20
      %p350 = scmp.lt.s32.totalorder %s20, 3
      %p351 = pnand %p349, %p350
      %p352 = pneg %p351
      // Predicated region
      $region61: #{tpu_custom_call.1} parent=5 // pred_check
        _
      $region62: #{tpu_custom_call.1} parent=5 // pred_check_branch
        %354 = sbr.rel (%p351) target = $region64
      $region63: #{tpu_custom_call.1} parent=5 // pred_region
        %s355 = ssub.s32 %s20, 1
        %p356 = scmp.lt.s32.totalorder %s25, 1
        %s357 = scalar_select %p356, %s25, 1
        %s358 = smul.addr %s357, 8
        %s359 = smul.addr %s358, 8
        %s360 = scalar_lea.vmem %s0, %s359
        %p361 = pneg %p46
        %p362 = pneg %p43
        %p363 = scmp.lt.s32.totalorder %s25, 1
        %s364 = scalar_select %p363, %s25, 1
        %s365 = smul.addr %s364, 16
        %s366 = smul.addr %s365, 8
        %s367 = scalar_lea.vmem %s1, %s366
        %p368 = pneg %p72
        %p369 = pneg %p69
        %p370 = pneg %p93
        %p371 = pneg %p90
        %p372 = pneg %p114
        %p373 = pneg %p111
        %p374 = pneg %p135
        %p375 = pneg %p132
        %p376 = pneg %p156
        %p377 = pneg %p153
        %p378 = pneg %p177
        %p379 = pneg %p174
        %p380 = pneg %p198
        %p381 = pneg %p195
        %p382 = pneg %p219
        %p383 = pneg %p216
        %p384 = pneg %p240
        %p385 = pneg %p237
        %p386 = pneg %p261
        %p387 = pneg %p258
        %p388 = pneg %p287
        %p389 = pneg %p284
        %s390 = sand.u32 %s274, 1
        %s391 = scalar_lea.sflag [#allocation4], %s390
        %s392 = sand.u32 %s274, 1
        %s393 = smul.addr %s392, 8
        %s394 = scalar_lea.vmem [#allocation3], %s393
        %p395 = scmp.lt.s32.totalorder %s25, 1
        %s396 = scalar_select %p395, %s25, 1
        %s397 = smul.addr %s396, 8
        %s398 = smul.addr %s397, 8
        %s399 = scalar_lea.vmem %s0, %s398
        %p400 = scmp.lt.s32.totalorder %s25, 1
        %s401 = scalar_select %p400, %s25, 1
        %s402 = smul.addr %s401, 16
        %s403 = smul.addr %s402, 8
        %s404 = scalar_lea.vmem %s1, %s403
        %v405 = vld [vmem:[%s399] sm:$0xff]
        %v406 = vld [vmem:[%s399 + $0x8] sm:$0xff]
        %v407 = vld [vmem:[%s399 + $0x10] sm:$0xff]
        %v408 = vld [vmem:[%s399 + $0x18] sm:$0xff]
        %v409 = vld [vmem:[%s399 + $0x20] sm:$0xff]
        %v410 = vld [vmem:[%s399 + $0x28] sm:$0xff]
        %v411 = vld [vmem:[%s399 + $0x30] sm:$0xff]
        %v412 = vld [vmem:[%s399 + $0x38] sm:$0xff]
        %v413 = vld [vmem:[%s2] sm:$0xff]
        %v414 = vld [vmem:[%s2 + $0x8] sm:$0xff]
        %v415 = vld [vmem:[%s2 + $0x10] sm:$0xff]
        %v416 = vld [vmem:[%s2 + $0x18] sm:$0xff]
        %v417 = vld [vmem:[%s2 + $0x20] sm:$0xff]
        %v418 = vld [vmem:[%s2 + $0x28] sm:$0xff]
        %v419 = vld [vmem:[%s2 + $0x30] sm:$0xff]
        %v420 = vld [vmem:[%s2 + $0x38] sm:$0xff]
        %v421 = vld [vmem:[%s3] sm:$0xff]
        %v422 = vld [vmem:[%s3 + $0x8] sm:$0xff]
        %v423 = vld [vmem:[%s3 + $0x10] sm:$0xff]
        %v424 = vld [vmem:[%s3 + $0x18] sm:$0xff]
        %v425 = vld [vmem:[%s3 + $0x20] sm:$0xff]
        %v426 = vld [vmem:[%s3 + $0x28] sm:$0xff]
        %v427 = vld [vmem:[%s3 + $0x30] sm:$0xff]
        %v428 = vld [vmem:[%s3 + $0x38] sm:$0xff]
        %430 = vset.pattern.permute.xlu0 0
        %431 = vperm.xlu0 %430, %v421
        %v432 = vpop.permute.xlu0 %431
        %435 = vset.pattern.permute.xlu0 0
        %436 = vperm.xlu0 %435, %v422
        %v437 = vpop.permute.xlu0 %436
        %440 = vset.pattern.permute.xlu0 0
        %441 = vperm.xlu0 %440, %v423
        %v442 = vpop.permute.xlu0 %441
        %445 = vset.pattern.permute.xlu0 0
        %446 = vperm.xlu0 %445, %v424
        %v447 = vpop.permute.xlu0 %446
        %450 = vset.pattern.permute.xlu0 0
        %451 = vperm.xlu0 %450, %v425
        %v452 = vpop.permute.xlu0 %451
        %455 = vset.pattern.permute.xlu0 0
        %456 = vperm.xlu0 %455, %v426
        %v457 = vpop.permute.xlu0 %456
        %460 = vset.pattern.permute.xlu0 0
        %461 = vperm.xlu0 %460, %v427
        %v462 = vpop.permute.xlu0 %461
        %465 = vset.pattern.permute.xlu0 0
        %466 = vperm.xlu0 %465, %v428
        %v467 = vpop.permute.xlu0 %466
        %vm469 = vcmask 523264
        %v471 = vsel %vm469, %v413, 0
        %v474 = vsel %vm469, %v414, 0
        %v477 = vsel %vm469, %v415, 0
        %v480 = vsel %vm469, %v416, 0
        %v483 = vsel %vm469, %v417, 0
        %v486 = vsel %vm469, %v418, 0
        %v489 = vsel %vm469, %v419, 0
        %v492 = vsel %vm469, %v420, 0
        %494 = vmatpush.msra.mxu0 0.0
        %495 = vmatpush.msra.mxu0 0.0
        %496 = vmatpush.msra.mxu0 0.0
        %497 = vmatpush.msra.mxu0 0.0
        %498 = vmatpush.msra.mxu0 0.0
        %499 = vmatpush.msra.mxu0 0.0
        %500 = vmatpush.msra.mxu0 0.0
        %501 = vmatpush.msra.mxu0 0.0
        %502 = vmatpush.msra.mxu0 %v412
        %503 = vmatpush.msra.mxu0 %v411
        %504 = vmatpush.msra.mxu0 %v410
        %505 = vmatpush.msra.mxu0 %v409
        %506 = vmatpush.msra.mxu0 %v408
        %507 = vmatpush.msra.mxu0 %v407
        %508 = vmatpush.msra.mxu0 %v406
        %509 = vmatpush.msra.mxu0 %v405
        %510 = vmatmul.f32.gmra.mxu0 %v471
        %v511 = vpop.f32.mrf.mxu0
        %v512 = vadd.f32 %v432, %v511
        %513 = vmatmul.f32.gmra.mxu0 %v474
        %v514 = vpop.f32.mrf.mxu0
        %v515 = vadd.f32 %v437, %v514
        %516 = vmatmul.f32.gmra.mxu0 %v477
        %v517 = vpop.f32.mrf.mxu0
        %v518 = vadd.f32 %v442, %v517
        %519 = vmatmul.f32.gmra.mxu0 %v480
        %v520 = vpop.f32.mrf.mxu0
        %v521 = vadd.f32 %v447, %v520
        %522 = vmatmul.f32.gmra.mxu0 %v483
        %v523 = vpop.f32.mrf.mxu0
        %v524 = vadd.f32 %v452, %v523
        %525 = vmatmul.f32.gmra.mxu0 %v486
        %v526 = vpop.f32.mrf.mxu0
        %v527 = vadd.f32 %v457, %v526
        %528 = vmatmul.f32.gmra.mxu0 %v489
        %v529 = vpop.f32.mrf.mxu0
        %v530 = vadd.f32 %v462, %v529
        %531 = vmatmul.f32.gmra.mxu0 %v492
        %v532 = vpop.f32.mrf.mxu0
        %v533 = vadd.f32 %v467, %v532
        %534 = vdwg.mxu0
        %s535 = scalar_lea.vmem %s2, 64
        %v536 = vld [vmem:[%s535] sm:$0xff]
        %v537 = vld [vmem:[%s535 + $0x8] sm:$0xff]
        %v538 = vld [vmem:[%s535 + $0x10] sm:$0xff]
        %v539 = vld [vmem:[%s535 + $0x18] sm:$0xff]
        %v540 = vld [vmem:[%s535 + $0x20] sm:$0xff]
        %v541 = vld [vmem:[%s535 + $0x28] sm:$0xff]
        %v542 = vld [vmem:[%s535 + $0x30] sm:$0xff]
        %v543 = vld [vmem:[%s535 + $0x38] sm:$0xff]
        %s544 = scalar_lea.vmem %s3, 64
        %v545 = vld [vmem:[%s544] sm:$0xff]
        %v546 = vld [vmem:[%s544 + $0x8] sm:$0xff]
        %v547 = vld [vmem:[%s544 + $0x10] sm:$0xff]
        %v548 = vld [vmem:[%s544 + $0x18] sm:$0xff]
        %v549 = vld [vmem:[%s544 + $0x20] sm:$0xff]
        %v550 = vld [vmem:[%s544 + $0x28] sm:$0xff]
        %v551 = vld [vmem:[%s544 + $0x30] sm:$0xff]
        %v552 = vld [vmem:[%s544 + $0x38] sm:$0xff]
        %554 = vset.pattern.permute.xlu0 0
        %555 = vperm.xlu0 %554, %v545
        %v556 = vpop.permute.xlu0 %555
        %559 = vset.pattern.permute.xlu0 0
        %560 = vperm.xlu0 %559, %v546
        %v561 = vpop.permute.xlu0 %560
        %564 = vset.pattern.permute.xlu0 0
        %565 = vperm.xlu0 %564, %v547
        %v566 = vpop.permute.xlu0 %565
        %569 = vset.pattern.permute.xlu0 0
        %570 = vperm.xlu0 %569, %v548
        %v571 = vpop.permute.xlu0 %570
        %574 = vset.pattern.permute.xlu0 0
        %575 = vperm.xlu0 %574, %v549
        %v576 = vpop.permute.xlu0 %575
        %579 = vset.pattern.permute.xlu0 0
        %580 = vperm.xlu0 %579, %v550
        %v581 = vpop.permute.xlu0 %580
        %584 = vset.pattern.permute.xlu0 0
        %585 = vperm.xlu0 %584, %v551
        %v586 = vpop.permute.xlu0 %585
        %589 = vset.pattern.permute.xlu0 0
        %590 = vperm.xlu0 %589, %v552
        %v591 = vpop.permute.xlu0 %590
        %v594 = vsel %vm469, %v536, 0
        %v597 = vsel %vm469, %v537, 0
        %v600 = vsel %vm469, %v538, 0
        %v603 = vsel %vm469, %v539, 0
        %v606 = vsel %vm469, %v540, 0
        %v609 = vsel %vm469, %v541, 0
        %v612 = vsel %vm469, %v542, 0
        %v615 = vsel %vm469, %v543, 0
        %617 = vmatpush.msra.mxu0 0.0
        %618 = vmatpush.msra.mxu0 0.0
        %619 = vmatpush.msra.mxu0 0.0
        %620 = vmatpush.msra.mxu0 0.0
        %621 = vmatpush.msra.mxu0 0.0
        %622 = vmatpush.msra.mxu0 0.0
        %623 = vmatpush.msra.mxu0 0.0
        %624 = vmatpush.msra.mxu0 0.0
        %625 = vmatpush.msra.mxu0 %v412
        %626 = vmatpush.msra.mxu0 %v411
        %627 = vmatpush.msra.mxu0 %v410
        %628 = vmatpush.msra.mxu0 %v409
        %629 = vmatpush.msra.mxu0 %v408
        %630 = vmatpush.msra.mxu0 %v407
        %631 = vmatpush.msra.mxu0 %v406
        %632 = vmatpush.msra.mxu0 %v405
        %633 = vmatmul.f32.gmra.mxu0 %v594
        %v634 = vpop.f32.mrf.mxu0
        %v635 = vadd.f32 %v556, %v634
        %636 = vmatmul.f32.gmra.mxu0 %v597
        %v637 = vpop.f32.mrf.mxu0
        %v638 = vadd.f32 %v561, %v637
        %639 = vmatmul.f32.gmra.mxu0 %v600
        %v640 = vpop.f32.mrf.mxu0
        %v641 = vadd.f32 %v566, %v640
        %642 = vmatmul.f32.gmra.mxu0 %v603
        %v643 = vpop.f32.mrf.mxu0
        %v644 = vadd.f32 %v571, %v643
        %645 = vmatmul.f32.gmra.mxu0 %v606
        %v646 = vpop.f32.mrf.mxu0
        %v647 = vadd.f32 %v576, %v646
        %648 = vmatmul.f32.gmra.mxu0 %v609
        %v649 = vpop.f32.mrf.mxu0
        %v650 = vadd.f32 %v581, %v649
        %651 = vmatmul.f32.gmra.mxu0 %v612
        %v652 = vpop.f32.mrf.mxu0
        %v653 = vadd.f32 %v586, %v652
        %654 = vmatmul.f32.gmra.mxu0 %v615
        %v655 = vpop.f32.mrf.mxu0
        %v656 = vadd.f32 %v591, %v655
        %657 = vdwg.mxu0
        %s658 = scalar_lea.vmem %s2, 128
        %v659 = vld [vmem:[%s658] sm:$0xff]
        %v660 = vld [vmem:[%s658 + $0x8] sm:$0xff]
        %v661 = vld [vmem:[%s658 + $0x10] sm:$0xff]
        %v662 = vld [vmem:[%s658 + $0x18] sm:$0xff]
        %v663 = vld [vmem:[%s658 + $0x20] sm:$0xff]
        %v664 = vld [vmem:[%s658 + $0x28] sm:$0xff]
        %v665 = vld [vmem:[%s658 + $0x30] sm:$0xff]
        %v666 = vld [vmem:[%s658 + $0x38] sm:$0xff]
        %s667 = scalar_lea.vmem %s3, 128
        %v668 = vld [vmem:[%s667] sm:$0xff]
        %v669 = vld [vmem:[%s667 + $0x8] sm:$0xff]
        %v670 = vld [vmem:[%s667 + $0x10] sm:$0xff]
        %v671 = vld [vmem:[%s667 + $0x18] sm:$0xff]
        %v672 = vld [vmem:[%s667 + $0x20] sm:$0xff]
        %v673 = vld [vmem:[%s667 + $0x28] sm:$0xff]
        %v674 = vld [vmem:[%s667 + $0x30] sm:$0xff]
        %v675 = vld [vmem:[%s667 + $0x38] sm:$0xff]
        %677 = vset.pattern.permute.xlu0 0
        %678 = vperm.xlu0 %677, %v668
        %v679 = vpop.permute.xlu0 %678
        %682 = vset.pattern.permute.xlu0 0
        %683 = vperm.xlu0 %682, %v669
        %v684 = vpop.permute.xlu0 %683
        %687 = vset.pattern.permute.xlu0 0
        %688 = vperm.xlu0 %687, %v670
        %v689 = vpop.permute.xlu0 %688
        %692 = vset.pattern.permute.xlu0 0
        %693 = vperm.xlu0 %692, %v671
        %v694 = vpop.permute.xlu0 %693
        %697 = vset.pattern.permute.xlu0 0
        %698 = vperm.xlu0 %697, %v672
        %v699 = vpop.permute.xlu0 %698
        %702 = vset.pattern.permute.xlu0 0
        %703 = vperm.xlu0 %702, %v673
        %v704 = vpop.permute.xlu0 %703
        %707 = vset.pattern.permute.xlu0 0
        %708 = vperm.xlu0 %707, %v674
        %v709 = vpop.permute.xlu0 %708
        %712 = vset.pattern.permute.xlu0 0
        %713 = vperm.xlu0 %712, %v675
        %v714 = vpop.permute.xlu0 %713
        %v717 = vsel %vm469, %v659, 0
        %v720 = vsel %vm469, %v660, 0
        %v723 = vsel %vm469, %v661, 0
        %v726 = vsel %vm469, %v662, 0
        %v729 = vsel %vm469, %v663, 0
        %v732 = vsel %vm469, %v664, 0
        %v735 = vsel %vm469, %v665, 0
        %v738 = vsel %vm469, %v666, 0
        %740 = vmatpush.msra.mxu0 0.0
        %741 = vmatpush.msra.mxu0 0.0
        %742 = vmatpush.msra.mxu0 0.0
        %743 = vmatpush.msra.mxu0 0.0
        %744 = vmatpush.msra.mxu0 0.0
        %745 = vmatpush.msra.mxu0 0.0
        %746 = vmatpush.msra.mxu0 0.0
        %747 = vmatpush.msra.mxu0 0.0
        %748 = vmatpush.msra.mxu0 %v412
        %749 = vmatpush.msra.mxu0 %v411
        %750 = vmatpush.msra.mxu0 %v410
        %751 = vmatpush.msra.mxu0 %v409
        %752 = vmatpush.msra.mxu0 %v408
        %753 = vmatpush.msra.mxu0 %v407
        %754 = vmatpush.msra.mxu0 %v406
        %755 = vmatpush.msra.mxu0 %v405
        %756 = vmatmul.f32.gmra.mxu0 %v717
        %v757 = vpop.f32.mrf.mxu0
        %v758 = vadd.f32 %v679, %v757
        %759 = vmatmul.f32.gmra.mxu0 %v720
        %v760 = vpop.f32.mrf.mxu0
        %v761 = vadd.f32 %v684, %v760
        %762 = vmatmul.f32.gmra.mxu0 %v723
        %v763 = vpop.f32.mrf.mxu0
        %v764 = vadd.f32 %v689, %v763
        %765 = vmatmul.f32.gmra.mxu0 %v726
        %v766 = vpop.f32.mrf.mxu0
        %v767 = vadd.f32 %v694, %v766
        %768 = vmatmul.f32.gmra.mxu0 %v729
        %v769 = vpop.f32.mrf.mxu0
        %v770 = vadd.f32 %v699, %v769
        %771 = vmatmul.f32.gmra.mxu0 %v732
        %v772 = vpop.f32.mrf.mxu0
        %v773 = vadd.f32 %v704, %v772
        %774 = vmatmul.f32.gmra.mxu0 %v735
        %v775 = vpop.f32.mrf.mxu0
        %v776 = vadd.f32 %v709, %v775
        %777 = vmatmul.f32.gmra.mxu0 %v738
        %v778 = vpop.f32.mrf.mxu0
        %v779 = vadd.f32 %v714, %v778
        %780 = vdwg.mxu0
        %vm781 = vcmask 130048
        %v783 = vsel %vm781, %v512, 0
        %v786 = vsel %vm781, %v635, 0
        %788 = vmatpush.xpose.msra.mxu0 0.0
        %789 = vmatpush.xpose.msra.mxu0 0.0
        %790 = vmatpush.xpose.msra.mxu0 0.0
        %791 = vmatpush.xpose.msra.mxu0 0.0
        %792 = vmatpush.xpose.msra.mxu0 0.0
        %793 = vmatpush.xpose.msra.mxu0 0.0
        %794 = vmatpush.xpose.msra.mxu0 0.0
        %795 = vmatpush.xpose.msra.mxu0 0.0
        %796 = vmatpush.xpose.msra.mxu0 0.0
        %797 = vmatpush.xpose.msra.mxu0 0.0
        %798 = vmatpush.xpose.msra.mxu0 0.0
        %799 = vmatpush.xpose.msra.mxu0 0.0
        %800 = vmatpush.xpose.msra.mxu0 0.0
        %801 = vmatpush.xpose.msra.mxu0 0.0
        %802 = vmatpush.xpose.msra.mxu0 0.0
        %803 = vmatpush.xpose.msra.mxu0 %v786
        %804 = vmatmul.f32.gmra.mxu0 %v783
        %v805 = vpop.f32.mrf.mxu0
        %v806 = vadd.f32 0.0, %v805
        %807 = vdwg.mxu0
        %v809 = vsel %vm781, %v515, 0
        %v812 = vsel %vm781, %v638, 0
        %814 = vmatpush.xpose.msra.mxu0 0.0
        %815 = vmatpush.xpose.msra.mxu0 0.0
        %816 = vmatpush.xpose.msra.mxu0 0.0
        %817 = vmatpush.xpose.msra.mxu0 0.0
        %818 = vmatpush.xpose.msra.mxu0 0.0
        %819 = vmatpush.xpose.msra.mxu0 0.0
        %820 = vmatpush.xpose.msra.mxu0 0.0
        %821 = vmatpush.xpose.msra.mxu0 0.0
        %822 = vmatpush.xpose.msra.mxu0 0.0
        %823 = vmatpush.xpose.msra.mxu0 0.0
        %824 = vmatpush.xpose.msra.mxu0 0.0
        %825 = vmatpush.xpose.msra.mxu0 0.0
        %826 = vmatpush.xpose.msra.mxu0 0.0
        %827 = vmatpush.xpose.msra.mxu0 0.0
        %828 = vmatpush.xpose.msra.mxu0 0.0
        %829 = vmatpush.xpose.msra.mxu0 %v812
        %830 = vmatmul.f32.gmra.mxu0 %v809
        %v831 = vpop.f32.mrf.mxu0
        %v832 = vadd.f32 0.0, %v831
        %833 = vdwg.mxu0
        %v835 = vsel %vm781, %v518, 0
        %v838 = vsel %vm781, %v641, 0
        %840 = vmatpush.xpose.msra.mxu0 0.0
        %841 = vmatpush.xpose.msra.mxu0 0.0
        %842 = vmatpush.xpose.msra.mxu0 0.0
        %843 = vmatpush.xpose.msra.mxu0 0.0
        %844 = vmatpush.xpose.msra.mxu0 0.0
        %845 = vmatpush.xpose.msra.mxu0 0.0
        %846 = vmatpush.xpose.msra.mxu0 0.0
        %847 = vmatpush.xpose.msra.mxu0 0.0
        %848 = vmatpush.xpose.msra.mxu0 0.0
        %849 = vmatpush.xpose.msra.mxu0 0.0
        %850 = vmatpush.xpose.msra.mxu0 0.0
        %851 = vmatpush.xpose.msra.mxu0 0.0
        %852 = vmatpush.xpose.msra.mxu0 0.0
        %853 = vmatpush.xpose.msra.mxu0 0.0
        %854 = vmatpush.xpose.msra.mxu0 0.0
        %855 = vmatpush.xpose.msra.mxu0 %v838
        %856 = vmatmul.f32.gmra.mxu0 %v835
        %v857 = vpop.f32.mrf.mxu0
        %v858 = vadd.f32 0.0, %v857
        %859 = vdwg.mxu0
        %v861 = vsel %vm781, %v521, 0
        %v864 = vsel %vm781, %v644, 0
        %866 = vmatpush.xpose.msra.mxu0 0.0
        %867 = vmatpush.xpose.msra.mxu0 0.0
        %868 = vmatpush.xpose.msra.mxu0 0.0
        %869 = vmatpush.xpose.msra.mxu0 0.0
        %870 = vmatpush.xpose.msra.mxu0 0.0
        %871 = vmatpush.xpose.msra.mxu0 0.0
        %872 = vmatpush.xpose.msra.mxu0 0.0
        %873 = vmatpush.xpose.msra.mxu0 0.0
        %874 = vmatpush.xpose.msra.mxu0 0.0
        %875 = vmatpush.xpose.msra.mxu0 0.0
        %876 = vmatpush.xpose.msra.mxu0 0.0
        %877 = vmatpush.xpose.msra.mxu0 0.0
        %878 = vmatpush.xpose.msra.mxu0 0.0
        %879 = vmatpush.xpose.msra.mxu0 0.0
        %880 = vmatpush.xpose.msra.mxu0 0.0
        %881 = vmatpush.xpose.msra.mxu0 %v864
        %882 = vmatmul.f32.gmra.mxu0 %v861
        %v883 = vpop.f32.mrf.mxu0
        %v884 = vadd.f32 0.0, %v883
        %885 = vdwg.mxu0
        %v887 = vsel %vm781, %v524, 0
        %v890 = vsel %vm781, %v647, 0
        %892 = vmatpush.xpose.msra.mxu0 0.0
        %893 = vmatpush.xpose.msra.mxu0 0.0
        %894 = vmatpush.xpose.msra.mxu0 0.0
        %895 = vmatpush.xpose.msra.mxu0 0.0
        %896 = vmatpush.xpose.msra.mxu0 0.0
        %897 = vmatpush.xpose.msra.mxu0 0.0
        %898 = vmatpush.xpose.msra.mxu0 0.0
        %899 = vmatpush.xpose.msra.mxu0 0.0
        %900 = vmatpush.xpose.msra.mxu0 0.0
        %901 = vmatpush.xpose.msra.mxu0 0.0
        %902 = vmatpush.xpose.msra.mxu0 0.0
        %903 = vmatpush.xpose.msra.mxu0 0.0
        %904 = vmatpush.xpose.msra.mxu0 0.0
        %905 = vmatpush.xpose.msra.mxu0 0.0
        %906 = vmatpush.xpose.msra.mxu0 0.0
        %907 = vmatpush.xpose.msra.mxu0 %v890
        %908 = vmatmul.f32.gmra.mxu0 %v887
        %v909 = vpop.f32.mrf.mxu0
        %v910 = vadd.f32 0.0, %v909
        %911 = vdwg.mxu0
        %v913 = vsel %vm781, %v527, 0
        %v916 = vsel %vm781, %v650, 0
        %918 = vmatpush.xpose.msra.mxu0 0.0
        %919 = vmatpush.xpose.msra.mxu0 0.0
        %920 = vmatpush.xpose.msra.mxu0 0.0
        %921 = vmatpush.xpose.msra.mxu0 0.0
        %922 = vmatpush.xpose.msra.mxu0 0.0
        %923 = vmatpush.xpose.msra.mxu0 0.0
        %924 = vmatpush.xpose.msra.mxu0 0.0
        %925 = vmatpush.xpose.msra.mxu0 0.0
        %926 = vmatpush.xpose.msra.mxu0 0.0
        %927 = vmatpush.xpose.msra.mxu0 0.0
        %928 = vmatpush.xpose.msra.mxu0 0.0
        %929 = vmatpush.xpose.msra.mxu0 0.0
        %930 = vmatpush.xpose.msra.mxu0 0.0
        %931 = vmatpush.xpose.msra.mxu0 0.0
        %932 = vmatpush.xpose.msra.mxu0 0.0
        %933 = vmatpush.xpose.msra.mxu0 %v916
        %934 = vmatmul.f32.gmra.mxu0 %v913
        %v935 = vpop.f32.mrf.mxu0
        %v936 = vadd.f32 0.0, %v935
        %937 = vdwg.mxu0
        %v939 = vsel %vm781, %v530, 0
        %v942 = vsel %vm781, %v653, 0
        %944 = vmatpush.xpose.msra.mxu0 0.0
        %945 = vmatpush.xpose.msra.mxu0 0.0
        %946 = vmatpush.xpose.msra.mxu0 0.0
        %947 = vmatpush.xpose.msra.mxu0 0.0
        %948 = vmatpush.xpose.msra.mxu0 0.0
        %949 = vmatpush.xpose.msra.mxu0 0.0
        %950 = vmatpush.xpose.msra.mxu0 0.0
        %951 = vmatpush.xpose.msra.mxu0 0.0
        %952 = vmatpush.xpose.msra.mxu0 0.0
        %953 = vmatpush.xpose.msra.mxu0 0.0
        %954 = vmatpush.xpose.msra.mxu0 0.0
        %955 = vmatpush.xpose.msra.mxu0 0.0
        %956 = vmatpush.xpose.msra.mxu0 0.0
        %957 = vmatpush.xpose.msra.mxu0 0.0
        %958 = vmatpush.xpose.msra.mxu0 0.0
        %959 = vmatpush.xpose.msra.mxu0 %v942
        %960 = vmatmul.f32.gmra.mxu0 %v939
        %v961 = vpop.f32.mrf.mxu0
        %v962 = vadd.f32 0.0, %v961
        %963 = vdwg.mxu0
        %v965 = vsel %vm781, %v533, 0
        %v968 = vsel %vm781, %v656, 0
        %970 = vmatpush.xpose.msra.mxu0 0.0
        %971 = vmatpush.xpose.msra.mxu0 0.0
        %972 = vmatpush.xpose.msra.mxu0 0.0
        %973 = vmatpush.xpose.msra.mxu0 0.0
        %974 = vmatpush.xpose.msra.mxu0 0.0
        %975 = vmatpush.xpose.msra.mxu0 0.0
        %976 = vmatpush.xpose.msra.mxu0 0.0
        %977 = vmatpush.xpose.msra.mxu0 0.0
        %978 = vmatpush.xpose.msra.mxu0 0.0
        %979 = vmatpush.xpose.msra.mxu0 0.0
        %980 = vmatpush.xpose.msra.mxu0 0.0
        %981 = vmatpush.xpose.msra.mxu0 0.0
        %982 = vmatpush.xpose.msra.mxu0 0.0
        %983 = vmatpush.xpose.msra.mxu0 0.0
        %984 = vmatpush.xpose.msra.mxu0 0.0
        %985 = vmatpush.xpose.msra.mxu0 %v968
        %986 = vmatmul.f32.gmra.mxu0 %v965
        %v987 = vpop.f32.mrf.mxu0
        %v988 = vadd.f32 0.0, %v987
        %989 = vdwg.mxu0
        %v990 = vmul.f32 %v806, 0.5
        %v991 = vmul.f32 %v832, 0.5
        %v992 = vmul.f32 %v858, 0.5
        %v993 = vmul.f32 %v884, 0.5
        %v994 = vmul.f32 %v910, 0.5
        %v995 = vmul.f32 %v936, 0.5
        %v996 = vmul.f32 %v962, 0.5
        %v997 = vmul.f32 %v988, 0.5
        %vm998 = vcmask 64512
        %v999 = vsel %vm998, %v990, -inf
        %1000 = vmax.xlane.f32.xlu0 %v999
        %v1001 = vpop.xlane.xlu0 %1000
        %v1002 = vsel %vm998, %v991, -inf
        %1003 = vmax.xlane.f32.xlu0 %v1002
        %v1004 = vpop.xlane.xlu0 %1003
        %v1005 = vsel %vm998, %v992, -inf
        %1006 = vmax.xlane.f32.xlu0 %v1005
        %v1007 = vpop.xlane.xlu0 %1006
        %v1008 = vsel %vm998, %v993, -inf
        %1009 = vmax.xlane.f32.xlu0 %v1008
        %v1010 = vpop.xlane.xlu0 %1009
        %v1011 = vsel %vm998, %v994, -inf
        %1012 = vmax.xlane.f32.xlu0 %v1011
        %v1013 = vpop.xlane.xlu0 %1012
        %v1014 = vsel %vm998, %v995, -inf
        %1015 = vmax.xlane.f32.xlu0 %v1014
        %v1016 = vpop.xlane.xlu0 %1015
        %v1017 = vsel %vm998, %v996, -inf
        %1018 = vmax.xlane.f32.xlu0 %v1017
        %v1019 = vpop.xlane.xlu0 %1018
        %v1020 = vsel %vm998, %v997, -inf
        %1021 = vmax.xlane.f32.xlu0 %v1020
        %v1022 = vpop.xlane.xlu0 %1021
        %v1023 = vsub.f32 %v990, %v1001
        %v1024 = vsub.f32 %v991, %v1004
        %v1025 = vsub.f32 %v992, %v1007
        %v1026 = vsub.f32 %v993, %v1010
        %v1027 = vsub.f32 %v994, %v1013
        %v1028 = vsub.f32 %v995, %v1016
        %v1029 = vsub.f32 %v996, %v1019
        %v1030 = vsub.f32 %v997, %v1022
        %v1031 = vmul.f32 %v1023, 1.442695
        %v1032 = vpow.pop %v1031
        %v1033 = vmul.f32 %v1024, 1.442695
        %v1034 = vpow.pop %v1033
        %v1035 = vmul.f32 %v1025, 1.442695
        %v1036 = vpow.pop %v1035
        %v1037 = vmul.f32 %v1026, 1.442695
        %v1038 = vpow.pop %v1037
        %v1039 = vmul.f32 %v1027, 1.442695
        %v1040 = vpow.pop %v1039
        %v1041 = vmul.f32 %v1028, 1.442695
        %v1042 = vpow.pop %v1041
        %v1043 = vmul.f32 %v1029, 1.442695
        %v1044 = vpow.pop %v1043
        %v1045 = vmul.f32 %v1030, 1.442695
        %v1046 = vpow.pop %v1045
        %v1047 = vsel %vm998, %v1032, 0.0
        %1048 = vadd.xlane.f32.xlu0 %v1047
        %v1049 = vpop.xlane.xlu0 %1048
        %v1050 = vsel %vm998, %v1034, 0.0
        %1051 = vadd.xlane.f32.xlu0 %v1050
        %v1052 = vpop.xlane.xlu0 %1051
        %v1053 = vsel %vm998, %v1036, 0.0
        %1054 = vadd.xlane.f32.xlu0 %v1053
        %v1055 = vpop.xlane.xlu0 %1054
        %v1056 = vsel %vm998, %v1038, 0.0
        %1057 = vadd.xlane.f32.xlu0 %v1056
        %v1058 = vpop.xlane.xlu0 %1057
        %v1059 = vsel %vm998, %v1040, 0.0
        %1060 = vadd.xlane.f32.xlu0 %v1059
        %v1061 = vpop.xlane.xlu0 %1060
        %v1062 = vsel %vm998, %v1042, 0.0
        %1063 = vadd.xlane.f32.xlu0 %v1062
        %v1064 = vpop.xlane.xlu0 %1063
        %v1065 = vsel %vm998, %v1044, 0.0
        %1066 = vadd.xlane.f32.xlu0 %v1065
        %v1067 = vpop.xlane.xlu0 %1066
        %v1068 = vsel %vm998, %v1046, 0.0
        %1069 = vadd.xlane.f32.xlu0 %v1068
        %v1070 = vpop.xlane.xlu0 %1069
        %v1071 = vrcp.pop %v1049
        %v1072 = vmul.f32 %v1049, %v1071
        %v1073 = vsub.f32 1.0, %v1072
        %v1074 = vmul.f32 %v1071, %v1073
        %v1075 = vadd.f32 %v1071, %v1074
        %vm1076 = vweird.f32 %v1049
        %vm1077 = vweird.f32 %v1071
        %vm1078 = vmor %vm1076, %vm1077
        %v1079 = vsel %vm1078, %v1071, %v1075
        %v1080 = vand.u32 2147483647, %v1049
        %vm1081 = vcmp.eq.f32.partialorder %v1080, 8.507059e+37
        %v1082 = vand.u32 %v1049, 2147483648
        %v1083 = vor.u32 1.1754944e-38, %v1082
        %v1084 = vsel %vm1081, %v1083, %v1079
        %v1085 = vmul.f32 %v1032, %v1084
        %v1086 = vrcp.pop %v1052
        %v1087 = vmul.f32 %v1052, %v1086
        %v1088 = vsub.f32 1.0, %v1087
        %v1089 = vmul.f32 %v1086, %v1088
        %v1090 = vadd.f32 %v1086, %v1089
        %vm1091 = vweird.f32 %v1052
        %vm1092 = vweird.f32 %v1086
        %vm1093 = vmor %vm1091, %vm1092
        %v1094 = vsel %vm1093, %v1086, %v1090
        %v1095 = vand.u32 2147483647, %v1052
        %vm1096 = vcmp.eq.f32.partialorder %v1095, 8.507059e+37
        %v1097 = vand.u32 %v1052, 2147483648
        %v1098 = vor.u32 1.1754944e-38, %v1097
        %v1099 = vsel %vm1096, %v1098, %v1094
        %v1100 = vmul.f32 %v1034, %v1099
        %v1101 = vrcp.pop %v1055
        %v1102 = vmul.f32 %v1055, %v1101
        %v1103 = vsub.f32 1.0, %v1102
        %v1104 = vmul.f32 %v1101, %v1103
        %v1105 = vadd.f32 %v1101, %v1104
        %vm1106 = vweird.f32 %v1055
        %vm1107 = vweird.f32 %v1101
        %vm1108 = vmor %vm1106, %vm1107
        %v1109 = vsel %vm1108, %v1101, %v1105
        %v1110 = vand.u32 2147483647, %v1055
        %vm1111 = vcmp.eq.f32.partialorder %v1110, 8.507059e+37
        %v1112 = vand.u32 %v1055, 2147483648
        %v1113 = vor.u32 1.1754944e-38, %v1112
        %v1114 = vsel %vm1111, %v1113, %v1109
        %v1115 = vmul.f32 %v1036, %v1114
        %v1116 = vrcp.pop %v1058
        %v1117 = vmul.f32 %v1058, %v1116
        %v1118 = vsub.f32 1.0, %v1117
        %v1119 = vmul.f32 %v1116, %v1118
        %v1120 = vadd.f32 %v1116, %v1119
        %vm1121 = vweird.f32 %v1058
        %vm1122 = vweird.f32 %v1116
        %vm1123 = vmor %vm1121, %vm1122
        %v1124 = vsel %vm1123, %v1116, %v1120
        %v1125 = vand.u32 2147483647, %v1058
        %vm1126 = vcmp.eq.f32.partialorder %v1125, 8.507059e+37
        %v1127 = vand.u32 %v1058, 2147483648
        %v1128 = vor.u32 1.1754944e-38, %v1127
        %v1129 = vsel %vm1126, %v1128, %v1124
        %v1130 = vmul.f32 %v1038, %v1129
        %v1131 = vrcp.pop %v1061
        %v1132 = vmul.f32 %v1061, %v1131
        %v1133 = vsub.f32 1.0, %v1132
        %v1134 = vmul.f32 %v1131, %v1133
        %v1135 = vadd.f32 %v1131, %v1134
        %vm1136 = vweird.f32 %v1061
        %vm1137 = vweird.f32 %v1131
        %vm1138 = vmor %vm1136, %vm1137
        %v1139 = vsel %vm1138, %v1131, %v1135
        %v1140 = vand.u32 2147483647, %v1061
        %vm1141 = vcmp.eq.f32.partialorder %v1140, 8.507059e+37
        %v1142 = vand.u32 %v1061, 2147483648
        %v1143 = vor.u32 1.1754944e-38, %v1142
        %v1144 = vsel %vm1141, %v1143, %v1139
        %v1145 = vmul.f32 %v1040, %v1144
        %v1146 = vrcp.pop %v1064
        %v1147 = vmul.f32 %v1064, %v1146
        %v1148 = vsub.f32 1.0, %v1147
        %v1149 = vmul.f32 %v1146, %v1148
        %v1150 = vadd.f32 %v1146, %v1149
        %vm1151 = vweird.f32 %v1064
        %vm1152 = vweird.f32 %v1146
        %vm1153 = vmor %vm1151, %vm1152
        %v1154 = vsel %vm1153, %v1146, %v1150
        %v1155 = vand.u32 2147483647, %v1064
        %vm1156 = vcmp.eq.f32.partialorder %v1155, 8.507059e+37
        %v1157 = vand.u32 %v1064, 2147483648
        %v1158 = vor.u32 1.1754944e-38, %v1157
        %v1159 = vsel %vm1156, %v1158, %v1154
        %v1160 = vmul.f32 %v1042, %v1159
        %v1161 = vrcp.pop %v1067
        %v1162 = vmul.f32 %v1067, %v1161
        %v1163 = vsub.f32 1.0, %v1162
        %v1164 = vmul.f32 %v1161, %v1163
        %v1165 = vadd.f32 %v1161, %v1164
        %vm1166 = vweird.f32 %v1067
        %vm1167 = vweird.f32 %v1161
        %vm1168 = vmor %vm1166, %vm1167
        %v1169 = vsel %vm1168, %v1161, %v1165
        %v1170 = vand.u32 2147483647, %v1067
        %vm1171 = vcmp.eq.f32.partialorder %v1170, 8.507059e+37
        %v1172 = vand.u32 %v1067, 2147483648
        %v1173 = vor.u32 1.1754944e-38, %v1172
        %v1174 = vsel %vm1171, %v1173, %v1169
        %v1175 = vmul.f32 %v1044, %v1174
        %v1176 = vrcp.pop %v1070
        %v1177 = vmul.f32 %v1070, %v1176
        %v1178 = vsub.f32 1.0, %v1177
        %v1179 = vmul.f32 %v1176, %v1178
        %v1180 = vadd.f32 %v1176, %v1179
        %vm1181 = vweird.f32 %v1070
        %vm1182 = vweird.f32 %v1176
        %vm1183 = vmor %vm1181, %vm1182
        %v1184 = vsel %vm1183, %v1176, %v1180
        %v1185 = vand.u32 2147483647, %v1070
        %vm1186 = vcmp.eq.f32.partialorder %v1185, 8.507059e+37
        %v1187 = vand.u32 %v1070, 2147483648
        %v1188 = vor.u32 1.1754944e-38, %v1187
        %v1189 = vsel %vm1186, %v1188, %v1184
        %v1190 = vmul.f32 %v1046, %v1189
        %v1192 = vsel %vm998, %v1085, 0
        %1194 = vmatpush.msra.mxu0 0.0
        %1195 = vmatpush.msra.mxu0 0.0
        %1196 = vmatpush.msra.mxu0 0.0
        %1197 = vmatpush.msra.mxu0 0.0
        %1198 = vmatpush.msra.mxu0 0.0
        %1199 = vmatpush.msra.mxu0 0.0
        %1200 = vmatpush.msra.mxu0 0.0
        %1201 = vmatpush.msra.mxu0 0.0
        %1202 = vmatpush.msra.mxu0 0.0
        %1203 = vmatpush.msra.mxu0 0.0
        %1204 = vmatpush.msra.mxu0 0.0
        %1205 = vmatpush.msra.mxu0 0.0
        %1206 = vmatpush.msra.mxu0 0.0
        %1207 = vmatpush.msra.mxu0 0.0
        %1208 = vmatpush.msra.mxu0 0.0
        %1209 = vmatpush.msra.mxu0 %v758
        %1210 = vmatmul.f32.gmra.mxu0 %v1192
        %v1211 = vpop.f32.mrf.mxu0
        %v1212 = vadd.f32 0.0, %v1211
        %1213 = vdwg.mxu0
        %v1215 = vsel %vm998, %v1100, 0
        %1217 = vmatpush.msra.mxu0 0.0
        %1218 = vmatpush.msra.mxu0 0.0
        %1219 = vmatpush.msra.mxu0 0.0
        %1220 = vmatpush.msra.mxu0 0.0
        %1221 = vmatpush.msra.mxu0 0.0
        %1222 = vmatpush.msra.mxu0 0.0
        %1223 = vmatpush.msra.mxu0 0.0
        %1224 = vmatpush.msra.mxu0 0.0
        %1225 = vmatpush.msra.mxu0 0.0
        %1226 = vmatpush.msra.mxu0 0.0
        %1227 = vmatpush.msra.mxu0 0.0
        %1228 = vmatpush.msra.mxu0 0.0
        %1229 = vmatpush.msra.mxu0 0.0
        %1230 = vmatpush.msra.mxu0 0.0
        %1231 = vmatpush.msra.mxu0 0.0
        %1232 = vmatpush.msra.mxu0 %v761
        %1233 = vmatmul.f32.gmra.mxu0 %v1215
        %v1234 = vpop.f32.mrf.mxu0
        %v1235 = vadd.f32 0.0, %v1234
        %1236 = vdwg.mxu0
        %v1238 = vsel %vm998, %v1115, 0
        %1240 = vmatpush.msra.mxu0 0.0
        %1241 = vmatpush.msra.mxu0 0.0
        %1242 = vmatpush.msra.mxu0 0.0
        %1243 = vmatpush.msra.mxu0 0.0
        %1244 = vmatpush.msra.mxu0 0.0
        %1245 = vmatpush.msra.mxu0 0.0
        %1246 = vmatpush.msra.mxu0 0.0
        %1247 = vmatpush.msra.mxu0 0.0
        %1248 = vmatpush.msra.mxu0 0.0
        %1249 = vmatpush.msra.mxu0 0.0
        %1250 = vmatpush.msra.mxu0 0.0
        %1251 = vmatpush.msra.mxu0 0.0
        %1252 = vmatpush.msra.mxu0 0.0
        %1253 = vmatpush.msra.mxu0 0.0
        %1254 = vmatpush.msra.mxu0 0.0
        %1255 = vmatpush.msra.mxu0 %v764
        %1256 = vmatmul.f32.gmra.mxu0 %v1238
        %v1257 = vpop.f32.mrf.mxu0
        %v1258 = vadd.f32 0.0, %v1257
        %1259 = vdwg.mxu0
        %v1261 = vsel %vm998, %v1130, 0
        %1263 = vmatpush.msra.mxu0 0.0
        %1264 = vmatpush.msra.mxu0 0.0
        %1265 = vmatpush.msra.mxu0 0.0
        %1266 = vmatpush.msra.mxu0 0.0
        %1267 = vmatpush.msra.mxu0 0.0
        %1268 = vmatpush.msra.mxu0 0.0
        %1269 = vmatpush.msra.mxu0 0.0
        %1270 = vmatpush.msra.mxu0 0.0
        %1271 = vmatpush.msra.mxu0 0.0
        %1272 = vmatpush.msra.mxu0 0.0
        %1273 = vmatpush.msra.mxu0 0.0
        %1274 = vmatpush.msra.mxu0 0.0
        %1275 = vmatpush.msra.mxu0 0.0
        %1276 = vmatpush.msra.mxu0 0.0
        %1277 = vmatpush.msra.mxu0 0.0
        %1278 = vmatpush.msra.mxu0 %v767
        %1279 = vmatmul.f32.gmra.mxu0 %v1261
        %v1280 = vpop.f32.mrf.mxu0
        %v1281 = vadd.f32 0.0, %v1280
        %1282 = vdwg.mxu0
        %v1284 = vsel %vm998, %v1145, 0
        %1286 = vmatpush.msra.mxu0 0.0
        %1287 = vmatpush.msra.mxu0 0.0
        %1288 = vmatpush.msra.mxu0 0.0
        %1289 = vmatpush.msra.mxu0 0.0
        %1290 = vmatpush.msra.mxu0 0.0
        %1291 = vmatpush.msra.mxu0 0.0
        %1292 = vmatpush.msra.mxu0 0.0
        %1293 = vmatpush.msra.mxu0 0.0
        %1294 = vmatpush.msra.mxu0 0.0
        %1295 = vmatpush.msra.mxu0 0.0
        %1296 = vmatpush.msra.mxu0 0.0
        %1297 = vmatpush.msra.mxu0 0.0
        %1298 = vmatpush.msra.mxu0 0.0
        %1299 = vmatpush.msra.mxu0 0.0
        %1300 = vmatpush.msra.mxu0 0.0
        %1301 = vmatpush.msra.mxu0 %v770
        %1302 = vmatmul.f32.gmra.mxu0 %v1284
        %v1303 = vpop.f32.mrf.mxu0
        %v1304 = vadd.f32 0.0, %v1303
        %1305 = vdwg.mxu0
        %v1307 = vsel %vm998, %v1160, 0
        %1309 = vmatpush.msra.mxu0 0.0
        %1310 = vmatpush.msra.mxu0 0.0
        %1311 = vmatpush.msra.mxu0 0.0
        %1312 = vmatpush.msra.mxu0 0.0
        %1313 = vmatpush.msra.mxu0 0.0
        %1314 = vmatpush.msra.mxu0 0.0
        %1315 = vmatpush.msra.mxu0 0.0
        %1316 = vmatpush.msra.mxu0 0.0
        %1317 = vmatpush.msra.mxu0 0.0
        %1318 = vmatpush.msra.mxu0 0.0
        %1319 = vmatpush.msra.mxu0 0.0
        %1320 = vmatpush.msra.mxu0 0.0
        %1321 = vmatpush.msra.mxu0 0.0
        %1322 = vmatpush.msra.mxu0 0.0
        %1323 = vmatpush.msra.mxu0 0.0
        %1324 = vmatpush.msra.mxu0 %v773
        %1325 = vmatmul.f32.gmra.mxu0 %v1307
        %v1326 = vpop.f32.mrf.mxu0
        %v1327 = vadd.f32 0.0, %v1326
        %1328 = vdwg.mxu0
        %v1330 = vsel %vm998, %v1175, 0
        %1332 = vmatpush.msra.mxu0 0.0
        %1333 = vmatpush.msra.mxu0 0.0
        %1334 = vmatpush.msra.mxu0 0.0
        %1335 = vmatpush.msra.mxu0 0.0
        %1336 = vmatpush.msra.mxu0 0.0
        %1337 = vmatpush.msra.mxu0 0.0
        %1338 = vmatpush.msra.mxu0 0.0
        %1339 = vmatpush.msra.mxu0 0.0
        %1340 = vmatpush.msra.mxu0 0.0
        %1341 = vmatpush.msra.mxu0 0.0
        %1342 = vmatpush.msra.mxu0 0.0
        %1343 = vmatpush.msra.mxu0 0.0
        %1344 = vmatpush.msra.mxu0 0.0
        %1345 = vmatpush.msra.mxu0 0.0
        %1346 = vmatpush.msra.mxu0 0.0
        %1347 = vmatpush.msra.mxu0 %v776
        %1348 = vmatmul.f32.gmra.mxu0 %v1330
        %v1349 = vpop.f32.mrf.mxu0
        %v1350 = vadd.f32 0.0, %v1349
        %1351 = vdwg.mxu0
        %v1353 = vsel %vm998, %v1190, 0
        %1355 = vmatpush.msra.mxu0 0.0
        %1356 = vmatpush.msra.mxu0 0.0
        %1357 = vmatpush.msra.mxu0 0.0
        %1358 = vmatpush.msra.mxu0 0.0
        %1359 = vmatpush.msra.mxu0 0.0
        %1360 = vmatpush.msra.mxu0 0.0
        %1361 = vmatpush.msra.mxu0 0.0
        %1362 = vmatpush.msra.mxu0 0.0
        %1363 = vmatpush.msra.mxu0 0.0
        %1364 = vmatpush.msra.mxu0 0.0
        %1365 = vmatpush.msra.mxu0 0.0
        %1366 = vmatpush.msra.mxu0 0.0
        %1367 = vmatpush.msra.mxu0 0.0
        %1368 = vmatpush.msra.mxu0 0.0
        %1369 = vmatpush.msra.mxu0 0.0
        %1370 = vmatpush.msra.mxu0 %v779
        %1371 = vmatmul.f32.gmra.mxu0 %v1353
        %v1372 = vpop.f32.mrf.mxu0
        %v1373 = vadd.f32 0.0, %v1372
        %1374 = vdwg.mxu0
        %v1375 = vadd.f32 %v405, %v1212
        %v1376 = vadd.f32 %v406, %v1235
        %v1377 = vadd.f32 %v407, %v1258
        %v1378 = vadd.f32 %v408, %v1281
        %v1379 = vadd.f32 %v409, %v1304
        %v1380 = vadd.f32 %v410, %v1327
        %v1381 = vadd.f32 %v411, %v1350
        %v1382 = vadd.f32 %v412, %v1373
        %v1383 = vld [vmem:[%s8] sm:$0x1]
        %s1384 = scalar_lea.vmem %s8, 1
        %v1385 = vld [vmem:[%s1384] sm:$0x1]
        %v1386 = vsel %vm781, %v1375, 0.0
        %1387 = vadd.xlane.f32.xlu0 %v1386
        %v1388 = vpop.xlane.xlu0 %1387
        %v1389 = vsel %vm781, %v1376, 0.0
        %1390 = vadd.xlane.f32.xlu0 %v1389
        %v1391 = vpop.xlane.xlu0 %1390
        %v1392 = vsel %vm781, %v1377, 0.0
        %1393 = vadd.xlane.f32.xlu0 %v1392
        %v1394 = vpop.xlane.xlu0 %1393
        %v1395 = vsel %vm781, %v1378, 0.0
        %1396 = vadd.xlane.f32.xlu0 %v1395
        %v1397 = vpop.xlane.xlu0 %1396
        %v1398 = vsel %vm781, %v1379, 0.0
        %1399 = vadd.xlane.f32.xlu0 %v1398
        %v1400 = vpop.xlane.xlu0 %1399
        %v1401 = vsel %vm781, %v1380, 0.0
        %1402 = vadd.xlane.f32.xlu0 %v1401
        %v1403 = vpop.xlane.xlu0 %1402
        %v1404 = vsel %vm781, %v1381, 0.0
        %1405 = vadd.xlane.f32.xlu0 %v1404
        %v1406 = vpop.xlane.xlu0 %1405
        %v1407 = vsel %vm781, %v1382, 0.0
        %1408 = vadd.xlane.f32.xlu0 %v1407
        %v1409 = vpop.xlane.xlu0 %1408
        %v1410 = vrcp.pop 16.0
        %v1411 = vmul.f32 16.0, %v1410
        %v1412 = vsub.f32 1.0, %v1411
        %v1413 = vmul.f32 %v1410, %v1412
        %v1414 = vadd.f32 %v1410, %v1413
        %vm1415 = vweird.f32 %v1410
        %v1416 = vsel %vm1415, %v1410, %v1414
        %v1417 = vmul.f32 %v1388, %v1416
        %v1418 = vmul.f32 %v1391, %v1416
        %v1419 = vmul.f32 %v1394, %v1416
        %v1420 = vmul.f32 %v1397, %v1416
        %v1421 = vmul.f32 %v1400, %v1416
        %v1422 = vmul.f32 %v1403, %v1416
        %v1423 = vmul.f32 %v1406, %v1416
        %v1424 = vmul.f32 %v1409, %v1416
        %v1425 = vsub.f32 %v1375, %v1417
        %v1426 = vsub.f32 %v1376, %v1418
        %v1427 = vsub.f32 %v1377, %v1419
        %v1428 = vsub.f32 %v1378, %v1420
        %v1429 = vsub.f32 %v1379, %v1421
        %v1430 = vsub.f32 %v1380, %v1422
        %v1431 = vsub.f32 %v1381, %v1423
        %v1432 = vsub.f32 %v1382, %v1424
        %v1433 = vmul.f32 %v1425, %v1425
        %v1434 = vmul.f32 %v1426, %v1426
        %v1435 = vmul.f32 %v1427, %v1427
        %v1436 = vmul.f32 %v1428, %v1428
        %v1437 = vmul.f32 %v1429, %v1429
        %v1438 = vmul.f32 %v1430, %v1430
        %v1439 = vmul.f32 %v1431, %v1431
        %v1440 = vmul.f32 %v1432, %v1432
        %v1441 = vsel %vm781, %v1433, 0.0
        %1442 = vadd.xlane.f32.xlu0 %v1441
        %v1443 = vpop.xlane.xlu0 %1442
        %v1444 = vsel %vm781, %v1434, 0.0
        %1445 = vadd.xlane.f32.xlu0 %v1444
        %v1446 = vpop.xlane.xlu0 %1445
        %v1447 = vsel %vm781, %v1435, 0.0
        %1448 = vadd.xlane.f32.xlu0 %v1447
        %v1449 = vpop.xlane.xlu0 %1448
        %v1450 = vsel %vm781, %v1436, 0.0
        %1451 = vadd.xlane.f32.xlu0 %v1450
        %v1452 = vpop.xlane.xlu0 %1451
        %v1453 = vsel %vm781, %v1437, 0.0
        %1454 = vadd.xlane.f32.xlu0 %v1453
        %v1455 = vpop.xlane.xlu0 %1454
        %v1456 = vsel %vm781, %v1438, 0.0
        %1457 = vadd.xlane.f32.xlu0 %v1456
        %v1458 = vpop.xlane.xlu0 %1457
        %v1459 = vsel %vm781, %v1439, 0.0
        %1460 = vadd.xlane.f32.xlu0 %v1459
        %v1461 = vpop.xlane.xlu0 %1460
        %v1462 = vsel %vm781, %v1440, 0.0
        %1463 = vadd.xlane.f32.xlu0 %v1462
        %v1464 = vpop.xlane.xlu0 %1463
        %v1465 = vmul.f32 %v1443, %v1416
        %v1466 = vmul.f32 %v1446, %v1416
        %v1467 = vmul.f32 %v1449, %v1416
        %v1468 = vmul.f32 %v1452, %v1416
        %v1469 = vmul.f32 %v1455, %v1416
        %v1470 = vmul.f32 %v1458, %v1416
        %v1471 = vmul.f32 %v1461, %v1416
        %v1472 = vmul.f32 %v1464, %v1416
        %v1473 = vadd.f32 %v1465, 1e-05
        %v1474 = vadd.f32 %v1466, 1e-05
        %v1475 = vadd.f32 %v1467, 1e-05
        %v1476 = vadd.f32 %v1468, 1e-05
        %v1477 = vadd.f32 %v1469, 1e-05
        %v1478 = vadd.f32 %v1470, 1e-05
        %v1479 = vadd.f32 %v1471, 1e-05
        %v1480 = vadd.f32 %v1472, 1e-05
        %v1481 = vrsqrt.pop %v1473
        %v1482 = vmul.f32 %v1481, %v1473
        %v1483 = vmul.f32 %v1482, %v1481
        %v1484 = vmul.f32 0.5, %v1483
        %v1485 = vsub.f32 1.5, %v1484
        %v1486 = vmul.f32 %v1481, %v1485
        %vm1487 = vweird.f32 %v1473
        %vm1488 = vweird.f32 %v1481
        %vm1489 = vmor %vm1487, %vm1488
        %v1490 = vsel %vm1489, %v1481, %v1486
        %v1491 = vrsqrt.pop %v1474
        %v1492 = vmul.f32 %v1491, %v1474
        %v1493 = vmul.f32 %v1492, %v1491
        %v1494 = vmul.f32 0.5, %v1493
        %v1495 = vsub.f32 1.5, %v1494
        %v1496 = vmul.f32 %v1491, %v1495
        %vm1497 = vweird.f32 %v1474
        %vm1498 = vweird.f32 %v1491
        %vm1499 = vmor %vm1497, %vm1498
        %v1500 = vsel %vm1499, %v1491, %v1496
        %v1501 = vrsqrt.pop %v1475
        %v1502 = vmul.f32 %v1501, %v1475
        %v1503 = vmul.f32 %v1502, %v1501
        %v1504 = vmul.f32 0.5, %v1503
        %v1505 = vsub.f32 1.5, %v1504
        %v1506 = vmul.f32 %v1501, %v1505
        %vm1507 = vweird.f32 %v1475
        %vm1508 = vweird.f32 %v1501
        %vm1509 = vmor %vm1507, %vm1508
        %v1510 = vsel %vm1509, %v1501, %v1506
        %v1511 = vrsqrt.pop %v1476
        %v1512 = vmul.f32 %v1511, %v1476
        %v1513 = vmul.f32 %v1512, %v1511
        %v1514 = vmul.f32 0.5, %v1513
        %v1515 = vsub.f32 1.5, %v1514
        %v1516 = vmul.f32 %v1511, %v1515
        %vm1517 = vweird.f32 %v1476
        %vm1518 = vweird.f32 %v1511
        %vm1519 = vmor %vm1517, %vm1518
        %v1520 = vsel %vm1519, %v1511, %v1516
        %v1521 = vrsqrt.pop %v1477
        %v1522 = vmul.f32 %v1521, %v1477
        %v1523 = vmul.f32 %v1522, %v1521
        %v1524 = vmul.f32 0.5, %v1523
        %v1525 = vsub.f32 1.5, %v1524
        %v1526 = vmul.f32 %v1521, %v1525
        %vm1527 = vweird.f32 %v1477
        %vm1528 = vweird.f32 %v1521
        %vm1529 = vmor %vm1527, %vm1528
        %v1530 = vsel %vm1529, %v1521, %v1526
        %v1531 = vrsqrt.pop %v1478
        %v1532 = vmul.f32 %v1531, %v1478
        %v1533 = vmul.f32 %v1532, %v1531
        %v1534 = vmul.f32 0.5, %v1533
        %v1535 = vsub.f32 1.5, %v1534
        %v1536 = vmul.f32 %v1531, %v1535
        %vm1537 = vweird.f32 %v1478
        %vm1538 = vweird.f32 %v1531
        %vm1539 = vmor %vm1537, %vm1538
        %v1540 = vsel %vm1539, %v1531, %v1536
        %v1541 = vrsqrt.pop %v1479
        %v1542 = vmul.f32 %v1541, %v1479
        %v1543 = vmul.f32 %v1542, %v1541
        %v1544 = vmul.f32 0.5, %v1543
        %v1545 = vsub.f32 1.5, %v1544
        %v1546 = vmul.f32 %v1541, %v1545
        %vm1547 = vweird.f32 %v1479
        %vm1548 = vweird.f32 %v1541
        %vm1549 = vmor %vm1547, %vm1548
        %v1550 = vsel %vm1549, %v1541, %v1546
        %v1551 = vrsqrt.pop %v1480
        %v1552 = vmul.f32 %v1551, %v1480
        %v1553 = vmul.f32 %v1552, %v1551
        %v1554 = vmul.f32 0.5, %v1553
        %v1555 = vsub.f32 1.5, %v1554
        %v1556 = vmul.f32 %v1551, %v1555
        %vm1557 = vweird.f32 %v1480
        %vm1558 = vweird.f32 %v1551
        %vm1559 = vmor %vm1557, %vm1558
        %v1560 = vsel %vm1559, %v1551, %v1556
        %v1561 = vmul.f32 %v1425, %v1490
        %v1562 = vmul.f32 %v1426, %v1500
        %v1563 = vmul.f32 %v1427, %v1510
        %v1564 = vmul.f32 %v1428, %v1520
        %v1565 = vmul.f32 %v1429, %v1530
        %v1566 = vmul.f32 %v1430, %v1540
        %v1567 = vmul.f32 %v1431, %v1550
        %v1568 = vmul.f32 %v1432, %v1560
        %v1570 = vperm.slane %v1383, 0
        %v1572 = vmul.f32 %v1561, %v1570
        %v1573 = vmul.f32 %v1562, %v1570
        %v1574 = vmul.f32 %v1563, %v1570
        %v1575 = vmul.f32 %v1564, %v1570
        %v1576 = vmul.f32 %v1565, %v1570
        %v1577 = vmul.f32 %v1566, %v1570
        %v1578 = vmul.f32 %v1567, %v1570
        %v1579 = vmul.f32 %v1568, %v1570
        %v1581 = vperm.slane %v1385, 0
        %v1583 = vadd.f32 %v1572, %v1581
        %v1584 = vadd.f32 %v1573, %v1581
        %v1585 = vadd.f32 %v1574, %v1581
        %v1586 = vadd.f32 %v1575, %v1581
        %v1587 = vadd.f32 %v1576, %v1581
        %v1588 = vadd.f32 %v1577, %v1581
        %v1589 = vadd.f32 %v1578, %v1581
        %v1590 = vadd.f32 %v1579, %v1581
        %v1591 = vld [vmem:[%s404] sm:$0xff]
        %v1592 = vld [vmem:[%s404 + $0x8] sm:$0xff]
        %v1593 = vld [vmem:[%s404 + $0x10] sm:$0xff]
        %v1594 = vld [vmem:[%s404 + $0x18] sm:$0xff]
        %v1595 = vld [vmem:[%s404 + $0x20] sm:$0xff]
        %v1596 = vld [vmem:[%s404 + $0x28] sm:$0xff]
        %v1597 = vld [vmem:[%s404 + $0x30] sm:$0xff]
        %v1598 = vld [vmem:[%s404 + $0x38] sm:$0xff]
        %v1599 = vld [vmem:[%s404 + $0x40] sm:$0xff]
        %v1600 = vld [vmem:[%s404 + $0x48] sm:$0xff]
        %v1601 = vld [vmem:[%s404 + $0x50] sm:$0xff]
        %v1602 = vld [vmem:[%s404 + $0x58] sm:$0xff]
        %v1603 = vld [vmem:[%s404 + $0x60] sm:$0xff]
        %v1604 = vld [vmem:[%s404 + $0x68] sm:$0xff]
        %v1605 = vld [vmem:[%s404 + $0x70] sm:$0xff]
        %v1606 = vld [vmem:[%s404 + $0x78] sm:$0xff]
        %v1607 = vld [vmem:[%s4] sm:$0xff]
        %v1608 = vld [vmem:[%s5] sm:$0x1]
        %v1610 = vperm.slane %v1608, 0
        %v1613 = vsel %vm998, %v1591, 0
        %v1616 = vsel %vm998, %v1592, 0
        %v1619 = vsel %vm998, %v1593, 0
        %v1622 = vsel %vm998, %v1594, 0
        %v1625 = vsel %vm998, %v1595, 0
        %v1628 = vsel %vm998, %v1596, 0
        %v1631 = vsel %vm998, %v1597, 0
        %v1634 = vsel %vm998, %v1598, 0
        %v1637 = vsel %vm998, %v1599, 0
        %v1640 = vsel %vm998, %v1600, 0
        %v1643 = vsel %vm998, %v1601, 0
        %v1646 = vsel %vm998, %v1602, 0
        %v1649 = vsel %vm998, %v1603, 0
        %v1652 = vsel %vm998, %v1604, 0
        %v1655 = vsel %vm998, %v1605, 0
        %v1658 = vsel %vm998, %v1606, 0
        %1660 = vmatpush.msra.mxu0 0.0
        %1661 = vmatpush.msra.mxu0 0.0
        %1662 = vmatpush.msra.mxu0 0.0
        %1663 = vmatpush.msra.mxu0 0.0
        %1664 = vmatpush.msra.mxu0 0.0
        %1665 = vmatpush.msra.mxu0 0.0
        %1666 = vmatpush.msra.mxu0 0.0
        %1667 = vmatpush.msra.mxu0 0.0
        %1668 = vmatpush.msra.mxu0 0.0
        %1669 = vmatpush.msra.mxu0 0.0
        %1670 = vmatpush.msra.mxu0 0.0
        %1671 = vmatpush.msra.mxu0 0.0
        %1672 = vmatpush.msra.mxu0 0.0
        %1673 = vmatpush.msra.mxu0 0.0
        %1674 = vmatpush.msra.mxu0 0.0
        %1675 = vmatpush.msra.mxu0 %v1607
        %1676 = vmatmul.f32.gmra.mxu0 %v1613
        %v1677 = vpop.f32.mrf.mxu0
        %v1678 = vadd.f32 %v1610, %v1677
        %1679 = vmatmul.f32.gmra.mxu0 %v1616
        %v1680 = vpop.f32.mrf.mxu0
        %v1681 = vadd.f32 %v1610, %v1680
        %1682 = vmatmul.f32.gmra.mxu0 %v1619
        %v1683 = vpop.f32.mrf.mxu0
        %v1684 = vadd.f32 %v1610, %v1683
        %1685 = vmatmul.f32.gmra.mxu0 %v1622
        %v1686 = vpop.f32.mrf.mxu0
        %v1687 = vadd.f32 %v1610, %v1686
        %1688 = vmatmul.f32.gmra.mxu0 %v1625
        %v1689 = vpop.f32.mrf.mxu0
        %v1690 = vadd.f32 %v1610, %v1689
        %1691 = vmatmul.f32.gmra.mxu0 %v1628
        %v1692 = vpop.f32.mrf.mxu0
        %v1693 = vadd.f32 %v1610, %v1692
        %1694 = vmatmul.f32.gmra.mxu0 %v1631
        %v1695 = vpop.f32.mrf.mxu0
        %v1696 = vadd.f32 %v1610, %v1695
        %1697 = vmatmul.f32.gmra.mxu0 %v1634
        %v1698 = vpop.f32.mrf.mxu0
        %v1699 = vadd.f32 %v1610, %v1698
        %1700 = vmatmul.f32.gmra.mxu0 %v1637
        %v1701 = vpop.f32.mrf.mxu0
        %v1702 = vadd.f32 %v1610, %v1701
        %1703 = vmatmul.f32.gmra.mxu0 %v1640
        %v1704 = vpop.f32.mrf.mxu0
        %v1705 = vadd.f32 %v1610, %v1704
        %1706 = vmatmul.f32.gmra.mxu0 %v1643
        %v1707 = vpop.f32.mrf.mxu0
        %v1708 = vadd.f32 %v1610, %v1707
        %1709 = vmatmul.f32.gmra.mxu0 %v1646
        %v1710 = vpop.f32.mrf.mxu0
        %v1711 = vadd.f32 %v1610, %v1710
        %1712 = vmatmul.f32.gmra.mxu0 %v1649
        %v1713 = vpop.f32.mrf.mxu0
        %v1714 = vadd.f32 %v1610, %v1713
        %1715 = vmatmul.f32.gmra.mxu0 %v1652
        %v1716 = vpop.f32.mrf.mxu0
        %v1717 = vadd.f32 %v1610, %v1716
        %1718 = vmatmul.f32.gmra.mxu0 %v1655
        %v1719 = vpop.f32.mrf.mxu0
        %v1720 = vadd.f32 %v1610, %v1719
        %1721 = vmatmul.f32.gmra.mxu0 %v1658
        %v1722 = vpop.f32.mrf.mxu0
        %v1723 = vadd.f32 %v1610, %v1722
        %1724 = vdwg.mxu0
        %s1725 = scalar_lea.vmem %s4, 8
        %v1726 = vld [vmem:[%s1725] sm:$0xff]
        %s1727 = scalar_lea.vmem %s5, 1
        %v1728 = vld [vmem:[%s1727] sm:$0x1]
        %v1730 = vperm.slane %v1728, 0
        %1732 = vmatpush.msra.mxu0 0.0
        %1733 = vmatpush.msra.mxu0 0.0
        %1734 = vmatpush.msra.mxu0 0.0
        %1735 = vmatpush.msra.mxu0 0.0
        %1736 = vmatpush.msra.mxu0 0.0
        %1737 = vmatpush.msra.mxu0 0.0
        %1738 = vmatpush.msra.mxu0 0.0
        %1739 = vmatpush.msra.mxu0 0.0
        %1740 = vmatpush.msra.mxu0 0.0
        %1741 = vmatpush.msra.mxu0 0.0
        %1742 = vmatpush.msra.mxu0 0.0
        %1743 = vmatpush.msra.mxu0 0.0
        %1744 = vmatpush.msra.mxu0 0.0
        %1745 = vmatpush.msra.mxu0 0.0
        %1746 = vmatpush.msra.mxu0 0.0
        %1747 = vmatpush.msra.mxu0 %v1726
        %1748 = vmatmul.f32.gmra.mxu0 %v1613
        %v1749 = vpop.f32.mrf.mxu0
        %v1750 = vadd.f32 %v1730, %v1749
        %1751 = vmatmul.f32.gmra.mxu0 %v1616
        %v1752 = vpop.f32.mrf.mxu0
        %v1753 = vadd.f32 %v1730, %v1752
        %1754 = vmatmul.f32.gmra.mxu0 %v1619
        %v1755 = vpop.f32.mrf.mxu0
        %v1756 = vadd.f32 %v1730, %v1755
        %1757 = vmatmul.f32.gmra.mxu0 %v1622
        %v1758 = vpop.f32.mrf.mxu0
        %v1759 = vadd.f32 %v1730, %v1758
        %1760 = vmatmul.f32.gmra.mxu0 %v1625
        %v1761 = vpop.f32.mrf.mxu0
        %v1762 = vadd.f32 %v1730, %v1761
        %1763 = vmatmul.f32.gmra.mxu0 %v1628
        %v1764 = vpop.f32.mrf.mxu0
        %v1765 = vadd.f32 %v1730, %v1764
        %1766 = vmatmul.f32.gmra.mxu0 %v1631
        %v1767 = vpop.f32.mrf.mxu0
        %v1768 = vadd.f32 %v1730, %v1767
        %1769 = vmatmul.f32.gmra.mxu0 %v1634
        %v1770 = vpop.f32.mrf.mxu0
        %v1771 = vadd.f32 %v1730, %v1770
        %1772 = vmatmul.f32.gmra.mxu0 %v1637
        %v1773 = vpop.f32.mrf.mxu0
        %v1774 = vadd.f32 %v1730, %v1773
        %1775 = vmatmul.f32.gmra.mxu0 %v1640
        %v1776 = vpop.f32.mrf.mxu0
        %v1777 = vadd.f32 %v1730, %v1776
        %1778 = vmatmul.f32.gmra.mxu0 %v1643
        %v1779 = vpop.f32.mrf.mxu0
        %v1780 = vadd.f32 %v1730, %v1779
        %1781 = vmatmul.f32.gmra.mxu0 %v1646
        %v1782 = vpop.f32.mrf.mxu0
        %v1783 = vadd.f32 %v1730, %v1782
        %1784 = vmatmul.f32.gmra.mxu0 %v1649
        %v1785 = vpop.f32.mrf.mxu0
        %v1786 = vadd.f32 %v1730, %v1785
        %1787 = vmatmul.f32.gmra.mxu0 %v1652
        %v1788 = vpop.f32.mrf.mxu0
        %v1789 = vadd.f32 %v1730, %v1788
        %1790 = vmatmul.f32.gmra.mxu0 %v1655
        %v1791 = vpop.f32.mrf.mxu0
        %v1792 = vadd.f32 %v1730, %v1791
        %1793 = vmatmul.f32.gmra.mxu0 %v1658
        %v1794 = vpop.f32.mrf.mxu0
        %v1795 = vadd.f32 %v1730, %v1794
        %1796 = vdwg.mxu0
        %s1797 = scalar_lea.vmem %s4, 16
        %v1798 = vld [vmem:[%s1797] sm:$0xff]
        %s1799 = scalar_lea.vmem %s5, 2
        %v1800 = vld [vmem:[%s1799] sm:$0x1]
        %v1802 = vperm.slane %v1800, 0
        %1804 = vmatpush.msra.mxu0 0.0
        %1805 = vmatpush.msra.mxu0 0.0
        %1806 = vmatpush.msra.mxu0 0.0
        %1807 = vmatpush.msra.mxu0 0.0
        %1808 = vmatpush.msra.mxu0 0.0
        %1809 = vmatpush.msra.mxu0 0.0
        %1810 = vmatpush.msra.mxu0 0.0
        %1811 = vmatpush.msra.mxu0 0.0
        %1812 = vmatpush.msra.mxu0 0.0
        %1813 = vmatpush.msra.mxu0 0.0
        %1814 = vmatpush.msra.mxu0 0.0
        %1815 = vmatpush.msra.mxu0 0.0
        %1816 = vmatpush.msra.mxu0 0.0
        %1817 = vmatpush.msra.mxu0 0.0
        %1818 = vmatpush.msra.mxu0 0.0
        %1819 = vmatpush.msra.mxu0 %v1798
        %1820 = vmatmul.f32.gmra.mxu0 %v1613
        %v1821 = vpop.f32.mrf.mxu0
        %v1822 = vadd.f32 %v1802, %v1821
        %1823 = vmatmul.f32.gmra.mxu0 %v1616
        %v1824 = vpop.f32.mrf.mxu0
        %v1825 = vadd.f32 %v1802, %v1824
        %1826 = vmatmul.f32.gmra.mxu0 %v1619
        %v1827 = vpop.f32.mrf.mxu0
        %v1828 = vadd.f32 %v1802, %v1827
        %1829 = vmatmul.f32.gmra.mxu0 %v1622
        %v1830 = vpop.f32.mrf.mxu0
        %v1831 = vadd.f32 %v1802, %v1830
        %1832 = vmatmul.f32.gmra.mxu0 %v1625
        %v1833 = vpop.f32.mrf.mxu0
        %v1834 = vadd.f32 %v1802, %v1833
        %1835 = vmatmul.f32.gmra.mxu0 %v1628
        %v1836 = vpop.f32.mrf.mxu0
        %v1837 = vadd.f32 %v1802, %v1836
        %1838 = vmatmul.f32.gmra.mxu0 %v1631
        %v1839 = vpop.f32.mrf.mxu0
        %v1840 = vadd.f32 %v1802, %v1839
        %1841 = vmatmul.f32.gmra.mxu0 %v1634
        %v1842 = vpop.f32.mrf.mxu0
        %v1843 = vadd.f32 %v1802, %v1842
        %1844 = vmatmul.f32.gmra.mxu0 %v1637
        %v1845 = vpop.f32.mrf.mxu0
        %v1846 = vadd.f32 %v1802, %v1845
        %1847 = vmatmul.f32.gmra.mxu0 %v1640
        %v1848 = vpop.f32.mrf.mxu0
        %v1849 = vadd.f32 %v1802, %v1848
        %1850 = vmatmul.f32.gmra.mxu0 %v1643
        %v1851 = vpop.f32.mrf.mxu0
        %v1852 = vadd.f32 %v1802, %v1851
        %1853 = vmatmul.f32.gmra.mxu0 %v1646
        %v1854 = vpop.f32.mrf.mxu0
        %v1855 = vadd.f32 %v1802, %v1854
        %1856 = vmatmul.f32.gmra.mxu0 %v1649
        %v1857 = vpop.f32.mrf.mxu0
        %v1858 = vadd.f32 %v1802, %v1857
        %1859 = vmatmul.f32.gmra.mxu0 %v1652
        %v1860 = vpop.f32.mrf.mxu0
        %v1861 = vadd.f32 %v1802, %v1860
        %1862 = vmatmul.f32.gmra.mxu0 %v1655
        %v1863 = vpop.f32.mrf.mxu0
        %v1864 = vadd.f32 %v1802, %v1863
        %1865 = vmatmul.f32.gmra.mxu0 %v1658
        %v1866 = vpop.f32.mrf.mxu0
        %v1867 = vadd.f32 %v1802, %v1866
        %1868 = vdwg.mxu0
        %v1870 = vsel %vm998, %v1678, 0
        %v1873 = vsel %vm998, %v1750, 0
        %1875 = vmatpush.xpose.msra.mxu0 0.0
        %1876 = vmatpush.xpose.msra.mxu0 0.0
        %1877 = vmatpush.xpose.msra.mxu0 0.0
        %1878 = vmatpush.xpose.msra.mxu0 0.0
        %1879 = vmatpush.xpose.msra.mxu0 0.0
        %1880 = vmatpush.xpose.msra.mxu0 0.0
        %1881 = vmatpush.xpose.msra.mxu0 0.0
        %1882 = vmatpush.xpose.msra.mxu0 0.0
        %1883 = vmatpush.xpose.msra.mxu0 0.0
        %1884 = vmatpush.xpose.msra.mxu0 0.0
        %1885 = vmatpush.xpose.msra.mxu0 0.0
        %1886 = vmatpush.xpose.msra.mxu0 0.0
        %1887 = vmatpush.xpose.msra.mxu0 0.0
        %1888 = vmatpush.xpose.msra.mxu0 0.0
        %1889 = vmatpush.xpose.msra.mxu0 0.0
        %1890 = vmatpush.xpose.msra.mxu0 %v1873
        %1891 = vmatmul.f32.gmra.mxu0 %v1870
        %v1892 = vpop.f32.mrf.mxu0
        %v1893 = vadd.f32 0.0, %v1892
        %1894 = vdwg.mxu0
        %v1896 = vsel %vm998, %v1681, 0
        %v1899 = vsel %vm998, %v1753, 0
        %1901 = vmatpush.xpose.msra.mxu0 0.0
        %1902 = vmatpush.xpose.msra.mxu0 0.0
        %1903 = vmatpush.xpose.msra.mxu0 0.0
        %1904 = vmatpush.xpose.msra.mxu0 0.0
        %1905 = vmatpush.xpose.msra.mxu0 0.0
        %1906 = vmatpush.xpose.msra.mxu0 0.0
        %1907 = vmatpush.xpose.msra.mxu0 0.0
        %1908 = vmatpush.xpose.msra.mxu0 0.0
        %1909 = vmatpush.xpose.msra.mxu0 0.0
        %1910 = vmatpush.xpose.msra.mxu0 0.0
        %1911 = vmatpush.xpose.msra.mxu0 0.0
        %1912 = vmatpush.xpose.msra.mxu0 0.0
        %1913 = vmatpush.xpose.msra.mxu0 0.0
        %1914 = vmatpush.xpose.msra.mxu0 0.0
        %1915 = vmatpush.xpose.msra.mxu0 0.0
        %1916 = vmatpush.xpose.msra.mxu0 %v1899
        %1917 = vmatmul.f32.gmra.mxu0 %v1896
        %v1918 = vpop.f32.mrf.mxu0
        %v1919 = vadd.f32 0.0, %v1918
        %1920 = vdwg.mxu0
        %v1922 = vsel %vm998, %v1684, 0
        %v1925 = vsel %vm998, %v1756, 0
        %1927 = vmatpush.xpose.msra.mxu0 0.0
        %1928 = vmatpush.xpose.msra.mxu0 0.0
        %1929 = vmatpush.xpose.msra.mxu0 0.0
        %1930 = vmatpush.xpose.msra.mxu0 0.0
        %1931 = vmatpush.xpose.msra.mxu0 0.0
        %1932 = vmatpush.xpose.msra.mxu0 0.0
        %1933 = vmatpush.xpose.msra.mxu0 0.0
        %1934 = vmatpush.xpose.msra.mxu0 0.0
        %1935 = vmatpush.xpose.msra.mxu0 0.0
        %1936 = vmatpush.xpose.msra.mxu0 0.0
        %1937 = vmatpush.xpose.msra.mxu0 0.0
        %1938 = vmatpush.xpose.msra.mxu0 0.0
        %1939 = vmatpush.xpose.msra.mxu0 0.0
        %1940 = vmatpush.xpose.msra.mxu0 0.0
        %1941 = vmatpush.xpose.msra.mxu0 0.0
        %1942 = vmatpush.xpose.msra.mxu0 %v1925
        %1943 = vmatmul.f32.gmra.mxu0 %v1922
        %v1944 = vpop.f32.mrf.mxu0
        %v1945 = vadd.f32 0.0, %v1944
        %1946 = vdwg.mxu0
        %v1948 = vsel %vm998, %v1687, 0
        %v1951 = vsel %vm998, %v1759, 0
        %1953 = vmatpush.xpose.msra.mxu0 0.0
        %1954 = vmatpush.xpose.msra.mxu0 0.0
        %1955 = vmatpush.xpose.msra.mxu0 0.0
        %1956 = vmatpush.xpose.msra.mxu0 0.0
        %1957 = vmatpush.xpose.msra.mxu0 0.0
        %1958 = vmatpush.xpose.msra.mxu0 0.0
        %1959 = vmatpush.xpose.msra.mxu0 0.0
        %1960 = vmatpush.xpose.msra.mxu0 0.0
        %1961 = vmatpush.xpose.msra.mxu0 0.0
        %1962 = vmatpush.xpose.msra.mxu0 0.0
        %1963 = vmatpush.xpose.msra.mxu0 0.0
        %1964 = vmatpush.xpose.msra.mxu0 0.0
        %1965 = vmatpush.xpose.msra.mxu0 0.0
        %1966 = vmatpush.xpose.msra.mxu0 0.0
        %1967 = vmatpush.xpose.msra.mxu0 0.0
        %1968 = vmatpush.xpose.msra.mxu0 %v1951
        %1969 = vmatmul.f32.gmra.mxu0 %v1948
        %v1970 = vpop.f32.mrf.mxu0
        %v1971 = vadd.f32 0.0, %v1970
        %1972 = vdwg.mxu0
        %v1974 = vsel %vm998, %v1690, 0
        %v1977 = vsel %vm998, %v1762, 0
        %1979 = vmatpush.xpose.msra.mxu0 0.0
        %1980 = vmatpush.xpose.msra.mxu0 0.0
        %1981 = vmatpush.xpose.msra.mxu0 0.0
        %1982 = vmatpush.xpose.msra.mxu0 0.0
        %1983 = vmatpush.xpose.msra.mxu0 0.0
        %1984 = vmatpush.xpose.msra.mxu0 0.0
        %1985 = vmatpush.xpose.msra.mxu0 0.0
        %1986 = vmatpush.xpose.msra.mxu0 0.0
        %1987 = vmatpush.xpose.msra.mxu0 0.0
        %1988 = vmatpush.xpose.msra.mxu0 0.0
        %1989 = vmatpush.xpose.msra.mxu0 0.0
        %1990 = vmatpush.xpose.msra.mxu0 0.0
        %1991 = vmatpush.xpose.msra.mxu0 0.0
        %1992 = vmatpush.xpose.msra.mxu0 0.0
        %1993 = vmatpush.xpose.msra.mxu0 0.0
        %1994 = vmatpush.xpose.msra.mxu0 %v1977
        %1995 = vmatmul.f32.gmra.mxu0 %v1974
        %v1996 = vpop.f32.mrf.mxu0
        %v1997 = vadd.f32 0.0, %v1996
        %1998 = vdwg.mxu0
        %v2000 = vsel %vm998, %v1693, 0
        %v2003 = vsel %vm998, %v1765, 0
        %2005 = vmatpush.xpose.msra.mxu0 0.0
        %2006 = vmatpush.xpose.msra.mxu0 0.0
        %2007 = vmatpush.xpose.msra.mxu0 0.0
        %2008 = vmatpush.xpose.msra.mxu0 0.0
        %2009 = vmatpush.xpose.msra.mxu0 0.0
        %2010 = vmatpush.xpose.msra.mxu0 0.0
        %2011 = vmatpush.xpose.msra.mxu0 0.0
        %2012 = vmatpush.xpose.msra.mxu0 0.0
        %2013 = vmatpush.xpose.msra.mxu0 0.0
        %2014 = vmatpush.xpose.msra.mxu0 0.0
        %2015 = vmatpush.xpose.msra.mxu0 0.0
        %2016 = vmatpush.xpose.msra.mxu0 0.0
        %2017 = vmatpush.xpose.msra.mxu0 0.0
        %2018 = vmatpush.xpose.msra.mxu0 0.0
        %2019 = vmatpush.xpose.msra.mxu0 0.0
        %2020 = vmatpush.xpose.msra.mxu0 %v2003
        %2021 = vmatmul.f32.gmra.mxu0 %v2000
        %v2022 = vpop.f32.mrf.mxu0
        %v2023 = vadd.f32 0.0, %v2022
        %2024 = vdwg.mxu0
        %v2026 = vsel %vm998, %v1696, 0
        %v2029 = vsel %vm998, %v1768, 0
        %2031 = vmatpush.xpose.msra.mxu0 0.0
        %2032 = vmatpush.xpose.msra.mxu0 0.0
        %2033 = vmatpush.xpose.msra.mxu0 0.0
        %2034 = vmatpush.xpose.msra.mxu0 0.0
        %2035 = vmatpush.xpose.msra.mxu0 0.0
        %2036 = vmatpush.xpose.msra.mxu0 0.0
        %2037 = vmatpush.xpose.msra.mxu0 0.0
        %2038 = vmatpush.xpose.msra.mxu0 0.0
        %2039 = vmatpush.xpose.msra.mxu0 0.0
        %2040 = vmatpush.xpose.msra.mxu0 0.0
        %2041 = vmatpush.xpose.msra.mxu0 0.0
        %2042 = vmatpush.xpose.msra.mxu0 0.0
        %2043 = vmatpush.xpose.msra.mxu0 0.0
        %2044 = vmatpush.xpose.msra.mxu0 0.0
        %2045 = vmatpush.xpose.msra.mxu0 0.0
        %2046 = vmatpush.xpose.msra.mxu0 %v2029
        %2047 = vmatmul.f32.gmra.mxu0 %v2026
        %v2048 = vpop.f32.mrf.mxu0
        %v2049 = vadd.f32 0.0, %v2048
        %2050 = vdwg.mxu0
        %v2052 = vsel %vm998, %v1699, 0
        %v2055 = vsel %vm998, %v1771, 0
        %2057 = vmatpush.xpose.msra.mxu0 0.0
        %2058 = vmatpush.xpose.msra.mxu0 0.0
        %2059 = vmatpush.xpose.msra.mxu0 0.0
        %2060 = vmatpush.xpose.msra.mxu0 0.0
        %2061 = vmatpush.xpose.msra.mxu0 0.0
        %2062 = vmatpush.xpose.msra.mxu0 0.0
        %2063 = vmatpush.xpose.msra.mxu0 0.0
        %2064 = vmatpush.xpose.msra.mxu0 0.0
        %2065 = vmatpush.xpose.msra.mxu0 0.0
        %2066 = vmatpush.xpose.msra.mxu0 0.0
        %2067 = vmatpush.xpose.msra.mxu0 0.0
        %2068 = vmatpush.xpose.msra.mxu0 0.0
        %2069 = vmatpush.xpose.msra.mxu0 0.0
        %2070 = vmatpush.xpose.msra.mxu0 0.0
        %2071 = vmatpush.xpose.msra.mxu0 0.0
        %2072 = vmatpush.xpose.msra.mxu0 %v2055
        %2073 = vmatmul.f32.gmra.mxu0 %v2052
        %v2074 = vpop.f32.mrf.mxu0
        %v2075 = vadd.f32 0.0, %v2074
        %2076 = vdwg.mxu0
        %v2078 = vsel %vm998, %v1702, 0
        %v2081 = vsel %vm998, %v1774, 0
        %2083 = vmatpush.xpose.msra.mxu0 0.0
        %2084 = vmatpush.xpose.msra.mxu0 0.0
        %2085 = vmatpush.xpose.msra.mxu0 0.0
        %2086 = vmatpush.xpose.msra.mxu0 0.0
        %2087 = vmatpush.xpose.msra.mxu0 0.0
        %2088 = vmatpush.xpose.msra.mxu0 0.0
        %2089 = vmatpush.xpose.msra.mxu0 0.0
        %2090 = vmatpush.xpose.msra.mxu0 0.0
        %2091 = vmatpush.xpose.msra.mxu0 0.0
        %2092 = vmatpush.xpose.msra.mxu0 0.0
        %2093 = vmatpush.xpose.msra.mxu0 0.0
        %2094 = vmatpush.xpose.msra.mxu0 0.0
        %2095 = vmatpush.xpose.msra.mxu0 0.0
        %2096 = vmatpush.xpose.msra.mxu0 0.0
        %2097 = vmatpush.xpose.msra.mxu0 0.0
        %2098 = vmatpush.xpose.msra.mxu0 %v2081
        %2099 = vmatmul.f32.gmra.mxu0 %v2078
        %v2100 = vpop.f32.mrf.mxu0
        %v2101 = vadd.f32 0.0, %v2100
        %2102 = vdwg.mxu0
        %v2104 = vsel %vm998, %v1705, 0
        %v2107 = vsel %vm998, %v1777, 0
        %2109 = vmatpush.xpose.msra.mxu0 0.0
        %2110 = vmatpush.xpose.msra.mxu0 0.0
        %2111 = vmatpush.xpose.msra.mxu0 0.0
        %2112 = vmatpush.xpose.msra.mxu0 0.0
        %2113 = vmatpush.xpose.msra.mxu0 0.0
        %2114 = vmatpush.xpose.msra.mxu0 0.0
        %2115 = vmatpush.xpose.msra.mxu0 0.0
        %2116 = vmatpush.xpose.msra.mxu0 0.0
        %2117 = vmatpush.xpose.msra.mxu0 0.0
        %2118 = vmatpush.xpose.msra.mxu0 0.0
        %2119 = vmatpush.xpose.msra.mxu0 0.0
        %2120 = vmatpush.xpose.msra.mxu0 0.0
        %2121 = vmatpush.xpose.msra.mxu0 0.0
        %2122 = vmatpush.xpose.msra.mxu0 0.0
        %2123 = vmatpush.xpose.msra.mxu0 0.0
        %2124 = vmatpush.xpose.msra.mxu0 %v2107
        %2125 = vmatmul.f32.gmra.mxu0 %v2104
        %v2126 = vpop.f32.mrf.mxu0
        %v2127 = vadd.f32 0.0, %v2126
        %2128 = vdwg.mxu0
        %v2130 = vsel %vm998, %v1708, 0
        %v2133 = vsel %vm998, %v1780, 0
        %2135 = vmatpush.xpose.msra.mxu0 0.0
        %2136 = vmatpush.xpose.msra.mxu0 0.0
        %2137 = vmatpush.xpose.msra.mxu0 0.0
        %2138 = vmatpush.xpose.msra.mxu0 0.0
        %2139 = vmatpush.xpose.msra.mxu0 0.0
        %2140 = vmatpush.xpose.msra.mxu0 0.0
        %2141 = vmatpush.xpose.msra.mxu0 0.0
        %2142 = vmatpush.xpose.msra.mxu0 0.0
        %2143 = vmatpush.xpose.msra.mxu0 0.0
        %2144 = vmatpush.xpose.msra.mxu0 0.0
        %2145 = vmatpush.xpose.msra.mxu0 0.0
        %2146 = vmatpush.xpose.msra.mxu0 0.0
        %2147 = vmatpush.xpose.msra.mxu0 0.0
        %2148 = vmatpush.xpose.msra.mxu0 0.0
        %2149 = vmatpush.xpose.msra.mxu0 0.0
        %2150 = vmatpush.xpose.msra.mxu0 %v2133
        %2151 = vmatmul.f32.gmra.mxu0 %v2130
        %v2152 = vpop.f32.mrf.mxu0
        %v2153 = vadd.f32 0.0, %v2152
        %2154 = vdwg.mxu0
        %v2156 = vsel %vm998, %v1711, 0
        %v2159 = vsel %vm998, %v1783, 0
        %2161 = vmatpush.xpose.msra.mxu0 0.0
        %2162 = vmatpush.xpose.msra.mxu0 0.0
        %2163 = vmatpush.xpose.msra.mxu0 0.0
        %2164 = vmatpush.xpose.msra.mxu0 0.0
        %2165 = vmatpush.xpose.msra.mxu0 0.0
        %2166 = vmatpush.xpose.msra.mxu0 0.0
        %2167 = vmatpush.xpose.msra.mxu0 0.0
        %2168 = vmatpush.xpose.msra.mxu0 0.0
        %2169 = vmatpush.xpose.msra.mxu0 0.0
        %2170 = vmatpush.xpose.msra.mxu0 0.0
        %2171 = vmatpush.xpose.msra.mxu0 0.0
        %2172 = vmatpush.xpose.msra.mxu0 0.0
        %2173 = vmatpush.xpose.msra.mxu0 0.0
        %2174 = vmatpush.xpose.msra.mxu0 0.0
        %2175 = vmatpush.xpose.msra.mxu0 0.0
        %2176 = vmatpush.xpose.msra.mxu0 %v2159
        %2177 = vmatmul.f32.gmra.mxu0 %v2156
        %v2178 = vpop.f32.mrf.mxu0
        %v2179 = vadd.f32 0.0, %v2178
        %2180 = vdwg.mxu0
        %v2182 = vsel %vm998, %v1714, 0
        %v2185 = vsel %vm998, %v1786, 0
        %2187 = vmatpush.xpose.msra.mxu0 0.0
        %2188 = vmatpush.xpose.msra.mxu0 0.0
        %2189 = vmatpush.xpose.msra.mxu0 0.0
        %2190 = vmatpush.xpose.msra.mxu0 0.0
        %2191 = vmatpush.xpose.msra.mxu0 0.0
        %2192 = vmatpush.xpose.msra.mxu0 0.0
        %2193 = vmatpush.xpose.msra.mxu0 0.0
        %2194 = vmatpush.xpose.msra.mxu0 0.0
        %2195 = vmatpush.xpose.msra.mxu0 0.0
        %2196 = vmatpush.xpose.msra.mxu0 0.0
        %2197 = vmatpush.xpose.msra.mxu0 0.0
        %2198 = vmatpush.xpose.msra.mxu0 0.0
        %2199 = vmatpush.xpose.msra.mxu0 0.0
        %2200 = vmatpush.xpose.msra.mxu0 0.0
        %2201 = vmatpush.xpose.msra.mxu0 0.0
        %2202 = vmatpush.xpose.msra.mxu0 %v2185
        %2203 = vmatmul.f32.gmra.mxu0 %v2182
        %v2204 = vpop.f32.mrf.mxu0
        %v2205 = vadd.f32 0.0, %v2204
        %2206 = vdwg.mxu0
        %v2208 = vsel %vm998, %v1717, 0
        %v2211 = vsel %vm998, %v1789, 0
        %2213 = vmatpush.xpose.msra.mxu0 0.0
        %2214 = vmatpush.xpose.msra.mxu0 0.0
        %2215 = vmatpush.xpose.msra.mxu0 0.0
        %2216 = vmatpush.xpose.msra.mxu0 0.0
        %2217 = vmatpush.xpose.msra.mxu0 0.0
        %2218 = vmatpush.xpose.msra.mxu0 0.0
        %2219 = vmatpush.xpose.msra.mxu0 0.0
        %2220 = vmatpush.xpose.msra.mxu0 0.0
        %2221 = vmatpush.xpose.msra.mxu0 0.0
        %2222 = vmatpush.xpose.msra.mxu0 0.0
        %2223 = vmatpush.xpose.msra.mxu0 0.0
        %2224 = vmatpush.xpose.msra.mxu0 0.0
        %2225 = vmatpush.xpose.msra.mxu0 0.0
        %2226 = vmatpush.xpose.msra.mxu0 0.0
        %2227 = vmatpush.xpose.msra.mxu0 0.0
        %2228 = vmatpush.xpose.msra.mxu0 %v2211
        %2229 = vmatmul.f32.gmra.mxu0 %v2208
        %v2230 = vpop.f32.mrf.mxu0
        %v2231 = vadd.f32 0.0, %v2230
        %2232 = vdwg.mxu0
        %v2234 = vsel %vm998, %v1720, 0
        %v2237 = vsel %vm998, %v1792, 0
        %2239 = vmatpush.xpose.msra.mxu0 0.0
        %2240 = vmatpush.xpose.msra.mxu0 0.0
        %2241 = vmatpush.xpose.msra.mxu0 0.0
        %2242 = vmatpush.xpose.msra.mxu0 0.0
        %2243 = vmatpush.xpose.msra.mxu0 0.0
        %2244 = vmatpush.xpose.msra.mxu0 0.0
        %2245 = vmatpush.xpose.msra.mxu0 0.0
        %2246 = vmatpush.xpose.msra.mxu0 0.0
        %2247 = vmatpush.xpose.msra.mxu0 0.0
        %2248 = vmatpush.xpose.msra.mxu0 0.0
        %2249 = vmatpush.xpose.msra.mxu0 0.0
        %2250 = vmatpush.xpose.msra.mxu0 0.0
        %2251 = vmatpush.xpose.msra.mxu0 0.0
        %2252 = vmatpush.xpose.msra.mxu0 0.0
        %2253 = vmatpush.xpose.msra.mxu0 0.0
        %2254 = vmatpush.xpose.msra.mxu0 %v2237
        %2255 = vmatmul.f32.gmra.mxu0 %v2234
        %v2256 = vpop.f32.mrf.mxu0
        %v2257 = vadd.f32 0.0, %v2256
        %2258 = vdwg.mxu0
        %v2260 = vsel %vm998, %v1723, 0
        %v2263 = vsel %vm998, %v1795, 0
        %2265 = vmatpush.xpose.msra.mxu0 0.0
        %2266 = vmatpush.xpose.msra.mxu0 0.0
        %2267 = vmatpush.xpose.msra.mxu0 0.0
        %2268 = vmatpush.xpose.msra.mxu0 0.0
        %2269 = vmatpush.xpose.msra.mxu0 0.0
        %2270 = vmatpush.xpose.msra.mxu0 0.0
        %2271 = vmatpush.xpose.msra.mxu0 0.0
        %2272 = vmatpush.xpose.msra.mxu0 0.0
        %2273 = vmatpush.xpose.msra.mxu0 0.0
        %2274 = vmatpush.xpose.msra.mxu0 0.0
        %2275 = vmatpush.xpose.msra.mxu0 0.0
        %2276 = vmatpush.xpose.msra.mxu0 0.0
        %2277 = vmatpush.xpose.msra.mxu0 0.0
        %2278 = vmatpush.xpose.msra.mxu0 0.0
        %2279 = vmatpush.xpose.msra.mxu0 0.0
        %2280 = vmatpush.xpose.msra.mxu0 %v2263
        %2281 = vmatmul.f32.gmra.mxu0 %v2260
        %v2282 = vpop.f32.mrf.mxu0
        %v2283 = vadd.f32 0.0, %v2282
        %2284 = vdwg.mxu0
        %v2285 = vmul.f32 %v1893, 0.5
        %v2286 = vmul.f32 %v1919, 0.5
        %v2287 = vmul.f32 %v1945, 0.5
        %v2288 = vmul.f32 %v1971, 0.5
        %v2289 = vmul.f32 %v1997, 0.5
        %v2290 = vmul.f32 %v2023, 0.5
        %v2291 = vmul.f32 %v2049, 0.5
        %v2292 = vmul.f32 %v2075, 0.5
        %v2293 = vmul.f32 %v2101, 0.5
        %v2294 = vmul.f32 %v2127, 0.5
        %v2295 = vmul.f32 %v2153, 0.5
        %v2296 = vmul.f32 %v2179, 0.5
        %v2297 = vmul.f32 %v2205, 0.5
        %v2298 = vmul.f32 %v2231, 0.5
        %v2299 = vmul.f32 %v2257, 0.5
        %v2300 = vmul.f32 %v2283, 0.5
        %v2301 = vsel %vm998, %v2285, -inf
        %2302 = vmax.xlane.f32.xlu0 %v2301
        %v2303 = vpop.xlane.xlu0 %2302
        %v2304 = vsel %vm998, %v2286, -inf
        %2305 = vmax.xlane.f32.xlu0 %v2304
        %v2306 = vpop.xlane.xlu0 %2305
        %v2307 = vsel %vm998, %v2287, -inf
        %2308 = vmax.xlane.f32.xlu0 %v2307
        %v2309 = vpop.xlane.xlu0 %2308
        %v2310 = vsel %vm998, %v2288, -inf
        %2311 = vmax.xlane.f32.xlu0 %v2310
        %v2312 = vpop.xlane.xlu0 %2311
        %v2313 = vsel %vm998, %v2289, -inf
        %2314 = vmax.xlane.f32.xlu0 %v2313
        %v2315 = vpop.xlane.xlu0 %2314
        %v2316 = vsel %vm998, %v2290, -inf
        %2317 = vmax.xlane.f32.xlu0 %v2316
        %v2318 = vpop.xlane.xlu0 %2317
        %v2319 = vsel %vm998, %v2291, -inf
        %2320 = vmax.xlane.f32.xlu0 %v2319
        %v2321 = vpop.xlane.xlu0 %2320
        %v2322 = vsel %vm998, %v2292, -inf
        %2323 = vmax.xlane.f32.xlu0 %v2322
        %v2324 = vpop.xlane.xlu0 %2323
        %v2325 = vsel %vm998, %v2293, -inf
        %2326 = vmax.xlane.f32.xlu0 %v2325
        %v2327 = vpop.xlane.xlu0 %2326
        %v2328 = vsel %vm998, %v2294, -inf
        %2329 = vmax.xlane.f32.xlu0 %v2328
        %v2330 = vpop.xlane.xlu0 %2329
        %v2331 = vsel %vm998, %v2295, -inf
        %2332 = vmax.xlane.f32.xlu0 %v2331
        %v2333 = vpop.xlane.xlu0 %2332
        %v2334 = vsel %vm998, %v2296, -inf
        %2335 = vmax.xlane.f32.xlu0 %v2334
        %v2336 = vpop.xlane.xlu0 %2335
        %v2337 = vsel %vm998, %v2297, -inf
        %2338 = vmax.xlane.f32.xlu0 %v2337
        %v2339 = vpop.xlane.xlu0 %2338
        %v2340 = vsel %vm998, %v2298, -inf
        %2341 = vmax.xlane.f32.xlu0 %v2340
        %v2342 = vpop.xlane.xlu0 %2341
        %v2343 = vsel %vm998, %v2299, -inf
        %2344 = vmax.xlane.f32.xlu0 %v2343
        %v2345 = vpop.xlane.xlu0 %2344
        %v2346 = vsel %vm998, %v2300, -inf
        %2347 = vmax.xlane.f32.xlu0 %v2346
        %v2348 = vpop.xlane.xlu0 %2347
        %v2349 = vsub.f32 %v2285, %v2303
        %v2350 = vsub.f32 %v2286, %v2306
        %v2351 = vsub.f32 %v2287, %v2309
        %v2352 = vsub.f32 %v2288, %v2312
        %v2353 = vsub.f32 %v2289, %v2315
        %v2354 = vsub.f32 %v2290, %v2318
        %v2355 = vsub.f32 %v2291, %v2321
        %v2356 = vsub.f32 %v2292, %v2324
        %v2357 = vsub.f32 %v2293, %v2327
        %v2358 = vsub.f32 %v2294, %v2330
        %v2359 = vsub.f32 %v2295, %v2333
        %v2360 = vsub.f32 %v2296, %v2336
        %v2361 = vsub.f32 %v2297, %v2339
        %v2362 = vsub.f32 %v2298, %v2342
        %v2363 = vsub.f32 %v2299, %v2345
        %v2364 = vsub.f32 %v2300, %v2348
        %v2365 = vmul.f32 %v2349, 1.442695
        %v2366 = vpow.pop %v2365
        %v2367 = vmul.f32 %v2350, 1.442695
        %v2368 = vpow.pop %v2367
        %v2369 = vmul.f32 %v2351, 1.442695
        %v2370 = vpow.pop %v2369
        %v2371 = vmul.f32 %v2352, 1.442695
        %v2372 = vpow.pop %v2371
        %v2373 = vmul.f32 %v2353, 1.442695
        %v2374 = vpow.pop %v2373
        %v2375 = vmul.f32 %v2354, 1.442695
        %v2376 = vpow.pop %v2375
        %v2377 = vmul.f32 %v2355, 1.442695
        %v2378 = vpow.pop %v2377
        %v2379 = vmul.f32 %v2356, 1.442695
        %v2380 = vpow.pop %v2379
        %v2381 = vmul.f32 %v2357, 1.442695
        %v2382 = vpow.pop %v2381
        %v2383 = vmul.f32 %v2358, 1.442695
        %v2384 = vpow.pop %v2383
        %v2385 = vmul.f32 %v2359, 1.442695
        %v2386 = vpow.pop %v2385
        %v2387 = vmul.f32 %v2360, 1.442695
        %v2388 = vpow.pop %v2387
        %v2389 = vmul.f32 %v2361, 1.442695
        %v2390 = vpow.pop %v2389
        %v2391 = vmul.f32 %v2362, 1.442695
        %v2392 = vpow.pop %v2391
        %v2393 = vmul.f32 %v2363, 1.442695
        %v2394 = vpow.pop %v2393
        %v2395 = vmul.f32 %v2364, 1.442695
        %v2396 = vpow.pop %v2395
        %v2397 = vsel %vm998, %v2366, 0.0
        %2398 = vadd.xlane.f32.xlu0 %v2397
        %v2399 = vpop.xlane.xlu0 %2398
        %v2400 = vsel %vm998, %v2368, 0.0
        %2401 = vadd.xlane.f32.xlu0 %v2400
        %v2402 = vpop.xlane.xlu0 %2401
        %v2403 = vsel %vm998, %v2370, 0.0
        %2404 = vadd.xlane.f32.xlu0 %v2403
        %v2405 = vpop.xlane.xlu0 %2404
        %v2406 = vsel %vm998, %v2372, 0.0
        %2407 = vadd.xlane.f32.xlu0 %v2406
        %v2408 = vpop.xlane.xlu0 %2407
        %v2409 = vsel %vm998, %v2374, 0.0
        %2410 = vadd.xlane.f32.xlu0 %v2409
        %v2411 = vpop.xlane.xlu0 %2410
        %v2412 = vsel %vm998, %v2376, 0.0
        %2413 = vadd.xlane.f32.xlu0 %v2412
        %v2414 = vpop.xlane.xlu0 %2413
        %v2415 = vsel %vm998, %v2378, 0.0
        %2416 = vadd.xlane.f32.xlu0 %v2415
        %v2417 = vpop.xlane.xlu0 %2416
        %v2418 = vsel %vm998, %v2380, 0.0
        %2419 = vadd.xlane.f32.xlu0 %v2418
        %v2420 = vpop.xlane.xlu0 %2419
        %v2421 = vsel %vm998, %v2382, 0.0
        %2422 = vadd.xlane.f32.xlu0 %v2421
        %v2423 = vpop.xlane.xlu0 %2422
        %v2424 = vsel %vm998, %v2384, 0.0
        %2425 = vadd.xlane.f32.xlu0 %v2424
        %v2426 = vpop.xlane.xlu0 %2425
        %v2427 = vsel %vm998, %v2386, 0.0
        %2428 = vadd.xlane.f32.xlu0 %v2427
        %v2429 = vpop.xlane.xlu0 %2428
        %v2430 = vsel %vm998, %v2388, 0.0
        %2431 = vadd.xlane.f32.xlu0 %v2430
        %v2432 = vpop.xlane.xlu0 %2431
        %v2433 = vsel %vm998, %v2390, 0.0
        %2434 = vadd.xlane.f32.xlu0 %v2433
        %v2435 = vpop.xlane.xlu0 %2434
        %v2436 = vsel %vm998, %v2392, 0.0
        %2437 = vadd.xlane.f32.xlu0 %v2436
        %v2438 = vpop.xlane.xlu0 %2437
        %v2439 = vsel %vm998, %v2394, 0.0
        %2440 = vadd.xlane.f32.xlu0 %v2439
        %v2441 = vpop.xlane.xlu0 %2440
        %v2442 = vsel %vm998, %v2396, 0.0
        %2443 = vadd.xlane.f32.xlu0 %v2442
        %v2444 = vpop.xlane.xlu0 %2443
        %v2445 = vrcp.pop %v2399
        %v2446 = vmul.f32 %v2399, %v2445
        %v2447 = vsub.f32 1.0, %v2446
        %v2448 = vmul.f32 %v2445, %v2447
        %v2449 = vadd.f32 %v2445, %v2448
        %vm2450 = vweird.f32 %v2399
        %vm2451 = vweird.f32 %v2445
        %vm2452 = vmor %vm2450, %vm2451
        %v2453 = vsel %vm2452, %v2445, %v2449
        %v2454 = vand.u32 2147483647, %v2399
        %vm2455 = vcmp.eq.f32.partialorder %v2454, 8.507059e+37
        %v2456 = vand.u32 %v2399, 2147483648
        %v2457 = vor.u32 1.1754944e-38, %v2456
        %v2458 = vsel %vm2455, %v2457, %v2453
        %v2459 = vmul.f32 %v2366, %v2458
        %v2460 = vrcp.pop %v2402
        %v2461 = vmul.f32 %v2402, %v2460
        %v2462 = vsub.f32 1.0, %v2461
        %v2463 = vmul.f32 %v2460, %v2462
        %v2464 = vadd.f32 %v2460, %v2463
        %vm2465 = vweird.f32 %v2402
        %vm2466 = vweird.f32 %v2460
        %vm2467 = vmor %vm2465, %vm2466
        %v2468 = vsel %vm2467, %v2460, %v2464
        %v2469 = vand.u32 2147483647, %v2402
        %vm2470 = vcmp.eq.f32.partialorder %v2469, 8.507059e+37
        %v2471 = vand.u32 %v2402, 2147483648
        %v2472 = vor.u32 1.1754944e-38, %v2471
        %v2473 = vsel %vm2470, %v2472, %v2468
        %v2474 = vmul.f32 %v2368, %v2473
        %v2475 = vrcp.pop %v2405
        %v2476 = vmul.f32 %v2405, %v2475
        %v2477 = vsub.f32 1.0, %v2476
        %v2478 = vmul.f32 %v2475, %v2477
        %v2479 = vadd.f32 %v2475, %v2478
        %vm2480 = vweird.f32 %v2405
        %vm2481 = vweird.f32 %v2475
        %vm2482 = vmor %vm2480, %vm2481
        %v2483 = vsel %vm2482, %v2475, %v2479
        %v2484 = vand.u32 2147483647, %v2405
        %vm2485 = vcmp.eq.f32.partialorder %v2484, 8.507059e+37
        %v2486 = vand.u32 %v2405, 2147483648
        %v2487 = vor.u32 1.1754944e-38, %v2486
        %v2488 = vsel %vm2485, %v2487, %v2483
        %v2489 = vmul.f32 %v2370, %v2488
        %v2490 = vrcp.pop %v2408
        %v2491 = vmul.f32 %v2408, %v2490
        %v2492 = vsub.f32 1.0, %v2491
        %v2493 = vmul.f32 %v2490, %v2492
        %v2494 = vadd.f32 %v2490, %v2493
        %vm2495 = vweird.f32 %v2408
        %vm2496 = vweird.f32 %v2490
        %vm2497 = vmor %vm2495, %vm2496
        %v2498 = vsel %vm2497, %v2490, %v2494
        %v2499 = vand.u32 2147483647, %v2408
        %vm2500 = vcmp.eq.f32.partialorder %v2499, 8.507059e+37
        %v2501 = vand.u32 %v2408, 2147483648
        %v2502 = vor.u32 1.1754944e-38, %v2501
        %v2503 = vsel %vm2500, %v2502, %v2498
        %v2504 = vmul.f32 %v2372, %v2503
        %v2505 = vrcp.pop %v2411
        %v2506 = vmul.f32 %v2411, %v2505
        %v2507 = vsub.f32 1.0, %v2506
        %v2508 = vmul.f32 %v2505, %v2507
        %v2509 = vadd.f32 %v2505, %v2508
        %vm2510 = vweird.f32 %v2411
        %vm2511 = vweird.f32 %v2505
        %vm2512 = vmor %vm2510, %vm2511
        %v2513 = vsel %vm2512, %v2505, %v2509
        %v2514 = vand.u32 2147483647, %v2411
        %vm2515 = vcmp.eq.f32.partialorder %v2514, 8.507059e+37
        %v2516 = vand.u32 %v2411, 2147483648
        %v2517 = vor.u32 1.1754944e-38, %v2516
        %v2518 = vsel %vm2515, %v2517, %v2513
        %v2519 = vmul.f32 %v2374, %v2518
        %v2520 = vrcp.pop %v2414
        %v2521 = vmul.f32 %v2414, %v2520
        %v2522 = vsub.f32 1.0, %v2521
        %v2523 = vmul.f32 %v2520, %v2522
        %v2524 = vadd.f32 %v2520, %v2523
        %vm2525 = vweird.f32 %v2414
        %vm2526 = vweird.f32 %v2520
        %vm2527 = vmor %vm2525, %vm2526
        %v2528 = vsel %vm2527, %v2520, %v2524
        %v2529 = vand.u32 2147483647, %v2414
        %vm2530 = vcmp.eq.f32.partialorder %v2529, 8.507059e+37
        %v2531 = vand.u32 %v2414, 2147483648
        %v2532 = vor.u32 1.1754944e-38, %v2531
        %v2533 = vsel %vm2530, %v2532, %v2528
        %v2534 = vmul.f32 %v2376, %v2533
        %v2535 = vrcp.pop %v2417
        %v2536 = vmul.f32 %v2417, %v2535
        %v2537 = vsub.f32 1.0, %v2536
        %v2538 = vmul.f32 %v2535, %v2537
        %v2539 = vadd.f32 %v2535, %v2538
        %vm2540 = vweird.f32 %v2417
        %vm2541 = vweird.f32 %v2535
        %vm2542 = vmor %vm2540, %vm2541
        %v2543 = vsel %vm2542, %v2535, %v2539
        %v2544 = vand.u32 2147483647, %v2417
        %vm2545 = vcmp.eq.f32.partialorder %v2544, 8.507059e+37
        %v2546 = vand.u32 %v2417, 2147483648
        %v2547 = vor.u32 1.1754944e-38, %v2546
        %v2548 = vsel %vm2545, %v2547, %v2543
        %v2549 = vmul.f32 %v2378, %v2548
        %v2550 = vrcp.pop %v2420
        %v2551 = vmul.f32 %v2420, %v2550
        %v2552 = vsub.f32 1.0, %v2551
        %v2553 = vmul.f32 %v2550, %v2552
        %v2554 = vadd.f32 %v2550, %v2553
        %vm2555 = vweird.f32 %v2420
        %vm2556 = vweird.f32 %v2550
        %vm2557 = vmor %vm2555, %vm2556
        %v2558 = vsel %vm2557, %v2550, %v2554
        %v2559 = vand.u32 2147483647, %v2420
        %vm2560 = vcmp.eq.f32.partialorder %v2559, 8.507059e+37
        %v2561 = vand.u32 %v2420, 2147483648
        %v2562 = vor.u32 1.1754944e-38, %v2561
        %v2563 = vsel %vm2560, %v2562, %v2558
        %v2564 = vmul.f32 %v2380, %v2563
        %v2565 = vrcp.pop %v2423
        %v2566 = vmul.f32 %v2423, %v2565
        %v2567 = vsub.f32 1.0, %v2566
        %v2568 = vmul.f32 %v2565, %v2567
        %v2569 = vadd.f32 %v2565, %v2568
        %vm2570 = vweird.f32 %v2423
        %vm2571 = vweird.f32 %v2565
        %vm2572 = vmor %vm2570, %vm2571
        %v2573 = vsel %vm2572, %v2565, %v2569
        %v2574 = vand.u32 2147483647, %v2423
        %vm2575 = vcmp.eq.f32.partialorder %v2574, 8.507059e+37
        %v2576 = vand.u32 %v2423, 2147483648
        %v2577 = vor.u32 1.1754944e-38, %v2576
        %v2578 = vsel %vm2575, %v2577, %v2573
        %v2579 = vmul.f32 %v2382, %v2578
        %v2580 = vrcp.pop %v2426
        %v2581 = vmul.f32 %v2426, %v2580
        %v2582 = vsub.f32 1.0, %v2581
        %v2583 = vmul.f32 %v2580, %v2582
        %v2584 = vadd.f32 %v2580, %v2583
        %vm2585 = vweird.f32 %v2426
        %vm2586 = vweird.f32 %v2580
        %vm2587 = vmor %vm2585, %vm2586
        %v2588 = vsel %vm2587, %v2580, %v2584
        %v2589 = vand.u32 2147483647, %v2426
        %vm2590 = vcmp.eq.f32.partialorder %v2589, 8.507059e+37
        %v2591 = vand.u32 %v2426, 2147483648
        %v2592 = vor.u32 1.1754944e-38, %v2591
        %v2593 = vsel %vm2590, %v2592, %v2588
        %v2594 = vmul.f32 %v2384, %v2593
        %v2595 = vrcp.pop %v2429
        %v2596 = vmul.f32 %v2429, %v2595
        %v2597 = vsub.f32 1.0, %v2596
        %v2598 = vmul.f32 %v2595, %v2597
        %v2599 = vadd.f32 %v2595, %v2598
        %vm2600 = vweird.f32 %v2429
        %vm2601 = vweird.f32 %v2595
        %vm2602 = vmor %vm2600, %vm2601
        %v2603 = vsel %vm2602, %v2595, %v2599
        %v2604 = vand.u32 2147483647, %v2429
        %vm2605 = vcmp.eq.f32.partialorder %v2604, 8.507059e+37
        %v2606 = vand.u32 %v2429, 2147483648
        %v2607 = vor.u32 1.1754944e-38, %v2606
        %v2608 = vsel %vm2605, %v2607, %v2603
        %v2609 = vmul.f32 %v2386, %v2608
        %v2610 = vrcp.pop %v2432
        %v2611 = vmul.f32 %v2432, %v2610
        %v2612 = vsub.f32 1.0, %v2611
        %v2613 = vmul.f32 %v2610, %v2612
        %v2614 = vadd.f32 %v2610, %v2613
        %vm2615 = vweird.f32 %v2432
        %vm2616 = vweird.f32 %v2610
        %vm2617 = vmor %vm2615, %vm2616
        %v2618 = vsel %vm2617, %v2610, %v2614
        %v2619 = vand.u32 2147483647, %v2432
        %vm2620 = vcmp.eq.f32.partialorder %v2619, 8.507059e+37
        %v2621 = vand.u32 %v2432, 2147483648
        %v2622 = vor.u32 1.1754944e-38, %v2621
        %v2623 = vsel %vm2620, %v2622, %v2618
        %v2624 = vmul.f32 %v2388, %v2623
        %v2625 = vrcp.pop %v2435
        %v2626 = vmul.f32 %v2435, %v2625
        %v2627 = vsub.f32 1.0, %v2626
        %v2628 = vmul.f32 %v2625, %v2627
        %v2629 = vadd.f32 %v2625, %v2628
        %vm2630 = vweird.f32 %v2435
        %vm2631 = vweird.f32 %v2625
        %vm2632 = vmor %vm2630, %vm2631
        %v2633 = vsel %vm2632, %v2625, %v2629
        %v2634 = vand.u32 2147483647, %v2435
        %vm2635 = vcmp.eq.f32.partialorder %v2634, 8.507059e+37
        %v2636 = vand.u32 %v2435, 2147483648
        %v2637 = vor.u32 1.1754944e-38, %v2636
        %v2638 = vsel %vm2635, %v2637, %v2633
        %v2639 = vmul.f32 %v2390, %v2638
        %v2640 = vrcp.pop %v2438
        %v2641 = vmul.f32 %v2438, %v2640
        %v2642 = vsub.f32 1.0, %v2641
        %v2643 = vmul.f32 %v2640, %v2642
        %v2644 = vadd.f32 %v2640, %v2643
        %vm2645 = vweird.f32 %v2438
        %vm2646 = vweird.f32 %v2640
        %vm2647 = vmor %vm2645, %vm2646
        %v2648 = vsel %vm2647, %v2640, %v2644
        %v2649 = vand.u32 2147483647, %v2438
        %vm2650 = vcmp.eq.f32.partialorder %v2649, 8.507059e+37
        %v2651 = vand.u32 %v2438, 2147483648
        %v2652 = vor.u32 1.1754944e-38, %v2651
        %v2653 = vsel %vm2650, %v2652, %v2648
        %v2654 = vmul.f32 %v2392, %v2653
        %v2655 = vrcp.pop %v2441
        %v2656 = vmul.f32 %v2441, %v2655
        %v2657 = vsub.f32 1.0, %v2656
        %v2658 = vmul.f32 %v2655, %v2657
        %v2659 = vadd.f32 %v2655, %v2658
        %vm2660 = vweird.f32 %v2441
        %vm2661 = vweird.f32 %v2655
        %vm2662 = vmor %vm2660, %vm2661
        %v2663 = vsel %vm2662, %v2655, %v2659
        %v2664 = vand.u32 2147483647, %v2441
        %vm2665 = vcmp.eq.f32.partialorder %v2664, 8.507059e+37
        %v2666 = vand.u32 %v2441, 2147483648
        %v2667 = vor.u32 1.1754944e-38, %v2666
        %v2668 = vsel %vm2665, %v2667, %v2663
        %v2669 = vmul.f32 %v2394, %v2668
        %v2670 = vrcp.pop %v2444
        %v2671 = vmul.f32 %v2444, %v2670
        %v2672 = vsub.f32 1.0, %v2671
        %v2673 = vmul.f32 %v2670, %v2672
        %v2674 = vadd.f32 %v2670, %v2673
        %vm2675 = vweird.f32 %v2444
        %vm2676 = vweird.f32 %v2670
        %vm2677 = vmor %vm2675, %vm2676
        %v2678 = vsel %vm2677, %v2670, %v2674
        %v2679 = vand.u32 2147483647, %v2444
        %vm2680 = vcmp.eq.f32.partialorder %v2679, 8.507059e+37
        %v2681 = vand.u32 %v2444, 2147483648
        %v2682 = vor.u32 1.1754944e-38, %v2681
        %v2683 = vsel %vm2680, %v2682, %v2678
        %v2684 = vmul.f32 %v2396, %v2683
        %v2686 = vsel %vm998, %v2459, 0
        %2688 = vmatpush.msra.mxu0 0.0
        %2689 = vmatpush.msra.mxu0 0.0
        %2690 = vmatpush.msra.mxu0 0.0
        %2691 = vmatpush.msra.mxu0 0.0
        %2692 = vmatpush.msra.mxu0 0.0
        %2693 = vmatpush.msra.mxu0 0.0
        %2694 = vmatpush.msra.mxu0 0.0
        %2695 = vmatpush.msra.mxu0 0.0
        %2696 = vmatpush.msra.mxu0 0.0
        %2697 = vmatpush.msra.mxu0 0.0
        %2698 = vmatpush.msra.mxu0 0.0
        %2699 = vmatpush.msra.mxu0 0.0
        %2700 = vmatpush.msra.mxu0 0.0
        %2701 = vmatpush.msra.mxu0 0.0
        %2702 = vmatpush.msra.mxu0 0.0
        %2703 = vmatpush.msra.mxu0 %v1822
        %2704 = vmatmul.f32.gmra.mxu0 %v2686
        %v2705 = vpop.f32.mrf.mxu0
        %v2706 = vadd.f32 0.0, %v2705
        %2707 = vdwg.mxu0
        %v2709 = vsel %vm998, %v2474, 0
        %2711 = vmatpush.msra.mxu0 0.0
        %2712 = vmatpush.msra.mxu0 0.0
        %2713 = vmatpush.msra.mxu0 0.0
        %2714 = vmatpush.msra.mxu0 0.0
        %2715 = vmatpush.msra.mxu0 0.0
        %2716 = vmatpush.msra.mxu0 0.0
        %2717 = vmatpush.msra.mxu0 0.0
        %2718 = vmatpush.msra.mxu0 0.0
        %2719 = vmatpush.msra.mxu0 0.0
        %2720 = vmatpush.msra.mxu0 0.0
        %2721 = vmatpush.msra.mxu0 0.0
        %2722 = vmatpush.msra.mxu0 0.0
        %2723 = vmatpush.msra.mxu0 0.0
        %2724 = vmatpush.msra.mxu0 0.0
        %2725 = vmatpush.msra.mxu0 0.0
        %2726 = vmatpush.msra.mxu0 %v1825
        %2727 = vmatmul.f32.gmra.mxu0 %v2709
        %v2728 = vpop.f32.mrf.mxu0
        %v2729 = vadd.f32 0.0, %v2728
        %2730 = vdwg.mxu0
        %v2732 = vsel %vm998, %v2489, 0
        %2734 = vmatpush.msra.mxu0 0.0
        %2735 = vmatpush.msra.mxu0 0.0
        %2736 = vmatpush.msra.mxu0 0.0
        %2737 = vmatpush.msra.mxu0 0.0
        %2738 = vmatpush.msra.mxu0 0.0
        %2739 = vmatpush.msra.mxu0 0.0
        %2740 = vmatpush.msra.mxu0 0.0
        %2741 = vmatpush.msra.mxu0 0.0
        %2742 = vmatpush.msra.mxu0 0.0
        %2743 = vmatpush.msra.mxu0 0.0
        %2744 = vmatpush.msra.mxu0 0.0
        %2745 = vmatpush.msra.mxu0 0.0
        %2746 = vmatpush.msra.mxu0 0.0
        %2747 = vmatpush.msra.mxu0 0.0
        %2748 = vmatpush.msra.mxu0 0.0
        %2749 = vmatpush.msra.mxu0 %v1828
        %2750 = vmatmul.f32.gmra.mxu0 %v2732
        %v2751 = vpop.f32.mrf.mxu0
        %v2752 = vadd.f32 0.0, %v2751
        %2753 = vdwg.mxu0
        %v2755 = vsel %vm998, %v2504, 0
        %2757 = vmatpush.msra.mxu0 0.0
        %2758 = vmatpush.msra.mxu0 0.0
        %2759 = vmatpush.msra.mxu0 0.0
        %2760 = vmatpush.msra.mxu0 0.0
        %2761 = vmatpush.msra.mxu0 0.0
        %2762 = vmatpush.msra.mxu0 0.0
        %2763 = vmatpush.msra.mxu0 0.0
        %2764 = vmatpush.msra.mxu0 0.0
        %2765 = vmatpush.msra.mxu0 0.0
        %2766 = vmatpush.msra.mxu0 0.0
        %2767 = vmatpush.msra.mxu0 0.0
        %2768 = vmatpush.msra.mxu0 0.0
        %2769 = vmatpush.msra.mxu0 0.0
        %2770 = vmatpush.msra.mxu0 0.0
        %2771 = vmatpush.msra.mxu0 0.0
        %2772 = vmatpush.msra.mxu0 %v1831
        %2773 = vmatmul.f32.gmra.mxu0 %v2755
        %v2774 = vpop.f32.mrf.mxu0
        %v2775 = vadd.f32 0.0, %v2774
        %2776 = vdwg.mxu0
        %v2778 = vsel %vm998, %v2519, 0
        %2780 = vmatpush.msra.mxu0 0.0
        %2781 = vmatpush.msra.mxu0 0.0
        %2782 = vmatpush.msra.mxu0 0.0
        %2783 = vmatpush.msra.mxu0 0.0
        %2784 = vmatpush.msra.mxu0 0.0
        %2785 = vmatpush.msra.mxu0 0.0
        %2786 = vmatpush.msra.mxu0 0.0
        %2787 = vmatpush.msra.mxu0 0.0
        %2788 = vmatpush.msra.mxu0 0.0
        %2789 = vmatpush.msra.mxu0 0.0
        %2790 = vmatpush.msra.mxu0 0.0
        %2791 = vmatpush.msra.mxu0 0.0
        %2792 = vmatpush.msra.mxu0 0.0
        %2793 = vmatpush.msra.mxu0 0.0
        %2794 = vmatpush.msra.mxu0 0.0
        %2795 = vmatpush.msra.mxu0 %v1834
        %2796 = vmatmul.f32.gmra.mxu0 %v2778
        %v2797 = vpop.f32.mrf.mxu0
        %v2798 = vadd.f32 0.0, %v2797
        %2799 = vdwg.mxu0
        %v2801 = vsel %vm998, %v2534, 0
        %2803 = vmatpush.msra.mxu0 0.0
        %2804 = vmatpush.msra.mxu0 0.0
        %2805 = vmatpush.msra.mxu0 0.0
        %2806 = vmatpush.msra.mxu0 0.0
        %2807 = vmatpush.msra.mxu0 0.0
        %2808 = vmatpush.msra.mxu0 0.0
        %2809 = vmatpush.msra.mxu0 0.0
        %2810 = vmatpush.msra.mxu0 0.0
        %2811 = vmatpush.msra.mxu0 0.0
        %2812 = vmatpush.msra.mxu0 0.0
        %2813 = vmatpush.msra.mxu0 0.0
        %2814 = vmatpush.msra.mxu0 0.0
        %2815 = vmatpush.msra.mxu0 0.0
        %2816 = vmatpush.msra.mxu0 0.0
        %2817 = vmatpush.msra.mxu0 0.0
        %2818 = vmatpush.msra.mxu0 %v1837
        %2819 = vmatmul.f32.gmra.mxu0 %v2801
        %v2820 = vpop.f32.mrf.mxu0
        %v2821 = vadd.f32 0.0, %v2820
        %2822 = vdwg.mxu0
        %v2824 = vsel %vm998, %v2549, 0
        %2826 = vmatpush.msra.mxu0 0.0
        %2827 = vmatpush.msra.mxu0 0.0
        %2828 = vmatpush.msra.mxu0 0.0
        %2829 = vmatpush.msra.mxu0 0.0
        %2830 = vmatpush.msra.mxu0 0.0
        %2831 = vmatpush.msra.mxu0 0.0
        %2832 = vmatpush.msra.mxu0 0.0
        %2833 = vmatpush.msra.mxu0 0.0
        %2834 = vmatpush.msra.mxu0 0.0
        %2835 = vmatpush.msra.mxu0 0.0
        %2836 = vmatpush.msra.mxu0 0.0
        %2837 = vmatpush.msra.mxu0 0.0
        %2838 = vmatpush.msra.mxu0 0.0
        %2839 = vmatpush.msra.mxu0 0.0
        %2840 = vmatpush.msra.mxu0 0.0
        %2841 = vmatpush.msra.mxu0 %v1840
        %2842 = vmatmul.f32.gmra.mxu0 %v2824
        %v2843 = vpop.f32.mrf.mxu0
        %v2844 = vadd.f32 0.0, %v2843
        %2845 = vdwg.mxu0
        %v2847 = vsel %vm998, %v2564, 0
        %2849 = vmatpush.msra.mxu0 0.0
        %2850 = vmatpush.msra.mxu0 0.0
        %2851 = vmatpush.msra.mxu0 0.0
        %2852 = vmatpush.msra.mxu0 0.0
        %2853 = vmatpush.msra.mxu0 0.0
        %2854 = vmatpush.msra.mxu0 0.0
        %2855 = vmatpush.msra.mxu0 0.0
        %2856 = vmatpush.msra.mxu0 0.0
        %2857 = vmatpush.msra.mxu0 0.0
        %2858 = vmatpush.msra.mxu0 0.0
        %2859 = vmatpush.msra.mxu0 0.0
        %2860 = vmatpush.msra.mxu0 0.0
        %2861 = vmatpush.msra.mxu0 0.0
        %2862 = vmatpush.msra.mxu0 0.0
        %2863 = vmatpush.msra.mxu0 0.0
        %2864 = vmatpush.msra.mxu0 %v1843
        %2865 = vmatmul.f32.gmra.mxu0 %v2847
        %v2866 = vpop.f32.mrf.mxu0
        %v2867 = vadd.f32 0.0, %v2866
        %2868 = vdwg.mxu0
        %v2870 = vsel %vm998, %v2579, 0
        %2872 = vmatpush.msra.mxu0 0.0
        %2873 = vmatpush.msra.mxu0 0.0
        %2874 = vmatpush.msra.mxu0 0.0
        %2875 = vmatpush.msra.mxu0 0.0
        %2876 = vmatpush.msra.mxu0 0.0
        %2877 = vmatpush.msra.mxu0 0.0
        %2878 = vmatpush.msra.mxu0 0.0
        %2879 = vmatpush.msra.mxu0 0.0
        %2880 = vmatpush.msra.mxu0 0.0
        %2881 = vmatpush.msra.mxu0 0.0
        %2882 = vmatpush.msra.mxu0 0.0
        %2883 = vmatpush.msra.mxu0 0.0
        %2884 = vmatpush.msra.mxu0 0.0
        %2885 = vmatpush.msra.mxu0 0.0
        %2886 = vmatpush.msra.mxu0 0.0
        %2887 = vmatpush.msra.mxu0 %v1846
        %2888 = vmatmul.f32.gmra.mxu0 %v2870
        %v2889 = vpop.f32.mrf.mxu0
        %v2890 = vadd.f32 0.0, %v2889
        %2891 = vdwg.mxu0
        %v2893 = vsel %vm998, %v2594, 0
        %2895 = vmatpush.msra.mxu0 0.0
        %2896 = vmatpush.msra.mxu0 0.0
        %2897 = vmatpush.msra.mxu0 0.0
        %2898 = vmatpush.msra.mxu0 0.0
        %2899 = vmatpush.msra.mxu0 0.0
        %2900 = vmatpush.msra.mxu0 0.0
        %2901 = vmatpush.msra.mxu0 0.0
        %2902 = vmatpush.msra.mxu0 0.0
        %2903 = vmatpush.msra.mxu0 0.0
        %2904 = vmatpush.msra.mxu0 0.0
        %2905 = vmatpush.msra.mxu0 0.0
        %2906 = vmatpush.msra.mxu0 0.0
        %2907 = vmatpush.msra.mxu0 0.0
        %2908 = vmatpush.msra.mxu0 0.0
        %2909 = vmatpush.msra.mxu0 0.0
        %2910 = vmatpush.msra.mxu0 %v1849
        %2911 = vmatmul.f32.gmra.mxu0 %v2893
        %v2912 = vpop.f32.mrf.mxu0
        %v2913 = vadd.f32 0.0, %v2912
        %2914 = vdwg.mxu0
        %v2916 = vsel %vm998, %v2609, 0
        %2918 = vmatpush.msra.mxu0 0.0
        %2919 = vmatpush.msra.mxu0 0.0
        %2920 = vmatpush.msra.mxu0 0.0
        %2921 = vmatpush.msra.mxu0 0.0
        %2922 = vmatpush.msra.mxu0 0.0
        %2923 = vmatpush.msra.mxu0 0.0
        %2924 = vmatpush.msra.mxu0 0.0
        %2925 = vmatpush.msra.mxu0 0.0
        %2926 = vmatpush.msra.mxu0 0.0
        %2927 = vmatpush.msra.mxu0 0.0
        %2928 = vmatpush.msra.mxu0 0.0
        %2929 = vmatpush.msra.mxu0 0.0
        %2930 = vmatpush.msra.mxu0 0.0
        %2931 = vmatpush.msra.mxu0 0.0
        %2932 = vmatpush.msra.mxu0 0.0
        %2933 = vmatpush.msra.mxu0 %v1852
        %2934 = vmatmul.f32.gmra.mxu0 %v2916
        %v2935 = vpop.f32.mrf.mxu0
        %v2936 = vadd.f32 0.0, %v2935
        %2937 = vdwg.mxu0
        %v2939 = vsel %vm998, %v2624, 0
        %2941 = vmatpush.msra.mxu0 0.0
        %2942 = vmatpush.msra.mxu0 0.0
        %2943 = vmatpush.msra.mxu0 0.0
        %2944 = vmatpush.msra.mxu0 0.0
        %2945 = vmatpush.msra.mxu0 0.0
        %2946 = vmatpush.msra.mxu0 0.0
        %2947 = vmatpush.msra.mxu0 0.0
        %2948 = vmatpush.msra.mxu0 0.0
        %2949 = vmatpush.msra.mxu0 0.0
        %2950 = vmatpush.msra.mxu0 0.0
        %2951 = vmatpush.msra.mxu0 0.0
        %2952 = vmatpush.msra.mxu0 0.0
        %2953 = vmatpush.msra.mxu0 0.0
        %2954 = vmatpush.msra.mxu0 0.0
        %2955 = vmatpush.msra.mxu0 0.0
        %2956 = vmatpush.msra.mxu0 %v1855
        %2957 = vmatmul.f32.gmra.mxu0 %v2939
        %v2958 = vpop.f32.mrf.mxu0
        %v2959 = vadd.f32 0.0, %v2958
        %2960 = vdwg.mxu0
        %v2962 = vsel %vm998, %v2639, 0
        %2964 = vmatpush.msra.mxu0 0.0
        %2965 = vmatpush.msra.mxu0 0.0
        %2966 = vmatpush.msra.mxu0 0.0
        %2967 = vmatpush.msra.mxu0 0.0
        %2968 = vmatpush.msra.mxu0 0.0
        %2969 = vmatpush.msra.mxu0 0.0
        %2970 = vmatpush.msra.mxu0 0.0
        %2971 = vmatpush.msra.mxu0 0.0
        %2972 = vmatpush.msra.mxu0 0.0
        %2973 = vmatpush.msra.mxu0 0.0
        %2974 = vmatpush.msra.mxu0 0.0
        %2975 = vmatpush.msra.mxu0 0.0
        %2976 = vmatpush.msra.mxu0 0.0
        %2977 = vmatpush.msra.mxu0 0.0
        %2978 = vmatpush.msra.mxu0 0.0
        %2979 = vmatpush.msra.mxu0 %v1858
        %2980 = vmatmul.f32.gmra.mxu0 %v2962
        %v2981 = vpop.f32.mrf.mxu0
        %v2982 = vadd.f32 0.0, %v2981
        %2983 = vdwg.mxu0
        %v2985 = vsel %vm998, %v2654, 0
        %2987 = vmatpush.msra.mxu0 0.0
        %2988 = vmatpush.msra.mxu0 0.0
        %2989 = vmatpush.msra.mxu0 0.0
        %2990 = vmatpush.msra.mxu0 0.0
        %2991 = vmatpush.msra.mxu0 0.0
        %2992 = vmatpush.msra.mxu0 0.0
        %2993 = vmatpush.msra.mxu0 0.0
        %2994 = vmatpush.msra.mxu0 0.0
        %2995 = vmatpush.msra.mxu0 0.0
        %2996 = vmatpush.msra.mxu0 0.0
        %2997 = vmatpush.msra.mxu0 0.0
        %2998 = vmatpush.msra.mxu0 0.0
        %2999 = vmatpush.msra.mxu0 0.0
        %3000 = vmatpush.msra.mxu0 0.0
        %3001 = vmatpush.msra.mxu0 0.0
        %3002 = vmatpush.msra.mxu0 %v1861
        %3003 = vmatmul.f32.gmra.mxu0 %v2985
        %v3004 = vpop.f32.mrf.mxu0
        %v3005 = vadd.f32 0.0, %v3004
        %3006 = vdwg.mxu0
        %v3008 = vsel %vm998, %v2669, 0
        %3010 = vmatpush.msra.mxu0 0.0
        %3011 = vmatpush.msra.mxu0 0.0
        %3012 = vmatpush.msra.mxu0 0.0
        %3013 = vmatpush.msra.mxu0 0.0
        %3014 = vmatpush.msra.mxu0 0.0
        %3015 = vmatpush.msra.mxu0 0.0
        %3016 = vmatpush.msra.mxu0 0.0
        %3017 = vmatpush.msra.mxu0 0.0
        %3018 = vmatpush.msra.mxu0 0.0
        %3019 = vmatpush.msra.mxu0 0.0
        %3020 = vmatpush.msra.mxu0 0.0
        %3021 = vmatpush.msra.mxu0 0.0
        %3022 = vmatpush.msra.mxu0 0.0
        %3023 = vmatpush.msra.mxu0 0.0
        %3024 = vmatpush.msra.mxu0 0.0
        %3025 = vmatpush.msra.mxu0 %v1864
        %3026 = vmatmul.f32.gmra.mxu0 %v3008
        %v3027 = vpop.f32.mrf.mxu0
        %v3028 = vadd.f32 0.0, %v3027
        %3029 = vdwg.mxu0
        %v3031 = vsel %vm998, %v2684, 0
        %3033 = vmatpush.msra.mxu0 0.0
        %3034 = vmatpush.msra.mxu0 0.0
        %3035 = vmatpush.msra.mxu0 0.0
        %3036 = vmatpush.msra.mxu0 0.0
        %3037 = vmatpush.msra.mxu0 0.0
        %3038 = vmatpush.msra.mxu0 0.0
        %3039 = vmatpush.msra.mxu0 0.0
        %3040 = vmatpush.msra.mxu0 0.0
        %3041 = vmatpush.msra.mxu0 0.0
        %3042 = vmatpush.msra.mxu0 0.0
        %3043 = vmatpush.msra.mxu0 0.0
        %3044 = vmatpush.msra.mxu0 0.0
        %3045 = vmatpush.msra.mxu0 0.0
        %3046 = vmatpush.msra.mxu0 0.0
        %3047 = vmatpush.msra.mxu0 0.0
        %3048 = vmatpush.msra.mxu0 %v1867
        %3049 = vmatmul.f32.gmra.mxu0 %v3031
        %v3050 = vpop.f32.mrf.mxu0
        %v3051 = vadd.f32 0.0, %v3050
        %3052 = vdwg.mxu0
        %v3069 = vrot.slane %v2729, 7
        %vm3070 = vcmask 1041409
        %v3071 = vsel %vm3070, %v3069, %v2706
        %v3072 = vrot.slane %v2752, 6
        %vm3073 = vcmask 1042434
        %v3074 = vsel %vm3073, %v3072, %v3071
        %v3075 = vrot.slane %v2775, 5
        %vm3076 = vcmask 1043459
        %v3077 = vsel %vm3076, %v3075, %v3074
        %v3078 = vrot.slane %v2798, 4
        %vm3079 = vcmask 1044484
        %v3080 = vsel %vm3079, %v3078, %v3077
        %v3081 = vrot.slane %v2821, 3
        %vm3082 = vcmask 1045509
        %v3083 = vsel %vm3082, %v3081, %v3080
        %v3084 = vrot.slane %v2844, 2
        %vm3085 = vcmask 1046534
        %v3086 = vsel %vm3085, %v3084, %v3083
        %v3087 = vrot.slane %v2867, 1
        %vm3088 = vcmask 1047559
        %v3089 = vsel %vm3088, %v3087, %v3086
        %v3090 = vrot.slane %v2913, 7
        %v3091 = vsel %vm3070, %v3090, %v2890
        %v3092 = vrot.slane %v2936, 6
        %v3093 = vsel %vm3073, %v3092, %v3091
        %v3094 = vrot.slane %v2959, 5
        %v3095 = vsel %vm3076, %v3094, %v3093
        %v3096 = vrot.slane %v2982, 4
        %v3097 = vsel %vm3079, %v3096, %v3095
        %v3098 = vrot.slane %v3005, 3
        %v3099 = vsel %vm3082, %v3098, %v3097
        %v3100 = vrot.slane %v3028, 2
        %v3101 = vsel %vm3085, %v3100, %v3099
        %v3102 = vrot.slane %v3051, 1
        %v3103 = vsel %vm3088, %v3102, %v3101
        %3106 = vxpose.xlu0.b32.start [1/16] %v3089, 128
        %3107 = vxpose.xlu0.b32.cont [2/16] %v3103, 128
        %3108 = vxpose.xlu0.b32.cont [3/16] 0.0, 128
        %3109 = vxpose.xlu0.b32.cont [4/16] 0.0, 128
        %3110 = vxpose.xlu0.b32.cont [5/16] 0.0, 128
        %3111 = vxpose.xlu0.b32.cont [6/16] 0.0, 128
        %3112 = vxpose.xlu0.b32.cont [7/16] 0.0, 128
        %3113 = vxpose.xlu0.b32.cont [8/16] 0.0, 128
        %3114 = vxpose.xlu0.b32.cont [9/16] 0.0, 128
        %3115 = vxpose.xlu0.b32.cont [10/16] 0.0, 128
        %3116 = vxpose.xlu0.b32.cont [11/16] 0.0, 128
        %3117 = vxpose.xlu0.b32.cont [12/16] 0.0, 128
        %3118 = vxpose.xlu0.b32.cont [13/16] 0.0, 128
        %3119 = vxpose.xlu0.b32.cont [14/16] 0.0, 128
        %3120 = vxpose.xlu0.b32.cont [15/16] 0.0, 128
        %3121 = vxpose.xlu0.b32.end [16/16] 0.0, 128
        %v3122 = vpop.trf.xlu0
        %v3123 = vpop.trf.xlu0
        %v3124 = vpop.trf.xlu0
        %v3125 = vpop.trf.xlu0
        %v3126 = vpop.trf.xlu0
        %v3127 = vpop.trf.xlu0
        %v3128 = vpop.trf.xlu0
        %v3129 = vpop.trf.xlu0
        %v3130 = vpop.trf.xlu0
        %v3131 = vpop.trf.xlu0
        %v3132 = vpop.trf.xlu0
        %v3133 = vpop.trf.xlu0
        %v3134 = vpop.trf.xlu0
        %v3135 = vpop.trf.xlu0
        %v3136 = vpop.trf.xlu0
        %v3137 = vpop.trf.xlu0
        %3138 = vst.msk [vmem:[#allocation2] sm:$0xff] %vm781, %v3122
        %v3139 = vrot.slane %v2706, 1
        %v3140 = vsel %vm3070, %v2729, %v3139
        %v3141 = vrot.slane %v2752, 7
        %v3142 = vsel %vm3073, %v3141, %v3140
        %v3143 = vrot.slane %v2775, 6
        %v3144 = vsel %vm3076, %v3143, %v3142
        %v3145 = vrot.slane %v2798, 5
        %v3146 = vsel %vm3079, %v3145, %v3144
        %v3147 = vrot.slane %v2821, 4
        %v3148 = vsel %vm3082, %v3147, %v3146
        %v3149 = vrot.slane %v2844, 3
        %v3150 = vsel %vm3085, %v3149, %v3148
        %v3151 = vrot.slane %v2867, 2
        %v3152 = vsel %vm3088, %v3151, %v3150
        %v3153 = vrot.slane %v2890, 1
        %v3154 = vsel %vm3070, %v2913, %v3153
        %v3155 = vrot.slane %v2936, 7
        %v3156 = vsel %vm3073, %v3155, %v3154
        %v3157 = vrot.slane %v2959, 6
        %v3158 = vsel %vm3076, %v3157, %v3156
        %v3159 = vrot.slane %v2982, 5
        %v3160 = vsel %vm3079, %v3159, %v3158
        %v3161 = vrot.slane %v3005, 4
        %v3162 = vsel %vm3082, %v3161, %v3160
        %v3163 = vrot.slane %v3028, 3
        %v3164 = vsel %vm3085, %v3163, %v3162
        %v3165 = vrot.slane %v3051, 2
        %v3166 = vsel %vm3088, %v3165, %v3164
        %3169 = vxpose.xlu0.b32.start [1/16] %v3152, 128
        %3170 = vxpose.xlu0.b32.cont [2/16] %v3166, 128
        %3171 = vxpose.xlu0.b32.cont [3/16] 0.0, 128
        %3172 = vxpose.xlu0.b32.cont [4/16] 0.0, 128
        %3173 = vxpose.xlu0.b32.cont [5/16] 0.0, 128
        %3174 = vxpose.xlu0.b32.cont [6/16] 0.0, 128
        %3175 = vxpose.xlu0.b32.cont [7/16] 0.0, 128
        %3176 = vxpose.xlu0.b32.cont [8/16] 0.0, 128
        %3177 = vxpose.xlu0.b32.cont [9/16] 0.0, 128
        %3178 = vxpose.xlu0.b32.cont [10/16] 0.0, 128
        %3179 = vxpose.xlu0.b32.cont [11/16] 0.0, 128
        %3180 = vxpose.xlu0.b32.cont [12/16] 0.0, 128
        %3181 = vxpose.xlu0.b32.cont [13/16] 0.0, 128
        %3182 = vxpose.xlu0.b32.cont [14/16] 0.0, 128
        %3183 = vxpose.xlu0.b32.cont [15/16] 0.0, 128
        %3184 = vxpose.xlu0.b32.end [16/16] 0.0, 128
        %v3185 = vpop.trf.xlu0
        %v3186 = vpop.trf.xlu0
        %v3187 = vpop.trf.xlu0
        %v3188 = vpop.trf.xlu0
        %v3189 = vpop.trf.xlu0
        %v3190 = vpop.trf.xlu0
        %v3191 = vpop.trf.xlu0
        %v3192 = vpop.trf.xlu0
        %v3193 = vpop.trf.xlu0
        %v3194 = vpop.trf.xlu0
        %v3195 = vpop.trf.xlu0
        %v3196 = vpop.trf.xlu0
        %v3197 = vpop.trf.xlu0
        %v3198 = vpop.trf.xlu0
        %v3199 = vpop.trf.xlu0
        %v3200 = vpop.trf.xlu0
        %3201 = vst.msk [vmem:[#allocation2 + $0x8] sm:$0xff] %vm781, %v3185
        %v3202 = vrot.slane %v2706, 2
        %v3203 = vrot.slane %v2729, 1
        %v3204 = vsel %vm3070, %v3203, %v3202
        %v3205 = vsel %vm3073, %v2752, %v3204
        %v3206 = vrot.slane %v2775, 7
        %v3207 = vsel %vm3076, %v3206, %v3205
        %v3208 = vrot.slane %v2798, 6
        %v3209 = vsel %vm3079, %v3208, %v3207
        %v3210 = vrot.slane %v2821, 5
        %v3211 = vsel %vm3082, %v3210, %v3209
        %v3212 = vrot.slane %v2844, 4
        %v3213 = vsel %vm3085, %v3212, %v3211
        %v3214 = vrot.slane %v2867, 3
        %v3215 = vsel %vm3088, %v3214, %v3213
        %v3216 = vrot.slane %v2890, 2
        %v3217 = vrot.slane %v2913, 1
        %v3218 = vsel %vm3070, %v3217, %v3216
        %v3219 = vsel %vm3073, %v2936, %v3218
        %v3220 = vrot.slane %v2959, 7
        %v3221 = vsel %vm3076, %v3220, %v3219
        %v3222 = vrot.slane %v2982, 6
        %v3223 = vsel %vm3079, %v3222, %v3221
        %v3224 = vrot.slane %v3005, 5
        %v3225 = vsel %vm3082, %v3224, %v3223
        %v3226 = vrot.slane %v3028, 4
        %v3227 = vsel %vm3085, %v3226, %v3225
        %v3228 = vrot.slane %v3051, 3
        %v3229 = vsel %vm3088, %v3228, %v3227
        %3232 = vxpose.xlu0.b32.start [1/16] %v3215, 128
        %3233 = vxpose.xlu0.b32.cont [2/16] %v3229, 128
        %3234 = vxpose.xlu0.b32.cont [3/16] 0.0, 128
        %3235 = vxpose.xlu0.b32.cont [4/16] 0.0, 128
        %3236 = vxpose.xlu0.b32.cont [5/16] 0.0, 128
        %3237 = vxpose.xlu0.b32.cont [6/16] 0.0, 128
        %3238 = vxpose.xlu0.b32.cont [7/16] 0.0, 128
        %3239 = vxpose.xlu0.b32.cont [8/16] 0.0, 128
        %3240 = vxpose.xlu0.b32.cont [9/16] 0.0, 128
        %3241 = vxpose.xlu0.b32.cont [10/16] 0.0, 128
        %3242 = vxpose.xlu0.b32.cont [11/16] 0.0, 128
        %3243 = vxpose.xlu0.b32.cont [12/16] 0.0, 128
        %3244 = vxpose.xlu0.b32.cont [13/16] 0.0, 128
        %3245 = vxpose.xlu0.b32.cont [14/16] 0.0, 128
        %3246 = vxpose.xlu0.b32.cont [15/16] 0.0, 128
        %3247 = vxpose.xlu0.b32.end [16/16] 0.0, 128
        %v3248 = vpop.trf.xlu0
        %v3249 = vpop.trf.xlu0
        %v3250 = vpop.trf.xlu0
        %v3251 = vpop.trf.xlu0
        %v3252 = vpop.trf.xlu0
        %v3253 = vpop.trf.xlu0
        %v3254 = vpop.trf.xlu0
        %v3255 = vpop.trf.xlu0
        %v3256 = vpop.trf.xlu0
        %v3257 = vpop.trf.xlu0
        %v3258 = vpop.trf.xlu0
        %v3259 = vpop.trf.xlu0
        %v3260 = vpop.trf.xlu0
        %v3261 = vpop.trf.xlu0
        %v3262 = vpop.trf.xlu0
        %v3263 = vpop.trf.xlu0
        %3264 = vst.msk [vmem:[#allocation2 + $0x10] sm:$0xff] %vm781, %v3248
        %v3265 = vrot.slane %v2706, 3
        %v3266 = vrot.slane %v2729, 2
        %v3267 = vsel %vm3070, %v3266, %v3265
        %v3268 = vrot.slane %v2752, 1
        %v3269 = vsel %vm3073, %v3268, %v3267
        %v3270 = vsel %vm3076, %v2775, %v3269
        %v3271 = vrot.slane %v2798, 7
        %v3272 = vsel %vm3079, %v3271, %v3270
        %v3273 = vrot.slane %v2821, 6
        %v3274 = vsel %vm3082, %v3273, %v3272
        %v3275 = vrot.slane %v2844, 5
        %v3276 = vsel %vm3085, %v3275, %v3274
        %v3277 = vrot.slane %v2867, 4
        %v3278 = vsel %vm3088, %v3277, %v3276
        %v3279 = vrot.slane %v2890, 3
        %v3280 = vrot.slane %v2913, 2
        %v3281 = vsel %vm3070, %v3280, %v3279
        %v3282 = vrot.slane %v2936, 1
        %v3283 = vsel %vm3073, %v3282, %v3281
        %v3284 = vsel %vm3076, %v2959, %v3283
        %v3285 = vrot.slane %v2982, 7
        %v3286 = vsel %vm3079, %v3285, %v3284
        %v3287 = vrot.slane %v3005, 6
        %v3288 = vsel %vm3082, %v3287, %v3286
        %v3289 = vrot.slane %v3028, 5
        %v3290 = vsel %vm3085, %v3289, %v3288
        %v3291 = vrot.slane %v3051, 4
        %v3292 = vsel %vm3088, %v3291, %v3290
        %3295 = vxpose.xlu0.b32.start [1/16] %v3278, 128
        %3296 = vxpose.xlu0.b32.cont [2/16] %v3292, 128
        %3297 = vxpose.xlu0.b32.cont [3/16] 0.0, 128
        %3298 = vxpose.xlu0.b32.cont [4/16] 0.0, 128
        %3299 = vxpose.xlu0.b32.cont [5/16] 0.0, 128
        %3300 = vxpose.xlu0.b32.cont [6/16] 0.0, 128
        %3301 = vxpose.xlu0.b32.cont [7/16] 0.0, 128
        %3302 = vxpose.xlu0.b32.cont [8/16] 0.0, 128
        %3303 = vxpose.xlu0.b32.cont [9/16] 0.0, 128
        %3304 = vxpose.xlu0.b32.cont [10/16] 0.0, 128
        %3305 = vxpose.xlu0.b32.cont [11/16] 0.0, 128
        %3306 = vxpose.xlu0.b32.cont [12/16] 0.0, 128
        %3307 = vxpose.xlu0.b32.cont [13/16] 0.0, 128
        %3308 = vxpose.xlu0.b32.cont [14/16] 0.0, 128
        %3309 = vxpose.xlu0.b32.cont [15/16] 0.0, 128
        %3310 = vxpose.xlu0.b32.end [16/16] 0.0, 128
        %v3311 = vpop.trf.xlu0
        %v3312 = vpop.trf.xlu0
        %v3313 = vpop.trf.xlu0
        %v3314 = vpop.trf.xlu0
        %v3315 = vpop.trf.xlu0
        %v3316 = vpop.trf.xlu0
        %v3317 = vpop.trf.xlu0
        %v3318 = vpop.trf.xlu0
        %v3319 = vpop.trf.xlu0
        %v3320 = vpop.trf.xlu0
        %v3321 = vpop.trf.xlu0
        %v3322 = vpop.trf.xlu0
        %v3323 = vpop.trf.xlu0
        %v3324 = vpop.trf.xlu0
        %v3325 = vpop.trf.xlu0
        %v3326 = vpop.trf.xlu0
        %3327 = vst.msk [vmem:[#allocation2 + $0x18] sm:$0xff] %vm781, %v3311
        %v3328 = vrot.slane %v2706, 4
        %v3329 = vrot.slane %v2729, 3
        %v3330 = vsel %vm3070, %v3329, %v3328
        %v3331 = vrot.slane %v2752, 2
        %v3332 = vsel %vm3073, %v3331, %v3330
        %v3333 = vrot.slane %v2775, 1
        %v3334 = vsel %vm3076, %v3333, %v3332
        %v3335 = vsel %vm3079, %v2798, %v3334
        %v3336 = vrot.slane %v2821, 7
        %v3337 = vsel %vm3082, %v3336, %v3335
        %v3338 = vrot.slane %v2844, 6
        %v3339 = vsel %vm3085, %v3338, %v3337
        %v3340 = vrot.slane %v2867, 5
        %v3341 = vsel %vm3088, %v3340, %v3339
        %v3342 = vrot.slane %v2890, 4
        %v3343 = vrot.slane %v2913, 3
        %v3344 = vsel %vm3070, %v3343, %v3342
        %v3345 = vrot.slane %v2936, 2
        %v3346 = vsel %vm3073, %v3345, %v3344
        %v3347 = vrot.slane %v2959, 1
        %v3348 = vsel %vm3076, %v3347, %v3346
        %v3349 = vsel %vm3079, %v2982, %v3348
        %v3350 = vrot.slane %v3005, 7
        %v3351 = vsel %vm3082, %v3350, %v3349
        %v3352 = vrot.slane %v3028, 6
        %v3353 = vsel %vm3085, %v3352, %v3351
        %v3354 = vrot.slane %v3051, 5
        %v3355 = vsel %vm3088, %v3354, %v3353
        %3358 = vxpose.xlu0.b32.start [1/16] %v3341, 128
        %3359 = vxpose.xlu0.b32.cont [2/16] %v3355, 128
        %3360 = vxpose.xlu0.b32.cont [3/16] 0.0, 128
        %3361 = vxpose.xlu0.b32.cont [4/16] 0.0, 128
        %3362 = vxpose.xlu0.b32.cont [5/16] 0.0, 128
        %3363 = vxpose.xlu0.b32.cont [6/16] 0.0, 128
        %3364 = vxpose.xlu0.b32.cont [7/16] 0.0, 128
        %3365 = vxpose.xlu0.b32.cont [8/16] 0.0, 128
        %3366 = vxpose.xlu0.b32.cont [9/16] 0.0, 128
        %3367 = vxpose.xlu0.b32.cont [10/16] 0.0, 128
        %3368 = vxpose.xlu0.b32.cont [11/16] 0.0, 128
        %3369 = vxpose.xlu0.b32.cont [12/16] 0.0, 128
        %3370 = vxpose.xlu0.b32.cont [13/16] 0.0, 128
        %3371 = vxpose.xlu0.b32.cont [14/16] 0.0, 128
        %3372 = vxpose.xlu0.b32.cont [15/16] 0.0, 128
        %3373 = vxpose.xlu0.b32.end [16/16] 0.0, 128
        %v3374 = vpop.trf.xlu0
        %v3375 = vpop.trf.xlu0
        %v3376 = vpop.trf.xlu0
        %v3377 = vpop.trf.xlu0
        %v3378 = vpop.trf.xlu0
        %v3379 = vpop.trf.xlu0
        %v3380 = vpop.trf.xlu0
        %v3381 = vpop.trf.xlu0
        %v3382 = vpop.trf.xlu0
        %v3383 = vpop.trf.xlu0
        %v3384 = vpop.trf.xlu0
        %v3385 = vpop.trf.xlu0
        %v3386 = vpop.trf.xlu0
        %v3387 = vpop.trf.xlu0
        %v3388 = vpop.trf.xlu0
        %v3389 = vpop.trf.xlu0
        %3390 = vst.msk [vmem:[#allocation2 + $0x20] sm:$0xff] %vm781, %v3374
        %v3391 = vrot.slane %v2706, 5
        %v3392 = vrot.slane %v2729, 4
        %v3393 = vsel %vm3070, %v3392, %v3391
        %v3394 = vrot.slane %v2752, 3
        %v3395 = vsel %vm3073, %v3394, %v3393
        %v3396 = vrot.slane %v2775, 2
        %v3397 = vsel %vm3076, %v3396, %v3395
        %v3398 = vrot.slane %v2798, 1
        %v3399 = vsel %vm3079, %v3398, %v3397
        %v3400 = vsel %vm3082, %v2821, %v3399
        %v3401 = vrot.slane %v2844, 7
        %v3402 = vsel %vm3085, %v3401, %v3400
        %v3403 = vrot.slane %v2867, 6
        %v3404 = vsel %vm3088, %v3403, %v3402
        %v3405 = vrot.slane %v2890, 5
        %v3406 = vrot.slane %v2913, 4
        %v3407 = vsel %vm3070, %v3406, %v3405
        %v3408 = vrot.slane %v2936, 3
        %v3409 = vsel %vm3073, %v3408, %v3407
        %v3410 = vrot.slane %v2959, 2
        %v3411 = vsel %vm3076, %v3410, %v3409
        %v3412 = vrot.slane %v2982, 1
        %v3413 = vsel %vm3079, %v3412, %v3411
        %v3414 = vsel %vm3082, %v3005, %v3413
        %v3415 = vrot.slane %v3028, 7
        %v3416 = vsel %vm3085, %v3415, %v3414
        %v3417 = vrot.slane %v3051, 6
        %v3418 = vsel %vm3088, %v3417, %v3416
        %3421 = vxpose.xlu0.b32.start [1/16] %v3404, 128
        %3422 = vxpose.xlu0.b32.cont [2/16] %v3418, 128
        %3423 = vxpose.xlu0.b32.cont [3/16] 0.0, 128
        %3424 = vxpose.xlu0.b32.cont [4/16] 0.0, 128
        %3425 = vxpose.xlu0.b32.cont [5/16] 0.0, 128
        %3426 = vxpose.xlu0.b32.cont [6/16] 0.0, 128
        %3427 = vxpose.xlu0.b32.cont [7/16] 0.0, 128
        %3428 = vxpose.xlu0.b32.cont [8/16] 0.0, 128
        %3429 = vxpose.xlu0.b32.cont [9/16] 0.0, 128
        %3430 = vxpose.xlu0.b32.cont [10/16] 0.0, 128
        %3431 = vxpose.xlu0.b32.cont [11/16] 0.0, 128
        %3432 = vxpose.xlu0.b32.cont [12/16] 0.0, 128
        %3433 = vxpose.xlu0.b32.cont [13/16] 0.0, 128
        %3434 = vxpose.xlu0.b32.cont [14/16] 0.0, 128
        %3435 = vxpose.xlu0.b32.cont [15/16] 0.0, 128
        %3436 = vxpose.xlu0.b32.end [16/16] 0.0, 128
        %v3437 = vpop.trf.xlu0
        %v3438 = vpop.trf.xlu0
        %v3439 = vpop.trf.xlu0
        %v3440 = vpop.trf.xlu0
        %v3441 = vpop.trf.xlu0
        %v3442 = vpop.trf.xlu0
        %v3443 = vpop.trf.xlu0
        %v3444 = vpop.trf.xlu0
        %v3445 = vpop.trf.xlu0
        %v3446 = vpop.trf.xlu0
        %v3447 = vpop.trf.xlu0
        %v3448 = vpop.trf.xlu0
        %v3449 = vpop.trf.xlu0
        %v3450 = vpop.trf.xlu0
        %v3451 = vpop.trf.xlu0
        %v3452 = vpop.trf.xlu0
        %3453 = vst.msk [vmem:[#allocation2 + $0x28] sm:$0xff] %vm781, %v3437
        %v3454 = vrot.slane %v2706, 6
        %v3455 = vrot.slane %v2729, 5
        %v3456 = vsel %vm3070, %v3455, %v3454
        %v3457 = vrot.slane %v2752, 4
        %v3458 = vsel %vm3073, %v3457, %v3456
        %v3459 = vrot.slane %v2775, 3
        %v3460 = vsel %vm3076, %v3459, %v3458
        %v3461 = vrot.slane %v2798, 2
        %v3462 = vsel %vm3079, %v3461, %v3460
        %v3463 = vrot.slane %v2821, 1
        %v3464 = vsel %vm3082, %v3463, %v3462
        %v3465 = vsel %vm3085, %v2844, %v3464
        %v3466 = vrot.slane %v2867, 7
        %v3467 = vsel %vm3088, %v3466, %v3465
        %v3468 = vrot.slane %v2890, 6
        %v3469 = vrot.slane %v2913, 5
        %v3470 = vsel %vm3070, %v3469, %v3468
        %v3471 = vrot.slane %v2936, 4
        %v3472 = vsel %vm3073, %v3471, %v3470
        %v3473 = vrot.slane %v2959, 3
        %v3474 = vsel %vm3076, %v3473, %v3472
        %v3475 = vrot.slane %v2982, 2
        %v3476 = vsel %vm3079, %v3475, %v3474
        %v3477 = vrot.slane %v3005, 1
        %v3478 = vsel %vm3082, %v3477, %v3476
        %v3479 = vsel %vm3085, %v3028, %v3478
        %v3480 = vrot.slane %v3051, 7
        %v3481 = vsel %vm3088, %v3480, %v3479
        %3484 = vxpose.xlu0.b32.start [1/16] %v3467, 128
        %3485 = vxpose.xlu0.b32.cont [2/16] %v3481, 128
        %3486 = vxpose.xlu0.b32.cont [3/16] 0.0, 128
        %3487 = vxpose.xlu0.b32.cont [4/16] 0.0, 128
        %3488 = vxpose.xlu0.b32.cont [5/16] 0.0, 128
        %3489 = vxpose.xlu0.b32.cont [6/16] 0.0, 128
        %3490 = vxpose.xlu0.b32.cont [7/16] 0.0, 128
        %3491 = vxpose.xlu0.b32.cont [8/16] 0.0, 128
        %3492 = vxpose.xlu0.b32.cont [9/16] 0.0, 128
        %3493 = vxpose.xlu0.b32.cont [10/16] 0.0, 128
        %3494 = vxpose.xlu0.b32.cont [11/16] 0.0, 128
        %3495 = vxpose.xlu0.b32.cont [12/16] 0.0, 128
        %3496 = vxpose.xlu0.b32.cont [13/16] 0.0, 128
        %3497 = vxpose.xlu0.b32.cont [14/16] 0.0, 128
        %3498 = vxpose.xlu0.b32.cont [15/16] 0.0, 128
        %3499 = vxpose.xlu0.b32.end [16/16] 0.0, 128
        %v3500 = vpop.trf.xlu0
        %v3501 = vpop.trf.xlu0
        %v3502 = vpop.trf.xlu0
        %v3503 = vpop.trf.xlu0
        %v3504 = vpop.trf.xlu0
        %v3505 = vpop.trf.xlu0
        %v3506 = vpop.trf.xlu0
        %v3507 = vpop.trf.xlu0
        %v3508 = vpop.trf.xlu0
        %v3509 = vpop.trf.xlu0
        %v3510 = vpop.trf.xlu0
        %v3511 = vpop.trf.xlu0
        %v3512 = vpop.trf.xlu0
        %v3513 = vpop.trf.xlu0
        %v3514 = vpop.trf.xlu0
        %v3515 = vpop.trf.xlu0
        %3516 = vst.msk [vmem:[#allocation2 + $0x30] sm:$0xff] %vm781, %v3500
        %v3517 = vrot.slane %v2706, 7
        %v3518 = vrot.slane %v2729, 6
        %v3519 = vsel %vm3070, %v3518, %v3517
        %v3520 = vrot.slane %v2752, 5
        %v3521 = vsel %vm3073, %v3520, %v3519
        %v3522 = vrot.slane %v2775, 4
        %v3523 = vsel %vm3076, %v3522, %v3521
        %v3524 = vrot.slane %v2798, 3
        %v3525 = vsel %vm3079, %v3524, %v3523
        %v3526 = vrot.slane %v2821, 2
        %v3527 = vsel %vm3082, %v3526, %v3525
        %v3528 = vrot.slane %v2844, 1
        %v3529 = vsel %vm3085, %v3528, %v3527
        %v3530 = vsel %vm3088, %v2867, %v3529
        %v3531 = vrot.slane %v2890, 7
        %v3532 = vrot.slane %v2913, 6
        %v3533 = vsel %vm3070, %v3532, %v3531
        %v3534 = vrot.slane %v2936, 5
        %v3535 = vsel %vm3073, %v3534, %v3533
        %v3536 = vrot.slane %v2959, 4
        %v3537 = vsel %vm3076, %v3536, %v3535
        %v3538 = vrot.slane %v2982, 3
        %v3539 = vsel %vm3079, %v3538, %v3537
        %v3540 = vrot.slane %v3005, 2
        %v3541 = vsel %vm3082, %v3540, %v3539
        %v3542 = vrot.slane %v3028, 1
        %v3543 = vsel %vm3085, %v3542, %v3541
        %v3544 = vsel %vm3088, %v3051, %v3543
        %3547 = vxpose.xlu0.b32.start [1/16] %v3530, 128
        %3548 = vxpose.xlu0.b32.cont [2/16] %v3544, 128
        %3549 = vxpose.xlu0.b32.cont [3/16] 0.0, 128
        %3550 = vxpose.xlu0.b32.cont [4/16] 0.0, 128
        %3551 = vxpose.xlu0.b32.cont [5/16] 0.0, 128
        %3552 = vxpose.xlu0.b32.cont [6/16] 0.0, 128
        %3553 = vxpose.xlu0.b32.cont [7/16] 0.0, 128
        %3554 = vxpose.xlu0.b32.cont [8/16] 0.0, 128
        %3555 = vxpose.xlu0.b32.cont [9/16] 0.0, 128
        %3556 = vxpose.xlu0.b32.cont [10/16] 0.0, 128
        %3557 = vxpose.xlu0.b32.cont [11/16] 0.0, 128
        %3558 = vxpose.xlu0.b32.cont [12/16] 0.0, 128
        %3559 = vxpose.xlu0.b32.cont [13/16] 0.0, 128
        %3560 = vxpose.xlu0.b32.cont [14/16] 0.0, 128
        %3561 = vxpose.xlu0.b32.cont [15/16] 0.0, 128
        %3562 = vxpose.xlu0.b32.end [16/16] 0.0, 128
        %v3563 = vpop.trf.xlu0
        %v3564 = vpop.trf.xlu0
        %v3565 = vpop.trf.xlu0
        %v3566 = vpop.trf.xlu0
        %v3567 = vpop.trf.xlu0
        %v3568 = vpop.trf.xlu0
        %v3569 = vpop.trf.xlu0
        %v3570 = vpop.trf.xlu0
        %v3571 = vpop.trf.xlu0
        %v3572 = vpop.trf.xlu0
        %v3573 = vpop.trf.xlu0
        %v3574 = vpop.trf.xlu0
        %v3575 = vpop.trf.xlu0
        %v3576 = vpop.trf.xlu0
        %v3577 = vpop.trf.xlu0
        %v3578 = vpop.trf.xlu0
        %3579 = vst.msk [vmem:[#allocation2 + $0x38] sm:$0xff] %vm781, %v3563
        %v3580 = vld [vmem:[%s6] sm:$0xff]
        %v3581 = vld [vmem:[%s6 + $0x8] sm:$0xff]
        %v3582 = vld [vmem:[%s6 + $0x10] sm:$0xff]
        %v3583 = vld [vmem:[%s6 + $0x18] sm:$0xff]
        %v3584 = vld [vmem:[%s6 + $0x20] sm:$0xff]
        %v3585 = vld [vmem:[%s6 + $0x28] sm:$0xff]
        %v3586 = vld [vmem:[%s6 + $0x30] sm:$0xff]
        %v3587 = vld [vmem:[%s6 + $0x38] sm:$0xff]
        %v3588 = vld [vmem:[#allocation2] sm:$0xff]
        %v3589 = vld [vmem:[#allocation2 + $0x8] sm:$0xff]
        %v3590 = vld [vmem:[#allocation2 + $0x10] sm:$0xff]
        %v3591 = vld [vmem:[#allocation2 + $0x18] sm:$0xff]
        %v3592 = vld [vmem:[#allocation2 + $0x20] sm:$0xff]
        %v3593 = vld [vmem:[#allocation2 + $0x28] sm:$0xff]
        %v3594 = vld [vmem:[#allocation2 + $0x30] sm:$0xff]
        %v3595 = vld [vmem:[#allocation2 + $0x38] sm:$0xff]
        %v3596 = vld [vmem:[%s7] sm:$0xff]
        %v3597 = vld [vmem:[%s7 + $0x8] sm:$0xff]
        %v3598 = vld [vmem:[%s7 + $0x10] sm:$0xff]
        %v3599 = vld [vmem:[%s7 + $0x18] sm:$0xff]
        %v3600 = vld [vmem:[%s7 + $0x20] sm:$0xff]
        %v3601 = vld [vmem:[%s7 + $0x28] sm:$0xff]
        %v3602 = vld [vmem:[%s7 + $0x30] sm:$0xff]
        %v3603 = vld [vmem:[%s7 + $0x38] sm:$0xff]
        %3605 = vset.pattern.permute.xlu0 0
        %3606 = vperm.xlu0 %3605, %v3596
        %v3607 = vpop.permute.xlu0 %3606
        %3610 = vset.pattern.permute.xlu0 0
        %3611 = vperm.xlu0 %3610, %v3597
        %v3612 = vpop.permute.xlu0 %3611
        %3615 = vset.pattern.permute.xlu0 0
        %3616 = vperm.xlu0 %3615, %v3598
        %v3617 = vpop.permute.xlu0 %3616
        %3620 = vset.pattern.permute.xlu0 0
        %3621 = vperm.xlu0 %3620, %v3599
        %v3622 = vpop.permute.xlu0 %3621
        %3625 = vset.pattern.permute.xlu0 0
        %3626 = vperm.xlu0 %3625, %v3600
        %v3627 = vpop.permute.xlu0 %3626
        %3630 = vset.pattern.permute.xlu0 0
        %3631 = vperm.xlu0 %3630, %v3601
        %v3632 = vpop.permute.xlu0 %3631
        %3635 = vset.pattern.permute.xlu0 0
        %3636 = vperm.xlu0 %3635, %v3602
        %v3637 = vpop.permute.xlu0 %3636
        %3640 = vset.pattern.permute.xlu0 0
        %3641 = vperm.xlu0 %3640, %v3603
        %v3642 = vpop.permute.xlu0 %3641
        %v3645 = vsel %vm469, %v3580, 0
        %v3648 = vsel %vm469, %v3581, 0
        %v3651 = vsel %vm469, %v3582, 0
        %v3654 = vsel %vm469, %v3583, 0
        %v3657 = vsel %vm469, %v3584, 0
        %v3660 = vsel %vm469, %v3585, 0
        %v3663 = vsel %vm469, %v3586, 0
        %v3666 = vsel %vm469, %v3587, 0
        %3668 = vmatpush.msra.mxu0 0.0
        %3669 = vmatpush.msra.mxu0 0.0
        %3670 = vmatpush.msra.mxu0 0.0
        %3671 = vmatpush.msra.mxu0 0.0
        %3672 = vmatpush.msra.mxu0 0.0
        %3673 = vmatpush.msra.mxu0 0.0
        %3674 = vmatpush.msra.mxu0 0.0
        %3675 = vmatpush.msra.mxu0 0.0
        %3676 = vmatpush.msra.mxu0 %v3595
        %3677 = vmatpush.msra.mxu0 %v3594
        %3678 = vmatpush.msra.mxu0 %v3593
        %3679 = vmatpush.msra.mxu0 %v3592
        %3680 = vmatpush.msra.mxu0 %v3591
        %3681 = vmatpush.msra.mxu0 %v3590
        %3682 = vmatpush.msra.mxu0 %v3589
        %3683 = vmatpush.msra.mxu0 %v3588
        %3684 = vmatmul.f32.gmra.mxu0 %v3645
        %v3685 = vpop.f32.mrf.mxu0
        %v3686 = vadd.f32 %v3607, %v3685
        %3687 = vmatmul.f32.gmra.mxu0 %v3648
        %v3688 = vpop.f32.mrf.mxu0
        %v3689 = vadd.f32 %v3612, %v3688
        %3690 = vmatmul.f32.gmra.mxu0 %v3651
        %v3691 = vpop.f32.mrf.mxu0
        %v3692 = vadd.f32 %v3617, %v3691
        %3693 = vmatmul.f32.gmra.mxu0 %v3654
        %v3694 = vpop.f32.mrf.mxu0
        %v3695 = vadd.f32 %v3622, %v3694
        %3696 = vmatmul.f32.gmra.mxu0 %v3657
        %v3697 = vpop.f32.mrf.mxu0
        %v3698 = vadd.f32 %v3627, %v3697
        %3699 = vmatmul.f32.gmra.mxu0 %v3660
        %v3700 = vpop.f32.mrf.mxu0
        %v3701 = vadd.f32 %v3632, %v3700
        %3702 = vmatmul.f32.gmra.mxu0 %v3663
        %v3703 = vpop.f32.mrf.mxu0
        %v3704 = vadd.f32 %v3637, %v3703
        %3705 = vmatmul.f32.gmra.mxu0 %v3666
        %v3706 = vpop.f32.mrf.mxu0
        %v3707 = vadd.f32 %v3642, %v3706
        %3708 = vdwg.mxu0
        %s3709 = scalar_lea.vmem %s6, 64
        %v3710 = vld [vmem:[%s3709] sm:$0xff]
        %v3711 = vld [vmem:[%s3709 + $0x8] sm:$0xff]
        %v3712 = vld [vmem:[%s3709 + $0x10] sm:$0xff]
        %v3713 = vld [vmem:[%s3709 + $0x18] sm:$0xff]
        %v3714 = vld [vmem:[%s3709 + $0x20] sm:$0xff]
        %v3715 = vld [vmem:[%s3709 + $0x28] sm:$0xff]
        %v3716 = vld [vmem:[%s3709 + $0x30] sm:$0xff]
        %v3717 = vld [vmem:[%s3709 + $0x38] sm:$0xff]
        %s3718 = scalar_lea.vmem %s7, 64
        %v3719 = vld [vmem:[%s3718] sm:$0xff]
        %v3720 = vld [vmem:[%s3718 + $0x8] sm:$0xff]
        %v3721 = vld [vmem:[%s3718 + $0x10] sm:$0xff]
        %v3722 = vld [vmem:[%s3718 + $0x18] sm:$0xff]
        %v3723 = vld [vmem:[%s3718 + $0x20] sm:$0xff]
        %v3724 = vld [vmem:[%s3718 + $0x28] sm:$0xff]
        %v3725 = vld [vmem:[%s3718 + $0x30] sm:$0xff]
        %v3726 = vld [vmem:[%s3718 + $0x38] sm:$0xff]
        %3728 = vset.pattern.permute.xlu0 0
        %3729 = vperm.xlu0 %3728, %v3719
        %v3730 = vpop.permute.xlu0 %3729
        %3733 = vset.pattern.permute.xlu0 0
        %3734 = vperm.xlu0 %3733, %v3720
        %v3735 = vpop.permute.xlu0 %3734
        %3738 = vset.pattern.permute.xlu0 0
        %3739 = vperm.xlu0 %3738, %v3721
        %v3740 = vpop.permute.xlu0 %3739
        %3743 = vset.pattern.permute.xlu0 0
        %3744 = vperm.xlu0 %3743, %v3722
        %v3745 = vpop.permute.xlu0 %3744
        %3748 = vset.pattern.permute.xlu0 0
        %3749 = vperm.xlu0 %3748, %v3723
        %v3750 = vpop.permute.xlu0 %3749
        %3753 = vset.pattern.permute.xlu0 0
        %3754 = vperm.xlu0 %3753, %v3724
        %v3755 = vpop.permute.xlu0 %3754
        %3758 = vset.pattern.permute.xlu0 0
        %3759 = vperm.xlu0 %3758, %v3725
        %v3760 = vpop.permute.xlu0 %3759
        %3763 = vset.pattern.permute.xlu0 0
        %3764 = vperm.xlu0 %3763, %v3726
        %v3765 = vpop.permute.xlu0 %3764
        %v3768 = vsel %vm469, %v3710, 0
        %v3771 = vsel %vm469, %v3711, 0
        %v3774 = vsel %vm469, %v3712, 0
        %v3777 = vsel %vm469, %v3713, 0
        %v3780 = vsel %vm469, %v3714, 0
        %v3783 = vsel %vm469, %v3715, 0
        %v3786 = vsel %vm469, %v3716, 0
        %v3789 = vsel %vm469, %v3717, 0
        %3791 = vmatpush.msra.mxu0 0.0
        %3792 = vmatpush.msra.mxu0 0.0
        %3793 = vmatpush.msra.mxu0 0.0
        %3794 = vmatpush.msra.mxu0 0.0
        %3795 = vmatpush.msra.mxu0 0.0
        %3796 = vmatpush.msra.mxu0 0.0
        %3797 = vmatpush.msra.mxu0 0.0
        %3798 = vmatpush.msra.mxu0 0.0
        %3799 = vmatpush.msra.mxu0 %v1590
        %3800 = vmatpush.msra.mxu0 %v1589
        %3801 = vmatpush.msra.mxu0 %v1588
        %3802 = vmatpush.msra.mxu0 %v1587
        %3803 = vmatpush.msra.mxu0 %v1586
        %3804 = vmatpush.msra.mxu0 %v1585
        %3805 = vmatpush.msra.mxu0 %v1584
        %3806 = vmatpush.msra.mxu0 %v1583
        %3807 = vmatmul.f32.gmra.mxu0 %v3768
        %v3808 = vpop.f32.mrf.mxu0
        %v3809 = vadd.f32 %v3730, %v3808
        %3810 = vmatmul.f32.gmra.mxu0 %v3771
        %v3811 = vpop.f32.mrf.mxu0
        %v3812 = vadd.f32 %v3735, %v3811
        %3813 = vmatmul.f32.gmra.mxu0 %v3774
        %v3814 = vpop.f32.mrf.mxu0
        %v3815 = vadd.f32 %v3740, %v3814
        %3816 = vmatmul.f32.gmra.mxu0 %v3777
        %v3817 = vpop.f32.mrf.mxu0
        %v3818 = vadd.f32 %v3745, %v3817
        %3819 = vmatmul.f32.gmra.mxu0 %v3780
        %v3820 = vpop.f32.mrf.mxu0
        %v3821 = vadd.f32 %v3750, %v3820
        %3822 = vmatmul.f32.gmra.mxu0 %v3783
        %v3823 = vpop.f32.mrf.mxu0
        %v3824 = vadd.f32 %v3755, %v3823
        %3825 = vmatmul.f32.gmra.mxu0 %v3786
        %v3826 = vpop.f32.mrf.mxu0
        %v3827 = vadd.f32 %v3760, %v3826
        %3828 = vmatmul.f32.gmra.mxu0 %v3789
        %v3829 = vpop.f32.mrf.mxu0
        %v3830 = vadd.f32 %v3765, %v3829
        %3831 = vdwg.mxu0
        %s3832 = scalar_lea.vmem %s6, 128
        %v3833 = vld [vmem:[%s3832] sm:$0xff]
        %v3834 = vld [vmem:[%s3832 + $0x8] sm:$0xff]
        %v3835 = vld [vmem:[%s3832 + $0x10] sm:$0xff]
        %v3836 = vld [vmem:[%s3832 + $0x18] sm:$0xff]
        %v3837 = vld [vmem:[%s3832 + $0x20] sm:$0xff]
        %v3838 = vld [vmem:[%s3832 + $0x28] sm:$0xff]
        %v3839 = vld [vmem:[%s3832 + $0x30] sm:$0xff]
        %v3840 = vld [vmem:[%s3832 + $0x38] sm:$0xff]
        %s3841 = scalar_lea.vmem %s7, 128
        %v3842 = vld [vmem:[%s3841] sm:$0xff]
        %v3843 = vld [vmem:[%s3841 + $0x8] sm:$0xff]
        %v3844 = vld [vmem:[%s3841 + $0x10] sm:$0xff]
        %v3845 = vld [vmem:[%s3841 + $0x18] sm:$0xff]
        %v3846 = vld [vmem:[%s3841 + $0x20] sm:$0xff]
        %v3847 = vld [vmem:[%s3841 + $0x28] sm:$0xff]
        %v3848 = vld [vmem:[%s3841 + $0x30] sm:$0xff]
        %v3849 = vld [vmem:[%s3841 + $0x38] sm:$0xff]
        %3851 = vset.pattern.permute.xlu0 0
        %3852 = vperm.xlu0 %3851, %v3842
        %v3853 = vpop.permute.xlu0 %3852
        %3856 = vset.pattern.permute.xlu0 0
        %3857 = vperm.xlu0 %3856, %v3843
        %v3858 = vpop.permute.xlu0 %3857
        %3861 = vset.pattern.permute.xlu0 0
        %3862 = vperm.xlu0 %3861, %v3844
        %v3863 = vpop.permute.xlu0 %3862
        %3866 = vset.pattern.permute.xlu0 0
        %3867 = vperm.xlu0 %3866, %v3845
        %v3868 = vpop.permute.xlu0 %3867
        %3871 = vset.pattern.permute.xlu0 0
        %3872 = vperm.xlu0 %3871, %v3846
        %v3873 = vpop.permute.xlu0 %3872
        %3876 = vset.pattern.permute.xlu0 0
        %3877 = vperm.xlu0 %3876, %v3847
        %v3878 = vpop.permute.xlu0 %3877
        %3881 = vset.pattern.permute.xlu0 0
        %3882 = vperm.xlu0 %3881, %v3848
        %v3883 = vpop.permute.xlu0 %3882
        %3886 = vset.pattern.permute.xlu0 0
        %3887 = vperm.xlu0 %3886, %v3849
        %v3888 = vpop.permute.xlu0 %3887
        %v3891 = vsel %vm469, %v3833, 0
        %v3894 = vsel %vm469, %v3834, 0
        %v3897 = vsel %vm469, %v3835, 0
        %v3900 = vsel %vm469, %v3836, 0
        %v3903 = vsel %vm469, %v3837, 0
        %v3906 = vsel %vm469, %v3838, 0
        %v3909 = vsel %vm469, %v3839, 0
        %v3912 = vsel %vm469, %v3840, 0
        %3914 = vmatpush.msra.mxu0 0.0
        %3915 = vmatpush.msra.mxu0 0.0
        %3916 = vmatpush.msra.mxu0 0.0
        %3917 = vmatpush.msra.mxu0 0.0
        %3918 = vmatpush.msra.mxu0 0.0
        %3919 = vmatpush.msra.mxu0 0.0
        %3920 = vmatpush.msra.mxu0 0.0
        %3921 = vmatpush.msra.mxu0 0.0
        %3922 = vmatpush.msra.mxu0 %v1590
        %3923 = vmatpush.msra.mxu0 %v1589
        %3924 = vmatpush.msra.mxu0 %v1588
        %3925 = vmatpush.msra.mxu0 %v1587
        %3926 = vmatpush.msra.mxu0 %v1586
        %3927 = vmatpush.msra.mxu0 %v1585
        %3928 = vmatpush.msra.mxu0 %v1584
        %3929 = vmatpush.msra.mxu0 %v1583
        %3930 = vmatmul.f32.gmra.mxu0 %v3891
        %v3931 = vpop.f32.mrf.mxu0
        %v3932 = vadd.f32 %v3853, %v3931
        %3933 = vmatmul.f32.gmra.mxu0 %v3894
        %v3934 = vpop.f32.mrf.mxu0
        %v3935 = vadd.f32 %v3858, %v3934
        %3936 = vmatmul.f32.gmra.mxu0 %v3897
        %v3937 = vpop.f32.mrf.mxu0
        %v3938 = vadd.f32 %v3863, %v3937
        %3939 = vmatmul.f32.gmra.mxu0 %v3900
        %v3940 = vpop.f32.mrf.mxu0
        %v3941 = vadd.f32 %v3868, %v3940
        %3942 = vmatmul.f32.gmra.mxu0 %v3903
        %v3943 = vpop.f32.mrf.mxu0
        %v3944 = vadd.f32 %v3873, %v3943
        %3945 = vmatmul.f32.gmra.mxu0 %v3906
        %v3946 = vpop.f32.mrf.mxu0
        %v3947 = vadd.f32 %v3878, %v3946
        %3948 = vmatmul.f32.gmra.mxu0 %v3909
        %v3949 = vpop.f32.mrf.mxu0
        %v3950 = vadd.f32 %v3883, %v3949
        %3951 = vmatmul.f32.gmra.mxu0 %v3912
        %v3952 = vpop.f32.mrf.mxu0
        %v3953 = vadd.f32 %v3888, %v3952
        %3954 = vdwg.mxu0
        %v3956 = vsel %vm781, %v3686, 0
        %v3959 = vsel %vm781, %v3809, 0
        %3961 = vmatpush.xpose.msra.mxu0 0.0
        %3962 = vmatpush.xpose.msra.mxu0 0.0
        %3963 = vmatpush.xpose.msra.mxu0 0.0
        %3964 = vmatpush.xpose.msra.mxu0 0.0
        %3965 = vmatpush.xpose.msra.mxu0 0.0
        %3966 = vmatpush.xpose.msra.mxu0 0.0
        %3967 = vmatpush.xpose.msra.mxu0 0.0
        %3968 = vmatpush.xpose.msra.mxu0 0.0
        %3969 = vmatpush.xpose.msra.mxu0 0.0
        %3970 = vmatpush.xpose.msra.mxu0 0.0
        %3971 = vmatpush.xpose.msra.mxu0 0.0
        %3972 = vmatpush.xpose.msra.mxu0 0.0
        %3973 = vmatpush.xpose.msra.mxu0 0.0
        %3974 = vmatpush.xpose.msra.mxu0 0.0
        %3975 = vmatpush.xpose.msra.mxu0 0.0
        %3976 = vmatpush.xpose.msra.mxu0 %v3959
        %3977 = vmatmul.f32.gmra.mxu0 %v3956
        %v3978 = vpop.f32.mrf.mxu0
        %v3979 = vadd.f32 0.0, %v3978
        %3980 = vdwg.mxu0
        %v3982 = vsel %vm781, %v3689, 0
        %v3985 = vsel %vm781, %v3812, 0
        %3987 = vmatpush.xpose.msra.mxu0 0.0
        %3988 = vmatpush.xpose.msra.mxu0 0.0
        %3989 = vmatpush.xpose.msra.mxu0 0.0
        %3990 = vmatpush.xpose.msra.mxu0 0.0
        %3991 = vmatpush.xpose.msra.mxu0 0.0
        %3992 = vmatpush.xpose.msra.mxu0 0.0
        %3993 = vmatpush.xpose.msra.mxu0 0.0
        %3994 = vmatpush.xpose.msra.mxu0 0.0
        %3995 = vmatpush.xpose.msra.mxu0 0.0
        %3996 = vmatpush.xpose.msra.mxu0 0.0
        %3997 = vmatpush.xpose.msra.mxu0 0.0
        %3998 = vmatpush.xpose.msra.mxu0 0.0
        %3999 = vmatpush.xpose.msra.mxu0 0.0
        %4000 = vmatpush.xpose.msra.mxu0 0.0
        %4001 = vmatpush.xpose.msra.mxu0 0.0
        %4002 = vmatpush.xpose.msra.mxu0 %v3985
        %4003 = vmatmul.f32.gmra.mxu0 %v3982
        %v4004 = vpop.f32.mrf.mxu0
        %v4005 = vadd.f32 0.0, %v4004
        %4006 = vdwg.mxu0
        %v4008 = vsel %vm781, %v3692, 0
        %v4011 = vsel %vm781, %v3815, 0
        %4013 = vmatpush.xpose.msra.mxu0 0.0
        %4014 = vmatpush.xpose.msra.mxu0 0.0
        %4015 = vmatpush.xpose.msra.mxu0 0.0
        %4016 = vmatpush.xpose.msra.mxu0 0.0
        %4017 = vmatpush.xpose.msra.mxu0 0.0
        %4018 = vmatpush.xpose.msra.mxu0 0.0
        %4019 = vmatpush.xpose.msra.mxu0 0.0
        %4020 = vmatpush.xpose.msra.mxu0 0.0
        %4021 = vmatpush.xpose.msra.mxu0 0.0
        %4022 = vmatpush.xpose.msra.mxu0 0.0
        %4023 = vmatpush.xpose.msra.mxu0 0.0
        %4024 = vmatpush.xpose.msra.mxu0 0.0
        %4025 = vmatpush.xpose.msra.mxu0 0.0
        %4026 = vmatpush.xpose.msra.mxu0 0.0
        %4027 = vmatpush.xpose.msra.mxu0 0.0
        %4028 = vmatpush.xpose.msra.mxu0 %v4011
        %4029 = vmatmul.f32.gmra.mxu0 %v4008
        %v4030 = vpop.f32.mrf.mxu0
        %v4031 = vadd.f32 0.0, %v4030
        %4032 = vdwg.mxu0
        %v4034 = vsel %vm781, %v3695, 0
        %v4037 = vsel %vm781, %v3818, 0
        %4039 = vmatpush.xpose.msra.mxu0 0.0
        %4040 = vmatpush.xpose.msra.mxu0 0.0
        %4041 = vmatpush.xpose.msra.mxu0 0.0
        %4042 = vmatpush.xpose.msra.mxu0 0.0
        %4043 = vmatpush.xpose.msra.mxu0 0.0
        %4044 = vmatpush.xpose.msra.mxu0 0.0
        %4045 = vmatpush.xpose.msra.mxu0 0.0
        %4046 = vmatpush.xpose.msra.mxu0 0.0
        %4047 = vmatpush.xpose.msra.mxu0 0.0
        %4048 = vmatpush.xpose.msra.mxu0 0.0
        %4049 = vmatpush.xpose.msra.mxu0 0.0
        %4050 = vmatpush.xpose.msra.mxu0 0.0
        %4051 = vmatpush.xpose.msra.mxu0 0.0
        %4052 = vmatpush.xpose.msra.mxu0 0.0
        %4053 = vmatpush.xpose.msra.mxu0 0.0
        %4054 = vmatpush.xpose.msra.mxu0 %v4037
        %4055 = vmatmul.f32.gmra.mxu0 %v4034
        %v4056 = vpop.f32.mrf.mxu0
        %v4057 = vadd.f32 0.0, %v4056
        %4058 = vdwg.mxu0
        %v4060 = vsel %vm781, %v3698, 0
        %v4063 = vsel %vm781, %v3821, 0
        %4065 = vmatpush.xpose.msra.mxu0 0.0
        %4066 = vmatpush.xpose.msra.mxu0 0.0
        %4067 = vmatpush.xpose.msra.mxu0 0.0
        %4068 = vmatpush.xpose.msra.mxu0 0.0
        %4069 = vmatpush.xpose.msra.mxu0 0.0
        %4070 = vmatpush.xpose.msra.mxu0 0.0
        %4071 = vmatpush.xpose.msra.mxu0 0.0
        %4072 = vmatpush.xpose.msra.mxu0 0.0
        %4073 = vmatpush.xpose.msra.mxu0 0.0
        %4074 = vmatpush.xpose.msra.mxu0 0.0
        %4075 = vmatpush.xpose.msra.mxu0 0.0
        %4076 = vmatpush.xpose.msra.mxu0 0.0
        %4077 = vmatpush.xpose.msra.mxu0 0.0
        %4078 = vmatpush.xpose.msra.mxu0 0.0
        %4079 = vmatpush.xpose.msra.mxu0 0.0
        %4080 = vmatpush.xpose.msra.mxu0 %v4063
        %4081 = vmatmul.f32.gmra.mxu0 %v4060
        %v4082 = vpop.f32.mrf.mxu0
        %v4083 = vadd.f32 0.0, %v4082
        %4084 = vdwg.mxu0
        %v4086 = vsel %vm781, %v3701, 0
        %v4089 = vsel %vm781, %v3824, 0
        %4091 = vmatpush.xpose.msra.mxu0 0.0
        %4092 = vmatpush.xpose.msra.mxu0 0.0
        %4093 = vmatpush.xpose.msra.mxu0 0.0
        %4094 = vmatpush.xpose.msra.mxu0 0.0
        %4095 = vmatpush.xpose.msra.mxu0 0.0
        %4096 = vmatpush.xpose.msra.mxu0 0.0
        %4097 = vmatpush.xpose.msra.mxu0 0.0
        %4098 = vmatpush.xpose.msra.mxu0 0.0
        %4099 = vmatpush.xpose.msra.mxu0 0.0
        %4100 = vmatpush.xpose.msra.mxu0 0.0
        %4101 = vmatpush.xpose.msra.mxu0 0.0
        %4102 = vmatpush.xpose.msra.mxu0 0.0
        %4103 = vmatpush.xpose.msra.mxu0 0.0
        %4104 = vmatpush.xpose.msra.mxu0 0.0
        %4105 = vmatpush.xpose.msra.mxu0 0.0
        %4106 = vmatpush.xpose.msra.mxu0 %v4089
        %4107 = vmatmul.f32.gmra.mxu0 %v4086
        %v4108 = vpop.f32.mrf.mxu0
        %v4109 = vadd.f32 0.0, %v4108
        %4110 = vdwg.mxu0
        %v4112 = vsel %vm781, %v3704, 0
        %v4115 = vsel %vm781, %v3827, 0
        %4117 = vmatpush.xpose.msra.mxu0 0.0
        %4118 = vmatpush.xpose.msra.mxu0 0.0
        %4119 = vmatpush.xpose.msra.mxu0 0.0
        %4120 = vmatpush.xpose.msra.mxu0 0.0
        %4121 = vmatpush.xpose.msra.mxu0 0.0
        %4122 = vmatpush.xpose.msra.mxu0 0.0
        %4123 = vmatpush.xpose.msra.mxu0 0.0
        %4124 = vmatpush.xpose.msra.mxu0 0.0
        %4125 = vmatpush.xpose.msra.mxu0 0.0
        %4126 = vmatpush.xpose.msra.mxu0 0.0
        %4127 = vmatpush.xpose.msra.mxu0 0.0
        %4128 = vmatpush.xpose.msra.mxu0 0.0
        %4129 = vmatpush.xpose.msra.mxu0 0.0
        %4130 = vmatpush.xpose.msra.mxu0 0.0
        %4131 = vmatpush.xpose.msra.mxu0 0.0
        %4132 = vmatpush.xpose.msra.mxu0 %v4115
        %4133 = vmatmul.f32.gmra.mxu0 %v4112
        %v4134 = vpop.f32.mrf.mxu0
        %v4135 = vadd.f32 0.0, %v4134
        %4136 = vdwg.mxu0
        %v4138 = vsel %vm781, %v3707, 0
        %v4141 = vsel %vm781, %v3830, 0
        %4143 = vmatpush.xpose.msra.mxu0 0.0
        %4144 = vmatpush.xpose.msra.mxu0 0.0
        %4145 = vmatpush.xpose.msra.mxu0 0.0
        %4146 = vmatpush.xpose.msra.mxu0 0.0
        %4147 = vmatpush.xpose.msra.mxu0 0.0
        %4148 = vmatpush.xpose.msra.mxu0 0.0
        %4149 = vmatpush.xpose.msra.mxu0 0.0
        %4150 = vmatpush.xpose.msra.mxu0 0.0
        %4151 = vmatpush.xpose.msra.mxu0 0.0
        %4152 = vmatpush.xpose.msra.mxu0 0.0
        %4153 = vmatpush.xpose.msra.mxu0 0.0
        %4154 = vmatpush.xpose.msra.mxu0 0.0
        %4155 = vmatpush.xpose.msra.mxu0 0.0
        %4156 = vmatpush.xpose.msra.mxu0 0.0
        %4157 = vmatpush.xpose.msra.mxu0 0.0
        %4158 = vmatpush.xpose.msra.mxu0 %v4141
        %4159 = vmatmul.f32.gmra.mxu0 %v4138
        %v4160 = vpop.f32.mrf.mxu0
        %v4161 = vadd.f32 0.0, %v4160
        %4162 = vdwg.mxu0
        %v4163 = vmul.f32 %v3979, 0.5
        %v4164 = vmul.f32 %v4005, 0.5
        %v4165 = vmul.f32 %v4031, 0.5
        %v4166 = vmul.f32 %v4057, 0.5
        %v4167 = vmul.f32 %v4083, 0.5
        %v4168 = vmul.f32 %v4109, 0.5
        %v4169 = vmul.f32 %v4135, 0.5
        %v4170 = vmul.f32 %v4161, 0.5
        %v4171 = vsel %vm998, %v4163, -inf
        %4172 = vmax.xlane.f32.xlu0 %v4171
        %v4173 = vpop.xlane.xlu0 %4172
        %v4174 = vsel %vm998, %v4164, -inf
        %4175 = vmax.xlane.f32.xlu0 %v4174
        %v4176 = vpop.xlane.xlu0 %4175
        %v4177 = vsel %vm998, %v4165, -inf
        %4178 = vmax.xlane.f32.xlu0 %v4177
        %v4179 = vpop.xlane.xlu0 %4178
        %v4180 = vsel %vm998, %v4166, -inf
        %4181 = vmax.xlane.f32.xlu0 %v4180
        %v4182 = vpop.xlane.xlu0 %4181
        %v4183 = vsel %vm998, %v4167, -inf
        %4184 = vmax.xlane.f32.xlu0 %v4183
        %v4185 = vpop.xlane.xlu0 %4184
        %v4186 = vsel %vm998, %v4168, -inf
        %4187 = vmax.xlane.f32.xlu0 %v4186
        %v4188 = vpop.xlane.xlu0 %4187
        %v4189 = vsel %vm998, %v4169, -inf
        %4190 = vmax.xlane.f32.xlu0 %v4189
        %v4191 = vpop.xlane.xlu0 %4190
        %v4192 = vsel %vm998, %v4170, -inf
        %4193 = vmax.xlane.f32.xlu0 %v4192
        %v4194 = vpop.xlane.xlu0 %4193
        %v4195 = vsub.f32 %v4163, %v4173
        %v4196 = vsub.f32 %v4164, %v4176
        %v4197 = vsub.f32 %v4165, %v4179
        %v4198 = vsub.f32 %v4166, %v4182
        %v4199 = vsub.f32 %v4167, %v4185
        %v4200 = vsub.f32 %v4168, %v4188
        %v4201 = vsub.f32 %v4169, %v4191
        %v4202 = vsub.f32 %v4170, %v4194
        %v4203 = vmul.f32 %v4195, 1.442695
        %v4204 = vpow.pop %v4203
        %v4205 = vmul.f32 %v4196, 1.442695
        %v4206 = vpow.pop %v4205
        %v4207 = vmul.f32 %v4197, 1.442695
        %v4208 = vpow.pop %v4207
        %v4209 = vmul.f32 %v4198, 1.442695
        %v4210 = vpow.pop %v4209
        %v4211 = vmul.f32 %v4199, 1.442695
        %v4212 = vpow.pop %v4211
        %v4213 = vmul.f32 %v4200, 1.442695
        %v4214 = vpow.pop %v4213
        %v4215 = vmul.f32 %v4201, 1.442695
        %v4216 = vpow.pop %v4215
        %v4217 = vmul.f32 %v4202, 1.442695
        %v4218 = vpow.pop %v4217
        %v4219 = vsel %vm998, %v4204, 0.0
        %4220 = vadd.xlane.f32.xlu0 %v4219
        %v4221 = vpop.xlane.xlu0 %4220
        %v4222 = vsel %vm998, %v4206, 0.0
        %4223 = vadd.xlane.f32.xlu0 %v4222
        %v4224 = vpop.xlane.xlu0 %4223
        %v4225 = vsel %vm998, %v4208, 0.0
        %4226 = vadd.xlane.f32.xlu0 %v4225
        %v4227 = vpop.xlane.xlu0 %4226
        %v4228 = vsel %vm998, %v4210, 0.0
        %4229 = vadd.xlane.f32.xlu0 %v4228
        %v4230 = vpop.xlane.xlu0 %4229
        %v4231 = vsel %vm998, %v4212, 0.0
        %4232 = vadd.xlane.f32.xlu0 %v4231
        %v4233 = vpop.xlane.xlu0 %4232
        %v4234 = vsel %vm998, %v4214, 0.0
        %4235 = vadd.xlane.f32.xlu0 %v4234
        %v4236 = vpop.xlane.xlu0 %4235
        %v4237 = vsel %vm998, %v4216, 0.0
        %4238 = vadd.xlane.f32.xlu0 %v4237
        %v4239 = vpop.xlane.xlu0 %4238
        %v4240 = vsel %vm998, %v4218, 0.0
        %4241 = vadd.xlane.f32.xlu0 %v4240
        %v4242 = vpop.xlane.xlu0 %4241
        %v4243 = vrcp.pop %v4221
        %v4244 = vmul.f32 %v4221, %v4243
        %v4245 = vsub.f32 1.0, %v4244
        %v4246 = vmul.f32 %v4243, %v4245
        %v4247 = vadd.f32 %v4243, %v4246
        %vm4248 = vweird.f32 %v4221
        %vm4249 = vweird.f32 %v4243
        %vm4250 = vmor %vm4248, %vm4249
        %v4251 = vsel %vm4250, %v4243, %v4247
        %v4252 = vand.u32 2147483647, %v4221
        %vm4253 = vcmp.eq.f32.partialorder %v4252, 8.507059e+37
        %v4254 = vand.u32 %v4221, 2147483648
        %v4255 = vor.u32 1.1754944e-38, %v4254
        %v4256 = vsel %vm4253, %v4255, %v4251
        %v4257 = vmul.f32 %v4204, %v4256
        %v4258 = vrcp.pop %v4224
        %v4259 = vmul.f32 %v4224, %v4258
        %v4260 = vsub.f32 1.0, %v4259
        %v4261 = vmul.f32 %v4258, %v4260
        %v4262 = vadd.f32 %v4258, %v4261
        %vm4263 = vweird.f32 %v4224
        %vm4264 = vweird.f32 %v4258
        %vm4265 = vmor %vm4263, %vm4264
        %v4266 = vsel %vm4265, %v4258, %v4262
        %v4267 = vand.u32 2147483647, %v4224
        %vm4268 = vcmp.eq.f32.partialorder %v4267, 8.507059e+37
        %v4269 = vand.u32 %v4224, 2147483648
        %v4270 = vor.u32 1.1754944e-38, %v4269
        %v4271 = vsel %vm4268, %v4270, %v4266
        %v4272 = vmul.f32 %v4206, %v4271
        %v4273 = vrcp.pop %v4227
        %v4274 = vmul.f32 %v4227, %v4273
        %v4275 = vsub.f32 1.0, %v4274
        %v4276 = vmul.f32 %v4273, %v4275
        %v4277 = vadd.f32 %v4273, %v4276
        %vm4278 = vweird.f32 %v4227
        %vm4279 = vweird.f32 %v4273
        %vm4280 = vmor %vm4278, %vm4279
        %v4281 = vsel %vm4280, %v4273, %v4277
        %v4282 = vand.u32 2147483647, %v4227
        %vm4283 = vcmp.eq.f32.partialorder %v4282, 8.507059e+37
        %v4284 = vand.u32 %v4227, 2147483648
        %v4285 = vor.u32 1.1754944e-38, %v4284
        %v4286 = vsel %vm4283, %v4285, %v4281
        %v4287 = vmul.f32 %v4208, %v4286
        %v4288 = vrcp.pop %v4230
        %v4289 = vmul.f32 %v4230, %v4288
        %v4290 = vsub.f32 1.0, %v4289
        %v4291 = vmul.f32 %v4288, %v4290
        %v4292 = vadd.f32 %v4288, %v4291
        %vm4293 = vweird.f32 %v4230
        %vm4294 = vweird.f32 %v4288
        %vm4295 = vmor %vm4293, %vm4294
        %v4296 = vsel %vm4295, %v4288, %v4292
        %v4297 = vand.u32 2147483647, %v4230
        %vm4298 = vcmp.eq.f32.partialorder %v4297, 8.507059e+37
        %v4299 = vand.u32 %v4230, 2147483648
        %v4300 = vor.u32 1.1754944e-38, %v4299
        %v4301 = vsel %vm4298, %v4300, %v4296
        %v4302 = vmul.f32 %v4210, %v4301
        %v4303 = vrcp.pop %v4233
        %v4304 = vmul.f32 %v4233, %v4303
        %v4305 = vsub.f32 1.0, %v4304
        %v4306 = vmul.f32 %v4303, %v4305
        %v4307 = vadd.f32 %v4303, %v4306
        %vm4308 = vweird.f32 %v4233
        %vm4309 = vweird.f32 %v4303
        %vm4310 = vmor %vm4308, %vm4309
        %v4311 = vsel %vm4310, %v4303, %v4307
        %v4312 = vand.u32 2147483647, %v4233
        %vm4313 = vcmp.eq.f32.partialorder %v4312, 8.507059e+37
        %v4314 = vand.u32 %v4233, 2147483648
        %v4315 = vor.u32 1.1754944e-38, %v4314
        %v4316 = vsel %vm4313, %v4315, %v4311
        %v4317 = vmul.f32 %v4212, %v4316
        %v4318 = vrcp.pop %v4236
        %v4319 = vmul.f32 %v4236, %v4318
        %v4320 = vsub.f32 1.0, %v4319
        %v4321 = vmul.f32 %v4318, %v4320
        %v4322 = vadd.f32 %v4318, %v4321
        %vm4323 = vweird.f32 %v4236
        %vm4324 = vweird.f32 %v4318
        %vm4325 = vmor %vm4323, %vm4324
        %v4326 = vsel %vm4325, %v4318, %v4322
        %v4327 = vand.u32 2147483647, %v4236
        %vm4328 = vcmp.eq.f32.partialorder %v4327, 8.507059e+37
        %v4329 = vand.u32 %v4236, 2147483648
        %v4330 = vor.u32 1.1754944e-38, %v4329
        %v4331 = vsel %vm4328, %v4330, %v4326
        %v4332 = vmul.f32 %v4214, %v4331
        %v4333 = vrcp.pop %v4239
        %v4334 = vmul.f32 %v4239, %v4333
        %v4335 = vsub.f32 1.0, %v4334
        %v4336 = vmul.f32 %v4333, %v4335
        %v4337 = vadd.f32 %v4333, %v4336
        %vm4338 = vweird.f32 %v4239
        %vm4339 = vweird.f32 %v4333
        %vm4340 = vmor %vm4338, %vm4339
        %v4341 = vsel %vm4340, %v4333, %v4337
        %v4342 = vand.u32 2147483647, %v4239
        %vm4343 = vcmp.eq.f32.partialorder %v4342, 8.507059e+37
        %v4344 = vand.u32 %v4239, 2147483648
        %v4345 = vor.u32 1.1754944e-38, %v4344
        %v4346 = vsel %vm4343, %v4345, %v4341
        %v4347 = vmul.f32 %v4216, %v4346
        %v4348 = vrcp.pop %v4242
        %v4349 = vmul.f32 %v4242, %v4348
        %v4350 = vsub.f32 1.0, %v4349
        %v4351 = vmul.f32 %v4348, %v4350
        %v4352 = vadd.f32 %v4348, %v4351
        %vm4353 = vweird.f32 %v4242
        %vm4354 = vweird.f32 %v4348
        %vm4355 = vmor %vm4353, %vm4354
        %v4356 = vsel %vm4355, %v4348, %v4352
        %v4357 = vand.u32 2147483647, %v4242
        %vm4358 = vcmp.eq.f32.partialorder %v4357, 8.507059e+37
        %v4359 = vand.u32 %v4242, 2147483648
        %v4360 = vor.u32 1.1754944e-38, %v4359
        %v4361 = vsel %vm4358, %v4360, %v4356
        %v4362 = vmul.f32 %v4218, %v4361
        %v4364 = vsel %vm998, %v4257, 0
        %4366 = vmatpush.msra.mxu0 0.0
        %4367 = vmatpush.msra.mxu0 0.0
        %4368 = vmatpush.msra.mxu0 0.0
        %4369 = vmatpush.msra.mxu0 0.0
        %4370 = vmatpush.msra.mxu0 0.0
        %4371 = vmatpush.msra.mxu0 0.0
        %4372 = vmatpush.msra.mxu0 0.0
        %4373 = vmatpush.msra.mxu0 0.0
        %4374 = vmatpush.msra.mxu0 0.0
        %4375 = vmatpush.msra.mxu0 0.0
        %4376 = vmatpush.msra.mxu0 0.0
        %4377 = vmatpush.msra.mxu0 0.0
        %4378 = vmatpush.msra.mxu0 0.0
        %4379 = vmatpush.msra.mxu0 0.0
        %4380 = vmatpush.msra.mxu0 0.0
        %4381 = vmatpush.msra.mxu0 %v3932
        %4382 = vmatmul.f32.gmra.mxu0 %v4364
        %v4383 = vpop.f32.mrf.mxu0
        %v4384 = vadd.f32 0.0, %v4383
        %4385 = vdwg.mxu0
        %v4387 = vsel %vm998, %v4272, 0
        %4389 = vmatpush.msra.mxu0 0.0
        %4390 = vmatpush.msra.mxu0 0.0
        %4391 = vmatpush.msra.mxu0 0.0
        %4392 = vmatpush.msra.mxu0 0.0
        %4393 = vmatpush.msra.mxu0 0.0
        %4394 = vmatpush.msra.mxu0 0.0
        %4395 = vmatpush.msra.mxu0 0.0
        %4396 = vmatpush.msra.mxu0 0.0
        %4397 = vmatpush.msra.mxu0 0.0
        %4398 = vmatpush.msra.mxu0 0.0
        %4399 = vmatpush.msra.mxu0 0.0
        %4400 = vmatpush.msra.mxu0 0.0
        %4401 = vmatpush.msra.mxu0 0.0
        %4402 = vmatpush.msra.mxu0 0.0
        %4403 = vmatpush.msra.mxu0 0.0
        %4404 = vmatpush.msra.mxu0 %v3935
        %4405 = vmatmul.f32.gmra.mxu0 %v4387
        %v4406 = vpop.f32.mrf.mxu0
        %v4407 = vadd.f32 0.0, %v4406
        %4408 = vdwg.mxu0
        %v4410 = vsel %vm998, %v4287, 0
        %4412 = vmatpush.msra.mxu0 0.0
        %4413 = vmatpush.msra.mxu0 0.0
        %4414 = vmatpush.msra.mxu0 0.0
        %4415 = vmatpush.msra.mxu0 0.0
        %4416 = vmatpush.msra.mxu0 0.0
        %4417 = vmatpush.msra.mxu0 0.0
        %4418 = vmatpush.msra.mxu0 0.0
        %4419 = vmatpush.msra.mxu0 0.0
        %4420 = vmatpush.msra.mxu0 0.0
        %4421 = vmatpush.msra.mxu0 0.0
        %4422 = vmatpush.msra.mxu0 0.0
        %4423 = vmatpush.msra.mxu0 0.0
        %4424 = vmatpush.msra.mxu0 0.0
        %4425 = vmatpush.msra.mxu0 0.0
        %4426 = vmatpush.msra.mxu0 0.0
        %4427 = vmatpush.msra.mxu0 %v3938
        %4428 = vmatmul.f32.gmra.mxu0 %v4410
        %v4429 = vpop.f32.mrf.mxu0
        %v4430 = vadd.f32 0.0, %v4429
        %4431 = vdwg.mxu0
        %v4433 = vsel %vm998, %v4302, 0
        %4435 = vmatpush.msra.mxu0 0.0
        %4436 = vmatpush.msra.mxu0 0.0
        %4437 = vmatpush.msra.mxu0 0.0
        %4438 = vmatpush.msra.mxu0 0.0
        %4439 = vmatpush.msra.mxu0 0.0
        %4440 = vmatpush.msra.mxu0 0.0
        %4441 = vmatpush.msra.mxu0 0.0
        %4442 = vmatpush.msra.mxu0 0.0
        %4443 = vmatpush.msra.mxu0 0.0
        %4444 = vmatpush.msra.mxu0 0.0
        %4445 = vmatpush.msra.mxu0 0.0
        %4446 = vmatpush.msra.mxu0 0.0
        %4447 = vmatpush.msra.mxu0 0.0
        %4448 = vmatpush.msra.mxu0 0.0
        %4449 = vmatpush.msra.mxu0 0.0
        %4450 = vmatpush.msra.mxu0 %v3941
        %4451 = vmatmul.f32.gmra.mxu0 %v4433
        %v4452 = vpop.f32.mrf.mxu0
        %v4453 = vadd.f32 0.0, %v4452
        %4454 = vdwg.mxu0
        %v4456 = vsel %vm998, %v4317, 0
        %4458 = vmatpush.msra.mxu0 0.0
        %4459 = vmatpush.msra.mxu0 0.0
        %4460 = vmatpush.msra.mxu0 0.0
        %4461 = vmatpush.msra.mxu0 0.0
        %4462 = vmatpush.msra.mxu0 0.0
        %4463 = vmatpush.msra.mxu0 0.0
        %4464 = vmatpush.msra.mxu0 0.0
        %4465 = vmatpush.msra.mxu0 0.0
        %4466 = vmatpush.msra.mxu0 0.0
        %4467 = vmatpush.msra.mxu0 0.0
        %4468 = vmatpush.msra.mxu0 0.0
        %4469 = vmatpush.msra.mxu0 0.0
        %4470 = vmatpush.msra.mxu0 0.0
        %4471 = vmatpush.msra.mxu0 0.0
        %4472 = vmatpush.msra.mxu0 0.0
        %4473 = vmatpush.msra.mxu0 %v3944
        %4474 = vmatmul.f32.gmra.mxu0 %v4456
        %v4475 = vpop.f32.mrf.mxu0
        %v4476 = vadd.f32 0.0, %v4475
        %4477 = vdwg.mxu0
        %v4479 = vsel %vm998, %v4332, 0
        %4481 = vmatpush.msra.mxu0 0.0
        %4482 = vmatpush.msra.mxu0 0.0
        %4483 = vmatpush.msra.mxu0 0.0
        %4484 = vmatpush.msra.mxu0 0.0
        %4485 = vmatpush.msra.mxu0 0.0
        %4486 = vmatpush.msra.mxu0 0.0
        %4487 = vmatpush.msra.mxu0 0.0
        %4488 = vmatpush.msra.mxu0 0.0
        %4489 = vmatpush.msra.mxu0 0.0
        %4490 = vmatpush.msra.mxu0 0.0
        %4491 = vmatpush.msra.mxu0 0.0
        %4492 = vmatpush.msra.mxu0 0.0
        %4493 = vmatpush.msra.mxu0 0.0
        %4494 = vmatpush.msra.mxu0 0.0
        %4495 = vmatpush.msra.mxu0 0.0
        %4496 = vmatpush.msra.mxu0 %v3947
        %4497 = vmatmul.f32.gmra.mxu0 %v4479
        %v4498 = vpop.f32.mrf.mxu0
        %v4499 = vadd.f32 0.0, %v4498
        %4500 = vdwg.mxu0
        %v4502 = vsel %vm998, %v4347, 0
        %4504 = vmatpush.msra.mxu0 0.0
        %4505 = vmatpush.msra.mxu0 0.0
        %4506 = vmatpush.msra.mxu0 0.0
        %4507 = vmatpush.msra.mxu0 0.0
        %4508 = vmatpush.msra.mxu0 0.0
        %4509 = vmatpush.msra.mxu0 0.0
        %4510 = vmatpush.msra.mxu0 0.0
        %4511 = vmatpush.msra.mxu0 0.0
        %4512 = vmatpush.msra.mxu0 0.0
        %4513 = vmatpush.msra.mxu0 0.0
        %4514 = vmatpush.msra.mxu0 0.0
        %4515 = vmatpush.msra.mxu0 0.0
        %4516 = vmatpush.msra.mxu0 0.0
        %4517 = vmatpush.msra.mxu0 0.0
        %4518 = vmatpush.msra.mxu0 0.0
        %4519 = vmatpush.msra.mxu0 %v3950
        %4520 = vmatmul.f32.gmra.mxu0 %v4502
        %v4521 = vpop.f32.mrf.mxu0
        %v4522 = vadd.f32 0.0, %v4521
        %4523 = vdwg.mxu0
        %v4525 = vsel %vm998, %v4362, 0
        %4527 = vmatpush.msra.mxu0 0.0
        %4528 = vmatpush.msra.mxu0 0.0
        %4529 = vmatpush.msra.mxu0 0.0
        %4530 = vmatpush.msra.mxu0 0.0
        %4531 = vmatpush.msra.mxu0 0.0
        %4532 = vmatpush.msra.mxu0 0.0
        %4533 = vmatpush.msra.mxu0 0.0
        %4534 = vmatpush.msra.mxu0 0.0
        %4535 = vmatpush.msra.mxu0 0.0
        %4536 = vmatpush.msra.mxu0 0.0
        %4537 = vmatpush.msra.mxu0 0.0
        %4538 = vmatpush.msra.mxu0 0.0
        %4539 = vmatpush.msra.mxu0 0.0
        %4540 = vmatpush.msra.mxu0 0.0
        %4541 = vmatpush.msra.mxu0 0.0
        %4542 = vmatpush.msra.mxu0 %v3953
        %4543 = vmatmul.f32.gmra.mxu0 %v4525
        %v4544 = vpop.f32.mrf.mxu0
        %v4545 = vadd.f32 0.0, %v4544
        %4546 = vdwg.mxu0
        %v4547 = vadd.f32 %v1583, %v4384
        %v4548 = vadd.f32 %v1584, %v4407
        %v4549 = vadd.f32 %v1585, %v4430
        %v4550 = vadd.f32 %v1586, %v4453
        %v4551 = vadd.f32 %v1587, %v4476
        %v4552 = vadd.f32 %v1588, %v4499
        %v4553 = vadd.f32 %v1589, %v4522
        %v4554 = vadd.f32 %v1590, %v4545
        %s4555 = scalar_lea.vmem %s8, 2
        %v4556 = vld [vmem:[%s4555] sm:$0x1]
        %s4557 = scalar_lea.vmem %s8, 3
        %v4558 = vld [vmem:[%s4557] sm:$0x1]
        %v4559 = vsel %vm781, %v4547, 0.0
        %4560 = vadd.xlane.f32.xlu0 %v4559
        %v4561 = vpop.xlane.xlu0 %4560
        %v4562 = vsel %vm781, %v4548, 0.0
        %4563 = vadd.xlane.f32.xlu0 %v4562
        %v4564 = vpop.xlane.xlu0 %4563
        %v4565 = vsel %vm781, %v4549, 0.0
        %4566 = vadd.xlane.f32.xlu0 %v4565
        %v4567 = vpop.xlane.xlu0 %4566
        %v4568 = vsel %vm781, %v4550, 0.0
        %4569 = vadd.xlane.f32.xlu0 %v4568
        %v4570 = vpop.xlane.xlu0 %4569
        %v4571 = vsel %vm781, %v4551, 0.0
        %4572 = vadd.xlane.f32.xlu0 %v4571
        %v4573 = vpop.xlane.xlu0 %4572
        %v4574 = vsel %vm781, %v4552, 0.0
        %4575 = vadd.xlane.f32.xlu0 %v4574
        %v4576 = vpop.xlane.xlu0 %4575
        %v4577 = vsel %vm781, %v4553, 0.0
        %4578 = vadd.xlane.f32.xlu0 %v4577
        %v4579 = vpop.xlane.xlu0 %4578
        %v4580 = vsel %vm781, %v4554, 0.0
        %4581 = vadd.xlane.f32.xlu0 %v4580
        %v4582 = vpop.xlane.xlu0 %4581
        %v4583 = vmul.f32 %v4561, %v1416
        %v4584 = vmul.f32 %v4564, %v1416
        %v4585 = vmul.f32 %v4567, %v1416
        %v4586 = vmul.f32 %v4570, %v1416
        %v4587 = vmul.f32 %v4573, %v1416
        %v4588 = vmul.f32 %v4576, %v1416
        %v4589 = vmul.f32 %v4579, %v1416
        %v4590 = vmul.f32 %v4582, %v1416
        %v4591 = vsub.f32 %v4547, %v4583
        %v4592 = vsub.f32 %v4548, %v4584
        %v4593 = vsub.f32 %v4549, %v4585
        %v4594 = vsub.f32 %v4550, %v4586
        %v4595 = vsub.f32 %v4551, %v4587
        %v4596 = vsub.f32 %v4552, %v4588
        %v4597 = vsub.f32 %v4553, %v4589
        %v4598 = vsub.f32 %v4554, %v4590
        %v4599 = vmul.f32 %v4591, %v4591
        %v4600 = vmul.f32 %v4592, %v4592
        %v4601 = vmul.f32 %v4593, %v4593
        %v4602 = vmul.f32 %v4594, %v4594
        %v4603 = vmul.f32 %v4595, %v4595
        %v4604 = vmul.f32 %v4596, %v4596
        %v4605 = vmul.f32 %v4597, %v4597
        %v4606 = vmul.f32 %v4598, %v4598
        %v4607 = vsel %vm781, %v4599, 0.0
        %4608 = vadd.xlane.f32.xlu0 %v4607
        %v4609 = vpop.xlane.xlu0 %4608
        %v4610 = vsel %vm781, %v4600, 0.0
        %4611 = vadd.xlane.f32.xlu0 %v4610
        %v4612 = vpop.xlane.xlu0 %4611
        %v4613 = vsel %vm781, %v4601, 0.0
        %4614 = vadd.xlane.f32.xlu0 %v4613
        %v4615 = vpop.xlane.xlu0 %4614
        %v4616 = vsel %vm781, %v4602, 0.0
        %4617 = vadd.xlane.f32.xlu0 %v4616
        %v4618 = vpop.xlane.xlu0 %4617
        %v4619 = vsel %vm781, %v4603, 0.0
        %4620 = vadd.xlane.f32.xlu0 %v4619
        %v4621 = vpop.xlane.xlu0 %4620
        %v4622 = vsel %vm781, %v4604, 0.0
        %4623 = vadd.xlane.f32.xlu0 %v4622
        %v4624 = vpop.xlane.xlu0 %4623
        %v4625 = vsel %vm781, %v4605, 0.0
        %4626 = vadd.xlane.f32.xlu0 %v4625
        %v4627 = vpop.xlane.xlu0 %4626
        %v4628 = vsel %vm781, %v4606, 0.0
        %4629 = vadd.xlane.f32.xlu0 %v4628
        %v4630 = vpop.xlane.xlu0 %4629
        %v4631 = vmul.f32 %v4609, %v1416
        %v4632 = vmul.f32 %v4612, %v1416
        %v4633 = vmul.f32 %v4615, %v1416
        %v4634 = vmul.f32 %v4618, %v1416
        %v4635 = vmul.f32 %v4621, %v1416
        %v4636 = vmul.f32 %v4624, %v1416
        %v4637 = vmul.f32 %v4627, %v1416
        %v4638 = vmul.f32 %v4630, %v1416
        %v4639 = vadd.f32 %v4631, 1e-05
        %v4640 = vadd.f32 %v4632, 1e-05
        %v4641 = vadd.f32 %v4633, 1e-05
        %v4642 = vadd.f32 %v4634, 1e-05
        %v4643 = vadd.f32 %v4635, 1e-05
        %v4644 = vadd.f32 %v4636, 1e-05
        %v4645 = vadd.f32 %v4637, 1e-05
        %v4646 = vadd.f32 %v4638, 1e-05
        %v4647 = vrsqrt.pop %v4639
        %v4648 = vmul.f32 %v4647, %v4639
        %v4649 = vmul.f32 %v4648, %v4647
        %v4650 = vmul.f32 0.5, %v4649
        %v4651 = vsub.f32 1.5, %v4650
        %v4652 = vmul.f32 %v4647, %v4651
        %vm4653 = vweird.f32 %v4639
        %vm4654 = vweird.f32 %v4647
        %vm4655 = vmor %vm4653, %vm4654
        %v4656 = vsel %vm4655, %v4647, %v4652
        %v4657 = vrsqrt.pop %v4640
        %v4658 = vmul.f32 %v4657, %v4640
        %v4659 = vmul.f32 %v4658, %v4657
        %v4660 = vmul.f32 0.5, %v4659
        %v4661 = vsub.f32 1.5, %v4660
        %v4662 = vmul.f32 %v4657, %v4661
        %vm4663 = vweird.f32 %v4640
        %vm4664 = vweird.f32 %v4657
        %vm4665 = vmor %vm4663, %vm4664
        %v4666 = vsel %vm4665, %v4657, %v4662
        %v4667 = vrsqrt.pop %v4641
        %v4668 = vmul.f32 %v4667, %v4641
        %v4669 = vmul.f32 %v4668, %v4667
        %v4670 = vmul.f32 0.5, %v4669
        %v4671 = vsub.f32 1.5, %v4670
        %v4672 = vmul.f32 %v4667, %v4671
        %vm4673 = vweird.f32 %v4641
        %vm4674 = vweird.f32 %v4667
        %vm4675 = vmor %vm4673, %vm4674
        %v4676 = vsel %vm4675, %v4667, %v4672
        %v4677 = vrsqrt.pop %v4642
        %v4678 = vmul.f32 %v4677, %v4642
        %v4679 = vmul.f32 %v4678, %v4677
        %v4680 = vmul.f32 0.5, %v4679
        %v4681 = vsub.f32 1.5, %v4680
        %v4682 = vmul.f32 %v4677, %v4681
        %vm4683 = vweird.f32 %v4642
        %vm4684 = vweird.f32 %v4677
        %vm4685 = vmor %vm4683, %vm4684
        %v4686 = vsel %vm4685, %v4677, %v4682
        %v4687 = vrsqrt.pop %v4643
        %v4688 = vmul.f32 %v4687, %v4643
        %v4689 = vmul.f32 %v4688, %v4687
        %v4690 = vmul.f32 0.5, %v4689
        %v4691 = vsub.f32 1.5, %v4690
        %v4692 = vmul.f32 %v4687, %v4691
        %vm4693 = vweird.f32 %v4643
        %vm4694 = vweird.f32 %v4687
        %vm4695 = vmor %vm4693, %vm4694
        %v4696 = vsel %vm4695, %v4687, %v4692
        %v4697 = vrsqrt.pop %v4644
        %v4698 = vmul.f32 %v4697, %v4644
        %v4699 = vmul.f32 %v4698, %v4697
        %v4700 = vmul.f32 0.5, %v4699
        %v4701 = vsub.f32 1.5, %v4700
        %v4702 = vmul.f32 %v4697, %v4701
        %vm4703 = vweird.f32 %v4644
        %vm4704 = vweird.f32 %v4697
        %vm4705 = vmor %vm4703, %vm4704
        %v4706 = vsel %vm4705, %v4697, %v4702
        %v4707 = vrsqrt.pop %v4645
        %v4708 = vmul.f32 %v4707, %v4645
        %v4709 = vmul.f32 %v4708, %v4707
        %v4710 = vmul.f32 0.5, %v4709
        %v4711 = vsub.f32 1.5, %v4710
        %v4712 = vmul.f32 %v4707, %v4711
        %vm4713 = vweird.f32 %v4645
        %vm4714 = vweird.f32 %v4707
        %vm4715 = vmor %vm4713, %vm4714
        %v4716 = vsel %vm4715, %v4707, %v4712
        %v4717 = vrsqrt.pop %v4646
        %v4718 = vmul.f32 %v4717, %v4646
        %v4719 = vmul.f32 %v4718, %v4717
        %v4720 = vmul.f32 0.5, %v4719
        %v4721 = vsub.f32 1.5, %v4720
        %v4722 = vmul.f32 %v4717, %v4721
        %vm4723 = vweird.f32 %v4646
        %vm4724 = vweird.f32 %v4717
        %vm4725 = vmor %vm4723, %vm4724
        %v4726 = vsel %vm4725, %v4717, %v4722
        %v4727 = vmul.f32 %v4591, %v4656
        %v4728 = vmul.f32 %v4592, %v4666
        %v4729 = vmul.f32 %v4593, %v4676
        %v4730 = vmul.f32 %v4594, %v4686
        %v4731 = vmul.f32 %v4595, %v4696
        %v4732 = vmul.f32 %v4596, %v4706
        %v4733 = vmul.f32 %v4597, %v4716
        %v4734 = vmul.f32 %v4598, %v4726
        %v4736 = vperm.slane %v4556, 0
        %v4738 = vmul.f32 %v4727, %v4736
        %v4739 = vmul.f32 %v4728, %v4736
        %v4740 = vmul.f32 %v4729, %v4736
        %v4741 = vmul.f32 %v4730, %v4736
        %v4742 = vmul.f32 %v4731, %v4736
        %v4743 = vmul.f32 %v4732, %v4736
        %v4744 = vmul.f32 %v4733, %v4736
        %v4745 = vmul.f32 %v4734, %v4736
        %v4747 = vperm.slane %v4558, 0
        %v4749 = vadd.f32 %v4738, %v4747
        %v4750 = vadd.f32 %v4739, %v4747
        %v4751 = vadd.f32 %v4740, %v4747
        %v4752 = vadd.f32 %v4741, %v4747
        %v4753 = vadd.f32 %v4742, %v4747
        %v4754 = vadd.f32 %v4743, %v4747
        %v4755 = vadd.f32 %v4744, %v4747
        %v4756 = vadd.f32 %v4745, %v4747
        %v4757 = vld [vmem:[%s9] sm:$0xff]
        %v4758 = vld [vmem:[%s9 + $0x8] sm:$0xff]
        %s4759 = scalar_lea.vmem %s9, 16
        %v4760 = vld [vmem:[%s4759] sm:$0xff]
        %v4761 = vld [vmem:[%s4759 + $0x8] sm:$0xff]
        %v4770 = vrot.slane %v4749, 1
        %v4771 = vsel %vm3070, %v4750, %v4770
        %v4772 = vrot.slane %v4751, 7
        %v4773 = vsel %vm3073, %v4772, %v4771
        %v4774 = vrot.slane %v4752, 6
        %v4775 = vsel %vm3076, %v4774, %v4773
        %v4776 = vrot.slane %v4753, 5
        %v4777 = vsel %vm3079, %v4776, %v4775
        %v4778 = vrot.slane %v4754, 4
        %v4779 = vsel %vm3082, %v4778, %v4777
        %v4780 = vrot.slane %v4755, 3
        %v4781 = vsel %vm3085, %v4780, %v4779
        %v4782 = vrot.slane %v4756, 2
        %v4783 = vsel %vm3088, %v4782, %v4781
        %v4784 = vsel %vm781, %v4783, 0
        %4786 = vmatpush.msra.mxu0 0.0
        %4787 = vmatpush.msra.mxu0 0.0
        %4788 = vmatpush.msra.mxu0 0.0
        %4789 = vmatpush.msra.mxu0 0.0
        %4790 = vmatpush.msra.mxu0 0.0
        %4791 = vmatpush.msra.mxu0 0.0
        %4792 = vmatpush.msra.mxu0 0.0
        %4793 = vmatpush.msra.mxu0 0.0
        %4794 = vmatpush.msra.mxu0 0.0
        %4795 = vmatpush.msra.mxu0 0.0
        %4796 = vmatpush.msra.mxu0 0.0
        %4797 = vmatpush.msra.mxu0 0.0
        %4798 = vmatpush.msra.mxu0 0.0
        %4799 = vmatpush.msra.mxu0 0.0
        %4800 = vmatpush.msra.mxu0 %v4761
        %4801 = vmatpush.msra.mxu0 %v4760
        %4802 = vmatmul.f32.gmra.mxu0 %v4784
        %v4803 = vpop.f32.mrf.mxu0
        %v4804 = vadd.f32 0.0, %v4803
        %4805 = vdwg.mxu0
        %v4806 = vrot.slane %v4750, 7
        %v4807 = vsel %vm3070, %v4806, %v4749
        %v4808 = vrot.slane %v4751, 6
        %v4809 = vsel %vm3073, %v4808, %v4807
        %v4810 = vrot.slane %v4752, 5
        %v4811 = vsel %vm3076, %v4810, %v4809
        %v4812 = vrot.slane %v4753, 4
        %v4813 = vsel %vm3079, %v4812, %v4811
        %v4814 = vrot.slane %v4754, 3
        %v4815 = vsel %vm3082, %v4814, %v4813
        %v4816 = vrot.slane %v4755, 2
        %v4817 = vsel %vm3085, %v4816, %v4815
        %v4818 = vrot.slane %v4756, 1
        %v4819 = vsel %vm3088, %v4818, %v4817
        %v4820 = vsel %vm781, %v4819, 0
        %4822 = vmatpush.msra.mxu0 0.0
        %4823 = vmatpush.msra.mxu0 0.0
        %4824 = vmatpush.msra.mxu0 0.0
        %4825 = vmatpush.msra.mxu0 0.0
        %4826 = vmatpush.msra.mxu0 0.0
        %4827 = vmatpush.msra.mxu0 0.0
        %4828 = vmatpush.msra.mxu0 0.0
        %4829 = vmatpush.msra.mxu0 0.0
        %4830 = vmatpush.msra.mxu0 0.0
        %4831 = vmatpush.msra.mxu0 0.0
        %4832 = vmatpush.msra.mxu0 0.0
        %4833 = vmatpush.msra.mxu0 0.0
        %4834 = vmatpush.msra.mxu0 0.0
        %4835 = vmatpush.msra.mxu0 0.0
        %4836 = vmatpush.msra.mxu0 %v4758
        %4837 = vmatpush.msra.mxu0 %v4757
        %4838 = vmatmul.f32.gmra.mxu0 %v4820
        %v4839 = vpop.f32.mrf.mxu0
        %v4840 = vadd.f32 %v4804, %v4839
        %4841 = vdwg.mxu0
        %s4842 = scalar_lea.vmem %s9, 32
        %v4843 = vld [vmem:[%s4842] sm:$0xff]
        %v4844 = vld [vmem:[%s4842 + $0x8] sm:$0xff]
        %v4845 = vrot.slane %v4749, 2
        %v4846 = vrot.slane %v4750, 1
        %v4847 = vsel %vm3070, %v4846, %v4845
        %v4848 = vsel %vm3073, %v4751, %v4847
        %v4849 = vrot.slane %v4752, 7
        %v4850 = vsel %vm3076, %v4849, %v4848
        %v4851 = vrot.slane %v4753, 6
        %v4852 = vsel %vm3079, %v4851, %v4850
        %v4853 = vrot.slane %v4754, 5
        %v4854 = vsel %vm3082, %v4853, %v4852
        %v4855 = vrot.slane %v4755, 4
        %v4856 = vsel %vm3085, %v4855, %v4854
        %v4857 = vrot.slane %v4756, 3
        %v4858 = vsel %vm3088, %v4857, %v4856
        %v4859 = vsel %vm781, %v4858, 0
        %4861 = vmatpush.msra.mxu0 0.0
        %4862 = vmatpush.msra.mxu0 0.0
        %4863 = vmatpush.msra.mxu0 0.0
        %4864 = vmatpush.msra.mxu0 0.0
        %4865 = vmatpush.msra.mxu0 0.0
        %4866 = vmatpush.msra.mxu0 0.0
        %4867 = vmatpush.msra.mxu0 0.0
        %4868 = vmatpush.msra.mxu0 0.0
        %4869 = vmatpush.msra.mxu0 0.0
        %4870 = vmatpush.msra.mxu0 0.0
        %4871 = vmatpush.msra.mxu0 0.0
        %4872 = vmatpush.msra.mxu0 0.0
        %4873 = vmatpush.msra.mxu0 0.0
        %4874 = vmatpush.msra.mxu0 0.0
        %4875 = vmatpush.msra.mxu0 %v4844
        %4876 = vmatpush.msra.mxu0 %v4843
        %4877 = vmatmul.f32.gmra.mxu0 %v4859
        %v4878 = vpop.f32.mrf.mxu0
        %v4879 = vadd.f32 0.0, %v4878
        %4880 = vdwg.mxu0
        %v4881 = vadd.f32 %v4840, %v4879
        %s4882 = scalar_lea.vmem %s9, 48
        %v4883 = vld [vmem:[%s4882] sm:$0xff]
        %v4884 = vld [vmem:[%s4882 + $0x8] sm:$0xff]
        %v4885 = vrot.slane %v4749, 3
        %v4886 = vrot.slane %v4750, 2
        %v4887 = vsel %vm3070, %v4886, %v4885
        %v4888 = vrot.slane %v4751, 1
        %v4889 = vsel %vm3073, %v4888, %v4887
        %v4890 = vsel %vm3076, %v4752, %v4889
        %v4891 = vrot.slane %v4753, 7
        %v4892 = vsel %vm3079, %v4891, %v4890
        %v4893 = vrot.slane %v4754, 6
        %v4894 = vsel %vm3082, %v4893, %v4892
        %v4895 = vrot.slane %v4755, 5
        %v4896 = vsel %vm3085, %v4895, %v4894
        %v4897 = vrot.slane %v4756, 4
        %v4898 = vsel %vm3088, %v4897, %v4896
        %v4899 = vsel %vm781, %v4898, 0
        %4901 = vmatpush.msra.mxu0 0.0
        %4902 = vmatpush.msra.mxu0 0.0
        %4903 = vmatpush.msra.mxu0 0.0
        %4904 = vmatpush.msra.mxu0 0.0
        %4905 = vmatpush.msra.mxu0 0.0
        %4906 = vmatpush.msra.mxu0 0.0
        %4907 = vmatpush.msra.mxu0 0.0
        %4908 = vmatpush.msra.mxu0 0.0
        %4909 = vmatpush.msra.mxu0 0.0
        %4910 = vmatpush.msra.mxu0 0.0
        %4911 = vmatpush.msra.mxu0 0.0
        %4912 = vmatpush.msra.mxu0 0.0
        %4913 = vmatpush.msra.mxu0 0.0
        %4914 = vmatpush.msra.mxu0 0.0
        %4915 = vmatpush.msra.mxu0 %v4884
        %4916 = vmatpush.msra.mxu0 %v4883
        %4917 = vmatmul.f32.gmra.mxu0 %v4899
        %v4918 = vpop.f32.mrf.mxu0
        %v4919 = vadd.f32 0.0, %v4918
        %4920 = vdwg.mxu0
        %v4921 = vadd.f32 %v4881, %v4919
        %s4922 = scalar_lea.vmem %s9, 64
        %v4923 = vld [vmem:[%s4922] sm:$0xff]
        %v4924 = vld [vmem:[%s4922 + $0x8] sm:$0xff]
        %v4925 = vrot.slane %v4749, 4
        %v4926 = vrot.slane %v4750, 3
        %v4927 = vsel %vm3070, %v4926, %v4925
        %v4928 = vrot.slane %v4751, 2
        %v4929 = vsel %vm3073, %v4928, %v4927
        %v4930 = vrot.slane %v4752, 1
        %v4931 = vsel %vm3076, %v4930, %v4929
        %v4932 = vsel %vm3079, %v4753, %v4931
        %v4933 = vrot.slane %v4754, 7
        %v4934 = vsel %vm3082, %v4933, %v4932
        %v4935 = vrot.slane %v4755, 6
        %v4936 = vsel %vm3085, %v4935, %v4934
        %v4937 = vrot.slane %v4756, 5
        %v4938 = vsel %vm3088, %v4937, %v4936
        %v4939 = vsel %vm781, %v4938, 0
        %4941 = vmatpush.msra.mxu0 0.0
        %4942 = vmatpush.msra.mxu0 0.0
        %4943 = vmatpush.msra.mxu0 0.0
        %4944 = vmatpush.msra.mxu0 0.0
        %4945 = vmatpush.msra.mxu0 0.0
        %4946 = vmatpush.msra.mxu0 0.0
        %4947 = vmatpush.msra.mxu0 0.0
        %4948 = vmatpush.msra.mxu0 0.0
        %4949 = vmatpush.msra.mxu0 0.0
        %4950 = vmatpush.msra.mxu0 0.0
        %4951 = vmatpush.msra.mxu0 0.0
        %4952 = vmatpush.msra.mxu0 0.0
        %4953 = vmatpush.msra.mxu0 0.0
        %4954 = vmatpush.msra.mxu0 0.0
        %4955 = vmatpush.msra.mxu0 %v4924
        %4956 = vmatpush.msra.mxu0 %v4923
        %4957 = vmatmul.f32.gmra.mxu0 %v4939
        %v4958 = vpop.f32.mrf.mxu0
        %v4959 = vadd.f32 0.0, %v4958
        %4960 = vdwg.mxu0
        %v4961 = vadd.f32 %v4921, %v4959
        %s4962 = scalar_lea.vmem %s9, 80
        %v4963 = vld [vmem:[%s4962] sm:$0xff]
        %v4964 = vld [vmem:[%s4962 + $0x8] sm:$0xff]
        %v4965 = vrot.slane %v4749, 5
        %v4966 = vrot.slane %v4750, 4
        %v4967 = vsel %vm3070, %v4966, %v4965
        %v4968 = vrot.slane %v4751, 3
        %v4969 = vsel %vm3073, %v4968, %v4967
        %v4970 = vrot.slane %v4752, 2
        %v4971 = vsel %vm3076, %v4970, %v4969
        %v4972 = vrot.slane %v4753, 1
        %v4973 = vsel %vm3079, %v4972, %v4971
        %v4974 = vsel %vm3082, %v4754, %v4973
        %v4975 = vrot.slane %v4755, 7
        %v4976 = vsel %vm3085, %v4975, %v4974
        %v4977 = vrot.slane %v4756, 6
        %v4978 = vsel %vm3088, %v4977, %v4976
        %v4979 = vsel %vm781, %v4978, 0
        %4981 = vmatpush.msra.mxu0 0.0
        %4982 = vmatpush.msra.mxu0 0.0
        %4983 = vmatpush.msra.mxu0 0.0
        %4984 = vmatpush.msra.mxu0 0.0
        %4985 = vmatpush.msra.mxu0 0.0
        %4986 = vmatpush.msra.mxu0 0.0
        %4987 = vmatpush.msra.mxu0 0.0
        %4988 = vmatpush.msra.mxu0 0.0
        %4989 = vmatpush.msra.mxu0 0.0
        %4990 = vmatpush.msra.mxu0 0.0
        %4991 = vmatpush.msra.mxu0 0.0
        %4992 = vmatpush.msra.mxu0 0.0
        %4993 = vmatpush.msra.mxu0 0.0
        %4994 = vmatpush.msra.mxu0 0.0
        %4995 = vmatpush.msra.mxu0 %v4964
        %4996 = vmatpush.msra.mxu0 %v4963
        %4997 = vmatmul.f32.gmra.mxu0 %v4979
        %v4998 = vpop.f32.mrf.mxu0
        %v4999 = vadd.f32 0.0, %v4998
        %5000 = vdwg.mxu0
        %v5001 = vadd.f32 %v4961, %v4999
        %s5002 = scalar_lea.vmem %s9, 96
        %v5003 = vld [vmem:[%s5002] sm:$0xff]
        %v5004 = vld [vmem:[%s5002 + $0x8] sm:$0xff]
        %v5005 = vrot.slane %v4749, 6
        %v5006 = vrot.slane %v4750, 5
        %v5007 = vsel %vm3070, %v5006, %v5005
        %v5008 = vrot.slane %v4751, 4
        %v5009 = vsel %vm3073, %v5008, %v5007
        %v5010 = vrot.slane %v4752, 3
        %v5011 = vsel %vm3076, %v5010, %v5009
        %v5012 = vrot.slane %v4753, 2
        %v5013 = vsel %vm3079, %v5012, %v5011
        %v5014 = vrot.slane %v4754, 1
        %v5015 = vsel %vm3082, %v5014, %v5013
        %v5016 = vsel %vm3085, %v4755, %v5015
        %v5017 = vrot.slane %v4756, 7
        %v5018 = vsel %vm3088, %v5017, %v5016
        %v5019 = vsel %vm781, %v5018, 0
        %5021 = vmatpush.msra.mxu0 0.0
        %5022 = vmatpush.msra.mxu0 0.0
        %5023 = vmatpush.msra.mxu0 0.0
        %5024 = vmatpush.msra.mxu0 0.0
        %5025 = vmatpush.msra.mxu0 0.0
        %5026 = vmatpush.msra.mxu0 0.0
        %5027 = vmatpush.msra.mxu0 0.0
        %5028 = vmatpush.msra.mxu0 0.0
        %5029 = vmatpush.msra.mxu0 0.0
        %5030 = vmatpush.msra.mxu0 0.0
        %5031 = vmatpush.msra.mxu0 0.0
        %5032 = vmatpush.msra.mxu0 0.0
        %5033 = vmatpush.msra.mxu0 0.0
        %5034 = vmatpush.msra.mxu0 0.0
        %5035 = vmatpush.msra.mxu0 %v5004
        %5036 = vmatpush.msra.mxu0 %v5003
        %5037 = vmatmul.f32.gmra.mxu0 %v5019
        %v5038 = vpop.f32.mrf.mxu0
        %v5039 = vadd.f32 0.0, %v5038
        %5040 = vdwg.mxu0
        %v5041 = vadd.f32 %v5001, %v5039
        %s5042 = scalar_lea.vmem %s9, 112
        %v5043 = vld [vmem:[%s5042] sm:$0xff]
        %v5044 = vld [vmem:[%s5042 + $0x8] sm:$0xff]
        %v5045 = vrot.slane %v4749, 7
        %v5046 = vrot.slane %v4750, 6
        %v5047 = vsel %vm3070, %v5046, %v5045
        %v5048 = vrot.slane %v4751, 5
        %v5049 = vsel %vm3073, %v5048, %v5047
        %v5050 = vrot.slane %v4752, 4
        %v5051 = vsel %vm3076, %v5050, %v5049
        %v5052 = vrot.slane %v4753, 3
        %v5053 = vsel %vm3079, %v5052, %v5051
        %v5054 = vrot.slane %v4754, 2
        %v5055 = vsel %vm3082, %v5054, %v5053
        %v5056 = vrot.slane %v4755, 1
        %v5057 = vsel %vm3085, %v5056, %v5055
        %v5058 = vsel %vm3088, %v4756, %v5057
        %v5059 = vsel %vm781, %v5058, 0
        %5061 = vmatpush.msra.mxu0 0.0
        %5062 = vmatpush.msra.mxu0 0.0
        %5063 = vmatpush.msra.mxu0 0.0
        %5064 = vmatpush.msra.mxu0 0.0
        %5065 = vmatpush.msra.mxu0 0.0
        %5066 = vmatpush.msra.mxu0 0.0
        %5067 = vmatpush.msra.mxu0 0.0
        %5068 = vmatpush.msra.mxu0 0.0
        %5069 = vmatpush.msra.mxu0 0.0
        %5070 = vmatpush.msra.mxu0 0.0
        %5071 = vmatpush.msra.mxu0 0.0
        %5072 = vmatpush.msra.mxu0 0.0
        %5073 = vmatpush.msra.mxu0 0.0
        %5074 = vmatpush.msra.mxu0 0.0
        %5075 = vmatpush.msra.mxu0 %v5044
        %5076 = vmatpush.msra.mxu0 %v5043
        %5077 = vmatmul.f32.gmra.mxu0 %v5059
        %v5078 = vpop.f32.mrf.mxu0
        %v5079 = vadd.f32 0.0, %v5078
        %5080 = vdwg.mxu0
        %v5081 = vadd.f32 %v5041, %v5079
        %v5082 = vld [vmem:[%s10] sm:$0x1]
        %v5084 = vperm.slane %v5082, 0
        %v5086 = vadd.f32 %v5081, %v5084
        %5087 = vst.msk [vmem:[%s394] sm:$0xff] %vm998, %v5086
        %s5088 = sand.u32 %s274, 1
        %s5089 = scalar_lea.sflag [#allocation4], %s5088
        %s5090 = sand.u32 %s274, 1
        %s5091 = smul.addr %s5090, 8
        %s5092 = scalar_lea.vmem [#allocation3], %s5091
        // Predicated region
        $region65: #{tpu_custom_call.1} parent=63 // pred_check
          %p5093 = pneg %p284
        $region66: #{tpu_custom_call.1} parent=63 // pred_check_branch
          %5095 = sbr.rel (%p5093) target = $region68
        $region67: #{tpu_custom_call.1} parent=63 // pred_region
          %5097 = vsyncadd %s5089, 0
          %s5098 = smul.addr %s25, 8
          %s5099 = scalar_lea.hbm %s11, %s5098
          %s5101 = sshll.u32 %s5092, 4
          %s5102 = int_to_ptr.vmem [resolvable:$true] %s5101
          %s5103 = sshll.u32 %s5099, 4
          %s5104 = int_to_ptr.hbm [resolvable:$true] %s5103
          %5106 = dma.vmem_to_hbm [thread:$0]  %s5102, 128, %s5104, %s5089
        $region68: #{tpu_custom_call.1} parent=63 // pred_fallthru
          _
      $region64: #{tpu_custom_call.1} parent=5 // pred_fallthru
        _
      %p5107 = scmp.le.s32.totalorder 2, %s20
      // Predicated region
      $region69: #{tpu_custom_call.1} parent=5 // pred_check
        %p5108 = pneg %p5107
      $region70: #{tpu_custom_call.1} parent=5 // pred_check_branch
        %5110 = sbr.rel (%p5108) target = $region72
      $region71: #{tpu_custom_call.1} parent=5 // pred_region
        %s5111 = ssub.s32 %s20, 2
        // Predicated region
        $region73: #{tpu_custom_call.1} parent=71 // pred_check
          %p5112 = pneg %p290
        $region74: #{tpu_custom_call.1} parent=71 // pred_check_branch
          %5114 = sbr.rel (%p5112) target = $region76
        $region75: #{tpu_custom_call.1} parent=71 // pred_region
          %s5115 = sand.u32 %s275, 1
          %s5116 = scalar_lea.sflag [#allocation4], %s5115
          %s5117 = sand.u32 %s275, 1
          %s5118 = smul.addr %s5117, 8
          %s5119 = scalar_lea.vmem [#allocation3], %s5118
          %5121 = dma.done %s5116, 128
        $region76: #{tpu_custom_call.1} parent=71 // pred_fallthru
          _
      $region72: #{tpu_custom_call.1} parent=5 // pred_fallthru
        _
    $region6: #{tpu_custom_call.1} parent=1 // loop_footer
      %s24 = sadd.s32 1, %s20
    $region7: #{tpu_custom_call.1} parent=1 // loop_footer_branch
      %19 = sbr.rel target = $region3
    $region8: #{tpu_custom_call.1} parent=1 // loop_exit
      _
    %5122 = vsyncpa [#allocation4], 1
    %s5123 = scalar_lea.sflag [#allocation4], 1
    %5124 = vsyncpa %s5123, 1

</llo_original>
